<compile_context>
chip_gen: v6e
topology: v6e:2x2x1
jax: 0.10.0
libtpu: 0.0.40
codegen_flags: <defaults>
</compile_context>

<pallas_src>
import functools

import jax
import jax.numpy as jnp
from jax import lax
from jax.experimental import pallas as pl
from jax.experimental.pallas import tpu as pltpu


def _round_up(x, m):
    return (x + m - 1) // m * m


# ---------------------------------------------------------------------------
# Fused kernel: conv1(3x3,SAME)+ReLU -> conv2(3x3,SAME)+ReLU -> GAP -> L2 norm
# ---------------------------------------------------------------------------
def _fused_extract_kernel(x_ref, w1_ref, b1_ref, w2_ref, b2_ref, o_ref, y_sc):
    """x_ref : (B, H+2, W+2, Cin) bf16  halo-padded images (SAME padding pre-applied)
       w1_ref: (9*Cin, C1)        bf16  tap-major packed conv1 weights
       b1_ref: (1, C1)            f32
       w2_ref: (9*C1, Cp)         bf16  tap-major packed conv2 weights (Cp lane-dense)
       b2_ref: (1, Cp)            f32
       o_ref : (B, Cp)            f32   L2-normalized pooled features
       y_sc  : (H+2, W+2, C1)     bf16  VMEM scratch: halo-padded conv1 feature map"""
    bsz, hp, wp, cin = x_ref.shape
    h, w = hp - 2, wp - 2
    hw = h * w
    c1 = w1_ref.shape[-1]

    # The scratch's 1-px border is conv2's SAME padding; it is never written below
    # (the interior is fully overwritten per image), so a single zero-fill per grid
    # step keeps it correct.  It is tiny, so re-zeroing each step is also megacore-safe.
    y_sc[...] = jnp.zeros_like(y_sc)

    rows = []
    for b in range(bsz):                                # static unroll over images in block
        xb = x_ref[b]                                   # (hp, wp, cin) bf16

        # conv1 as ONE matmul: concat the 9 shifted views along K (K = 9*Cin = 36).
        cols = [xb[dy:dy + h, dx:dx + w, :].reshape(hw, cin)
                for dy in range(3) for dx in range(3)]
        m1 = jnp.concatenate(cols, axis=-1)                                 # (hw, 9*cin) bf16
        a1 = jnp.dot(m1, w1_ref[...], preferred_element_type=jnp.float32)   # MXU, f32 acc
        a1 = jnp.maximum(a1 + b1_ref[...], 0.0)                             # bias + ReLU, f32

        # conv1 intermediate stays in VMEM only (bf16 re-quantized, mirrors the reference).
        y_sc[1:h + 1, 1:w + 1, :] = a1.reshape(h, w, c1).astype(y_sc.dtype)
        yb = y_sc[...]                                                      # (hp, wp, c1) bf16

        # conv2 as ONE matmul: K = 9*C1 (=144) against the lane-dense (Cp=128) weights.
        cols2 = [yb[dy:dy + h, dx:dx + w, :].reshape(hw, c1)
                 for dy in range(3) for dx in range(3)]
        m2 = jnp.concatenate(cols2, axis=-1)                                # (hw, 9*c1) bf16
        a2 = jnp.dot(m2, w2_ref[...], preferred_element_type=jnp.float32)   # (hw, cp) f32
        a2 = jnp.maximum(a2 + b2_ref[...], 0.0)

        # AdaptiveAvgPool2d((1,1)) + F.normalize(p=2, dim=1, eps=1e-12).
        g = jnp.sum(a2, axis=0, keepdims=True) * (1.0 / hw)                 # (1, cp)
        ssq = jnp.sum(g * g, axis=-1, keepdims=True)                        # (1, 1)
        inv = lax.rsqrt(jnp.maximum(ssq, 1e-24))                            # EUP rsqrt
        rows.append(g * inv)

    o_ref[...] = jnp.concatenate(rows, axis=0)          # single full-lane (B, Cp) store


# ---------------------------------------------------------------------------
# Parameter prep: tap-major packing, optional lane-dense output padding, bf16 cast
# ---------------------------------------------------------------------------
def _prep_conv3x3_params(w_hwio, bias, cout_pad=None):
    kh, kw, cin, cout = w_hwio.shape
    assert (kh, kw) == (3, 3), "demo backbone uses 3x3 convs"
    cp = cout if cout_pad is None else cout_pad
    wk = w_hwio.astype(jnp.float32).reshape(kh * kw * cin, cout)            # tap-major (dy,dx,ci)
    wk = jnp.pad(wk, ((0, 0), (0, cp - cout))).astype(jnp.bfloat16)         # (9*Cin, Cp) bf16
    bk = jnp.pad(bias.astype(jnp.float32), (0, cp - cout)).reshape(1, cp)   # (1, Cp) f32
    return wk, bk


# ---------------------------------------------------------------------------
# Extractor.forward_extract equivalent
# ---------------------------------------------------------------------------
@functools.partial(jax.jit, static_argnames=("images_per_step",))
def extractor_forward_extract(img_nchw, params, *, images_per_step=8):
    n, cin, h, w = img_nchw.shape
    c1 = params["w1"].shape[-1]
    c2 = params["w2"].shape[-1]
    cpad = _round_up(c2, 128)                 # lane-dense output channels
    bsz = min(n, images_per_step)             # images per grid step
    npad = _round_up(n, bsz)
    hp, wp = h + 2, w + 2

    w1p, b1p = _prep_conv3x3_params(params["w1"], params["b1"])                  # (36, C1), (1, C1)
    w2p, b2p = _prep_conv3x3_params(params["w2"], params["b2"], cout_pad=cpad)   # (144, 128), (1, 128)

    # NCHW -> NHWC, bf16 activations, SAME halo pad, batch padded to a multiple of bsz.
    x = jnp.transpose(img_nchw, (0, 2, 3, 1)).astype(jnp.bfloat16)
    x = jnp.pad(x, ((0, npad - n), (1, 1), (1, 1), (0, 0)))

    out = pl.pallas_call(
        _fused_extract_kernel,
        out_shape=jax.ShapeDtypeStruct((npad, cpad), jnp.float32),
        grid_spec=pltpu.PrefetchScalarGridSpec(
            num_scalar_prefetch=0,
            grid=(npad // bsz,),
            in_specs=[
                pl.BlockSpec((bsz, hp, wp, cin), lambda i: (i, 0, 0, 0)),  # B halo-padded images
                pl.BlockSpec((9 * cin, c1), lambda i: (0, 0)),             # conv1 weights, resident
                pl.BlockSpec((1, c1), lambda i: (0, 0)),                   # conv1 bias
                pl.BlockSpec((9 * c1, cpad), lambda i: (0, 0)),            # conv2 weights, resident
                pl.BlockSpec((1, cpad), lambda i: (0, 0)),                 # conv2 bias
            ],
            out_specs=pl.BlockSpec((bsz, cpad), lambda i: (i, 0)),         # lane-dense (B, 128) rows
            scratch_shapes=[pltpu.VMEM((hp, wp, c1), jnp.bfloat16)],       # fused conv1 intermediate
        ),
        # Working set « default scoped VMEM on all generations, so no explicit
        # vmem_limit_bytes; derive per-generation budgets only for large images.
        compiler_params=pltpu.CompilerParams(
            dimension_semantics=("parallel",),
        ),
    )(x, w1p, b1p, w2p, b2p)

    # Padded output channels are exactly zero (zero weights & bias, ReLU(0)=0), so they
    # do not contribute to the L2 norm; slice back to the true batch / channel count.
    return {"backbone": out[:n, :c2]}


# ---------------------------------------------------------------------------
# Pure-JAX reference (mirrors the kernel's bf16 quantization points)
# ---------------------------------------------------------------------------
def _reference(img_nchw, params):
    dn = ("NHWC", "HWIO", "NHWC")
    x = jnp.transpose(img_nchw, (0, 2, 3, 1)).astype(jnp.bfloat16)
    y = lax.conv_general_dilated(x, params["w1"].astype(jnp.bfloat16), (1, 1), "SAME",
                                 dimension_numbers=dn, preferred_element_type=jnp.float32)
    y = jnp.maximum(y + params["b1"], 0.0).astype(jnp.bfloat16)     # kernel keeps bf16 interm.
    z = lax.conv_general_dilated(y, params["w2"].astype(jnp.bfloat16), (1, 1), "SAME",
                                 dimension_numbers=dn, preferred_element_type=jnp.float32)
    z = jnp.maximum(z + params["b2"], 0.0)
    g = jnp.mean(z, axis=(1, 2))                                    # (N, C2)
    g = g / jnp.maximum(jnp.linalg.norm(g, axis=1, keepdims=True), 1e-12)
    return g


if __name__ == "__main__":
    key = jax.random.PRNGKey(0)
    k_img, k_w1, k_b1, k_w2, k_b2 = jax.random.split(key, 5)

    N, Cin, H, W = 2, 4, 16, 16                                     # small synthetic shapes
    C1, C2 = 16, 32

    img = jax.random.normal(k_img, (N, Cin, H, W), jnp.float32)
    params = {
        "w1": 0.1 * jax.random.normal(k_w1, (3, 3, Cin, C1), jnp.float32),
        "b1": 0.1 * jax.random.normal(k_b1, (C1,), jnp.float32),
        "w2": 0.1 * jax.random.normal(k_w2, (3, 3, C1, C2), jnp.float32),
        "b2": 0.1 * jax.random.normal(k_b2, (C2,), jnp.float32),
    }

    out = extractor_forward_extract(img, params)
    feats = jax.block_until_ready(out["backbone"])
    assert feats.shape == (N, C2) and feats.dtype == jnp.float32

    ref = jax.block_until_ready(_reference(img, params))
    assert jnp.allclose(feats, ref, atol=5e-3, rtol=5e-3), "mismatch vs reference"
    # L2-normalized rows should have unit norm
    assert jnp.allclose(jnp.linalg.norm(feats, axis=1), 1.0, atol=1e-5)

    print("KERNEL_OK")
</pallas_src>

<mosaic_0001>
module attributes {stable_mosaic.version = 11 : i64} {
  func.func @_fused_extract_kernel(%arg0: i32, %arg1: memref<2x18x18x4xbf16, #tpu.memory_space<vmem>>, %arg2: memref<36x16xbf16, #tpu.memory_space<vmem>>, %arg3: memref<1x16xf32, #tpu.memory_space<vmem>>, %arg4: memref<144x128xbf16, #tpu.memory_space<vmem>>, %arg5: memref<1x128xf32, #tpu.memory_space<vmem>>, %arg6: memref<2x128xf32, #tpu.memory_space<vmem>>, %arg7: memref<18x18x16xbf16, #tpu.memory_space<vmem>>) attributes {dimension_semantics = [#tpu.dimension_semantics<parallel>], iteration_bounds = array<i64: 1>, scalar_prefetch = 0 : i64, scratch_operands = 1 : i64, tpu.core_type = #tpu.core_type<tc>, window_params = [{transform_indices = @transform_0, window_bounds = array<i64: 2, 18, 18, 4>}, {pipeline_mode = #tpu.pipeline_mode<synchronous>, transform_indices = @transform_1, window_bounds = array<i64: 36, 16>}, {pipeline_mode = #tpu.pipeline_mode<synchronous>, transform_indices = @transform_2, window_bounds = array<i64: 1, 16>}, {pipeline_mode = #tpu.pipeline_mode<synchronous>, transform_indices = @transform_3, window_bounds = array<i64: 144, 128>}, {pipeline_mode = #tpu.pipeline_mode<synchronous>, transform_indices = @transform_4, window_bounds = array<i64: 1, 128>}, {transform_indices = @transform_5, window_bounds = array<i64: 2, 128>}]} {
    %cst = arith.constant 0.000000e+00 : bf16
    %0 = vector.broadcast %cst : bf16 to vector<18x18x16xbf16>
    %c0 = arith.constant 0 : index
    %c0_0 = arith.constant 0 : index
    %c0_1 = arith.constant 0 : index
    %1 = vector.load %arg7[%c0, %c0_0, %c0_1] : memref<18x18x16xbf16, #tpu.memory_space<vmem>>, vector<18x18x16xbf16>
    tpu.vector_store %arg7[%c0, %c0_0, %c0_1], %0 {strides = array<i32>} : memref<18x18x16xbf16, #tpu.memory_space<vmem>>, vector<18x18x16xbf16>,
    %c0_2 = arith.constant 0 : index
    %c0_3 = arith.constant 0 : index
    %c0_4 = arith.constant 0 : index
    %c0_5 = arith.constant 0 : index
    %2 = vector.load %arg1[%c0_2, %c0_3, %c0_4, %c0_5] : memref<2x18x18x4xbf16, #tpu.memory_space<vmem>>, vector<1x18x18x4xbf16>
    %3 = vector.shape_cast %2 : vector<1x18x18x4xbf16> to vector<18x18x4xbf16>
    %4 = vector.extract_strided_slice %3 {offsets = [0, 0, 0], sizes = [16, 16, 4], strides = [1, 1, 1]} : vector<18x18x4xbf16> to vector<16x16x4xbf16>
    %5 = vector.shape_cast %4 : vector<16x16x4xbf16> to vector<256x4xbf16>
    %6 = vector.extract_strided_slice %3 {offsets = [0, 1, 0], sizes = [16, 16, 4], strides = [1, 1, 1]} : vector<18x18x4xbf16> to vector<16x16x4xbf16>
    %7 = vector.shape_cast %6 : vector<16x16x4xbf16> to vector<256x4xbf16>
    %8 = vector.extract_strided_slice %3 {offsets = [0, 2, 0], sizes = [16, 16, 4], strides = [1, 1, 1]} : vector<18x18x4xbf16> to vector<16x16x4xbf16>
    %9 = vector.shape_cast %8 : vector<16x16x4xbf16> to vector<256x4xbf16>
    %10 = vector.extract_strided_slice %3 {offsets = [1, 0, 0], sizes = [16, 16, 4], strides = [1, 1, 1]} : vector<18x18x4xbf16> to vector<16x16x4xbf16>
    %11 = vector.shape_cast %10 : vector<16x16x4xbf16> to vector<256x4xbf16>
    %12 = vector.extract_strided_slice %3 {offsets = [1, 1, 0], sizes = [16, 16, 4], strides = [1, 1, 1]} : vector<18x18x4xbf16> to vector<16x16x4xbf16>
    %13 = vector.shape_cast %12 : vector<16x16x4xbf16> to vector<256x4xbf16>
    %14 = vector.extract_strided_slice %3 {offsets = [1, 2, 0], sizes = [16, 16, 4], strides = [1, 1, 1]} : vector<18x18x4xbf16> to vector<16x16x4xbf16>
    %15 = vector.shape_cast %14 : vector<16x16x4xbf16> to vector<256x4xbf16>
    %16 = vector.extract_strided_slice %3 {offsets = [2, 0, 0], sizes = [16, 16, 4], strides = [1, 1, 1]} : vector<18x18x4xbf16> to vector<16x16x4xbf16>
    %17 = vector.shape_cast %16 : vector<16x16x4xbf16> to vector<256x4xbf16>
    %18 = vector.extract_strided_slice %3 {offsets = [2, 1, 0], sizes = [16, 16, 4], strides = [1, 1, 1]} : vector<18x18x4xbf16> to vector<16x16x4xbf16>
    %19 = vector.shape_cast %18 : vector<16x16x4xbf16> to vector<256x4xbf16>
    %20 = vector.extract_strided_slice %3 {offsets = [2, 2, 0], sizes = [16, 16, 4], strides = [1, 1, 1]} : vector<18x18x4xbf16> to vector<16x16x4xbf16>
    %21 = vector.shape_cast %20 : vector<16x16x4xbf16> to vector<256x4xbf16>
    %22 = tpu.concatenate %5, %7, %9, %11, %13, %15, %17, %19, %21 in 1 : vector<256x4xbf16>, vector<256x4xbf16>, vector<256x4xbf16>, vector<256x4xbf16>, vector<256x4xbf16>, vector<256x4xbf16>, vector<256x4xbf16>, vector<256x4xbf16>, vector<256x4xbf16> -> vector<256x36xbf16>
    %c0_6 = arith.constant 0 : index
    %c0_7 = arith.constant 0 : index
    %23 = vector.load %arg2[%c0_6, %c0_7] : memref<36x16xbf16, #tpu.memory_space<vmem>>, vector<36x16xbf16>
    %cst_8 = arith.constant dense<0.000000e+00> : vector<256x16xf32>
    %24 = tpu.matmul %22, %23, %cst_8 {dimension_numbers = #tpu.dot_dimension_numbers<[1], [0], [0], [1], [0, 0, 1, 1], [], []>} : vector<256x36xbf16>, vector<36x16xbf16>, vector<256x16xf32> -> vector<256x16xf32>
    %c0_9 = arith.constant 0 : index
    %c0_10 = arith.constant 0 : index
    %25 = vector.load %arg3[%c0_9, %c0_10] : memref<1x16xf32, #tpu.memory_space<vmem>>, vector<1x16xf32>
    %26 = vector.broadcast %25 : vector<1x16xf32> to vector<256x16xf32>
    %27 = arith.addf %24, %26 : vector<256x16xf32>
    %cst_11 = arith.constant 0.000000e+00 : f32
    %28 = vector.broadcast %cst_11 : f32 to vector<256x16xf32>
    %29 = arith.maximumf %27, %28 : vector<256x16xf32>
    %30 = vector.shape_cast %29 : vector<256x16xf32> to vector<16x16x16xf32>
    %31 = arith.truncf %30 : vector<16x16x16xf32> to vector<16x16x16xbf16>
    %c1 = arith.constant 1 : index
    %c1_12 = arith.constant 1 : index
    %c0_13 = arith.constant 0 : index
    %32 = vector.load %arg7[%c1, %c1_12, %c0_13] : memref<18x18x16xbf16, #tpu.memory_space<vmem>>, vector<16x16x16xbf16>
    tpu.vector_store %arg7[%c1, %c1_12, %c0_13], %31 {strides = array<i32>} : memref<18x18x16xbf16, #tpu.memory_space<vmem>>, vector<16x16x16xbf16>,
    %c0_14 = arith.constant 0 : index
    %c0_15 = arith.constant 0 : index
    %c0_16 = arith.constant 0 : index
    %33 = vector.load %arg7[%c0_14, %c0_15, %c0_16] : memref<18x18x16xbf16, #tpu.memory_space<vmem>>, vector<18x18x16xbf16>
    %34 = vector.extract_strided_slice %33 {offsets = [0, 0, 0], sizes = [16, 16, 16], strides = [1, 1, 1]} : vector<18x18x16xbf16> to vector<16x16x16xbf16>
    %35 = vector.shape_cast %34 : vector<16x16x16xbf16> to vector<256x16xbf16>
    %36 = vector.extract_strided_slice %33 {offsets = [0, 1, 0], sizes = [16, 16, 16], strides = [1, 1, 1]} : vector<18x18x16xbf16> to vector<16x16x16xbf16>
    %37 = vector.shape_cast %36 : vector<16x16x16xbf16> to vector<256x16xbf16>
    %38 = vector.extract_strided_slice %33 {offsets = [0, 2, 0], sizes = [16, 16, 16], strides = [1, 1, 1]} : vector<18x18x16xbf16> to vector<16x16x16xbf16>
    %39 = vector.shape_cast %38 : vector<16x16x16xbf16> to vector<256x16xbf16>
    %40 = vector.extract_strided_slice %33 {offsets = [1, 0, 0], sizes = [16, 16, 16], strides = [1, 1, 1]} : vector<18x18x16xbf16> to vector<16x16x16xbf16>
    %41 = vector.shape_cast %40 : vector<16x16x16xbf16> to vector<256x16xbf16>
    %42 = vector.extract_strided_slice %33 {offsets = [1, 1, 0], sizes = [16, 16, 16], strides = [1, 1, 1]} : vector<18x18x16xbf16> to vector<16x16x16xbf16>
    %43 = vector.shape_cast %42 : vector<16x16x16xbf16> to vector<256x16xbf16>
    %44 = vector.extract_strided_slice %33 {offsets = [1, 2, 0], sizes = [16, 16, 16], strides = [1, 1, 1]} : vector<18x18x16xbf16> to vector<16x16x16xbf16>
    %45 = vector.shape_cast %44 : vector<16x16x16xbf16> to vector<256x16xbf16>
    %46 = vector.extract_strided_slice %33 {offsets = [2, 0, 0], sizes = [16, 16, 16], strides = [1, 1, 1]} : vector<18x18x16xbf16> to vector<16x16x16xbf16>
    %47 = vector.shape_cast %46 : vector<16x16x16xbf16> to vector<256x16xbf16>
    %48 = vector.extract_strided_slice %33 {offsets = [2, 1, 0], sizes = [16, 16, 16], strides = [1, 1, 1]} : vector<18x18x16xbf16> to vector<16x16x16xbf16>
    %49 = vector.shape_cast %48 : vector<16x16x16xbf16> to vector<256x16xbf16>
    %50 = vector.extract_strided_slice %33 {offsets = [2, 2, 0], sizes = [16, 16, 16], strides = [1, 1, 1]} : vector<18x18x16xbf16> to vector<16x16x16xbf16>
    %51 = vector.shape_cast %50 : vector<16x16x16xbf16> to vector<256x16xbf16>
    %52 = tpu.concatenate %35, %37, %39, %41, %43, %45, %47, %49, %51 in 1 : vector<256x16xbf16>, vector<256x16xbf16>, vector<256x16xbf16>, vector<256x16xbf16>, vector<256x16xbf16>, vector<256x16xbf16>, vector<256x16xbf16>, vector<256x16xbf16>, vector<256x16xbf16> -> vector<256x144xbf16>
    %c0_17 = arith.constant 0 : index
    %c0_18 = arith.constant 0 : index
    %53 = vector.load %arg4[%c0_17, %c0_18] : memref<144x128xbf16, #tpu.memory_space<vmem>>, vector<144x128xbf16>
    %cst_19 = arith.constant dense<0.000000e+00> : vector<256x128xf32>
    %54 = tpu.matmul %52, %53, %cst_19 {dimension_numbers = #tpu.dot_dimension_numbers<[1], [0], [0], [1], [0, 0, 1, 1], [], []>} : vector<256x144xbf16>, vector<144x128xbf16>, vector<256x128xf32> -> vector<256x128xf32>
    %c0_20 = arith.constant 0 : index
    %c0_21 = arith.constant 0 : index
    %55 = vector.load %arg5[%c0_20, %c0_21] : memref<1x128xf32, #tpu.memory_space<vmem>>, vector<1x128xf32>
    %56 = vector.broadcast %55 : vector<1x128xf32> to vector<256x128xf32>
    %57 = arith.addf %54, %56 : vector<256x128xf32>
    %cst_22 = arith.constant 0.000000e+00 : f32
    %58 = vector.broadcast %cst_22 : f32 to vector<256x128xf32>
    %59 = arith.maximumf %57, %58 : vector<256x128xf32>
    %cst_23 = arith.constant dense<0.000000e+00> : vector<128xf32>
    %60 = vector.multi_reduction <add>, %59, %cst_23 [0] : vector<256x128xf32> to vector<128xf32>
    %61 = vector.shape_cast %60 : vector<128xf32> to vector<1x128xf32>
    %cst_24 = arith.constant 3.906250e-03 : f32
    %62 = vector.broadcast %cst_24 : f32 to vector<1x128xf32>
    %63 = arith.mulf %61, %62 : vector<1x128xf32>
    %64 = arith.mulf %63, %63 : vector<1x128xf32>
    %cst_25 = arith.constant dense<0.000000e+00> : vector<1xf32>
    %65 = vector.multi_reduction <add>, %64, %cst_25 [1] : vector<1x128xf32> to vector<1xf32>
    %66 = vector.shape_cast %65 : vector<1xf32> to vector<1x1xf32>
    %cst_26 = arith.constant 1.000000e-24 : f32
    %67 = vector.broadcast %cst_26 : f32 to vector<1x1xf32>
    %68 = arith.maximumf %66, %67 : vector<1x1xf32>
    %69 = math.rsqrt %68 : vector<1x1xf32>
    %70 = vector.broadcast %69 : vector<1x1xf32> to vector<1x128xf32>
    %71 = arith.mulf %63, %70 : vector<1x128xf32>
    %c1_27 = arith.constant 1 : index
    %c0_28 = arith.constant 0 : index
    %c0_29 = arith.constant 0 : index
    %c0_30 = arith.constant 0 : index
    %72 = vector.load %arg1[%c1_27, %c0_28, %c0_29, %c0_30] : memref<2x18x18x4xbf16, #tpu.memory_space<vmem>>, vector<1x18x18x4xbf16>
    %73 = vector.shape_cast %72 : vector<1x18x18x4xbf16> to vector<18x18x4xbf16>
    %74 = vector.extract_strided_slice %73 {offsets = [0, 0, 0], sizes = [16, 16, 4], strides = [1, 1, 1]} : vector<18x18x4xbf16> to vector<16x16x4xbf16>
    %75 = vector.shape_cast %74 : vector<16x16x4xbf16> to vector<256x4xbf16>
    %76 = vector.extract_strided_slice %73 {offsets = [0, 1, 0], sizes = [16, 16, 4], strides = [1, 1, 1]} : vector<18x18x4xbf16> to vector<16x16x4xbf16>
    %77 = vector.shape_cast %76 : vector<16x16x4xbf16> to vector<256x4xbf16>
    %78 = vector.extract_strided_slice %73 {offsets = [0, 2, 0], sizes = [16, 16, 4], strides = [1, 1, 1]} : vector<18x18x4xbf16> to vector<16x16x4xbf16>
    %79 = vector.shape_cast %78 : vector<16x16x4xbf16> to vector<256x4xbf16>
    %80 = vector.extract_strided_slice %73 {offsets = [1, 0, 0], sizes = [16, 16, 4], strides = [1, 1, 1]} : vector<18x18x4xbf16> to vector<16x16x4xbf16>
    %81 = vector.shape_cast %80 : vector<16x16x4xbf16> to vector<256x4xbf16>
    %82 = vector.extract_strided_slice %73 {offsets = [1, 1, 0], sizes = [16, 16, 4], strides = [1, 1, 1]} : vector<18x18x4xbf16> to vector<16x16x4xbf16>
    %83 = vector.shape_cast %82 : vector<16x16x4xbf16> to vector<256x4xbf16>
    %84 = vector.extract_strided_slice %73 {offsets = [1, 2, 0], sizes = [16, 16, 4], strides = [1, 1, 1]} : vector<18x18x4xbf16> to vector<16x16x4xbf16>
    %85 = vector.shape_cast %84 : vector<16x16x4xbf16> to vector<256x4xbf16>
    %86 = vector.extract_strided_slice %73 {offsets = [2, 0, 0], sizes = [16, 16, 4], strides = [1, 1, 1]} : vector<18x18x4xbf16> to vector<16x16x4xbf16>
    %87 = vector.shape_cast %86 : vector<16x16x4xbf16> to vector<256x4xbf16>
    %88 = vector.extract_strided_slice %73 {offsets = [2, 1, 0], sizes = [16, 16, 4], strides = [1, 1, 1]} : vector<18x18x4xbf16> to vector<16x16x4xbf16>
    %89 = vector.shape_cast %88 : vector<16x16x4xbf16> to vector<256x4xbf16>
    %90 = vector.extract_strided_slice %73 {offsets = [2, 2, 0], sizes = [16, 16, 4], strides = [1, 1, 1]} : vector<18x18x4xbf16> to vector<16x16x4xbf16>
    %91 = vector.shape_cast %90 : vector<16x16x4xbf16> to vector<256x4xbf16>
    %92 = tpu.concatenate %75, %77, %79, %81, %83, %85, %87, %89, %91 in 1 : vector<256x4xbf16>, vector<256x4xbf16>, vector<256x4xbf16>, vector<256x4xbf16>, vector<256x4xbf16>, vector<256x4xbf16>, vector<256x4xbf16>, vector<256x4xbf16>, vector<256x4xbf16> -> vector<256x36xbf16>
    %c0_31 = arith.constant 0 : index
    %c0_32 = arith.constant 0 : index
    %93 = vector.load %arg2[%c0_31, %c0_32] : memref<36x16xbf16, #tpu.memory_space<vmem>>, vector<36x16xbf16>
    %cst_33 = arith.constant dense<0.000000e+00> : vector<256x16xf32>
    %94 = tpu.matmul %92, %93, %cst_33 {dimension_numbers = #tpu.dot_dimension_numbers<[1], [0], [0], [1], [0, 0, 1, 1], [], []>} : vector<256x36xbf16>, vector<36x16xbf16>, vector<256x16xf32> -> vector<256x16xf32>
    %c0_34 = arith.constant 0 : index
    %c0_35 = arith.constant 0 : index
    %95 = vector.load %arg3[%c0_34, %c0_35] : memref<1x16xf32, #tpu.memory_space<vmem>>, vector<1x16xf32>
    %96 = vector.broadcast %95 : vector<1x16xf32> to vector<256x16xf32>
    %97 = arith.addf %94, %96 : vector<256x16xf32>
    %cst_36 = arith.constant 0.000000e+00 : f32
    %98 = vector.broadcast %cst_36 : f32 to vector<256x16xf32>
    %99 = arith.maximumf %97, %98 : vector<256x16xf32>
    %100 = vector.shape_cast %99 : vector<256x16xf32> to vector<16x16x16xf32>
    %101 = arith.truncf %100 : vector<16x16x16xf32> to vector<16x16x16xbf16>
    %c1_37 = arith.constant 1 : index
    %c1_38 = arith.constant 1 : index
    %c0_39 = arith.constant 0 : index
    %102 = vector.load %arg7[%c1_37, %c1_38, %c0_39] : memref<18x18x16xbf16, #tpu.memory_space<vmem>>, vector<16x16x16xbf16>
    tpu.vector_store %arg7[%c1_37, %c1_38, %c0_39], %101 {strides = array<i32>} : memref<18x18x16xbf16, #tpu.memory_space<vmem>>, vector<16x16x16xbf16>,
    %c0_40 = arith.constant 0 : index
    %c0_41 = arith.constant 0 : index
    %c0_42 = arith.constant 0 : index
    %103 = vector.load %arg7[%c0_40, %c0_41, %c0_42] : memref<18x18x16xbf16, #tpu.memory_space<vmem>>, vector<18x18x16xbf16>
    %104 = vector.extract_strided_slice %103 {offsets = [0, 0, 0], sizes = [16, 16, 16], strides = [1, 1, 1]} : vector<18x18x16xbf16> to vector<16x16x16xbf16>
    %105 = vector.shape_cast %104 : vector<16x16x16xbf16> to vector<256x16xbf16>
    %106 = vector.extract_strided_slice %103 {offsets = [0, 1, 0], sizes = [16, 16, 16], strides = [1, 1, 1]} : vector<18x18x16xbf16> to vector<16x16x16xbf16>
    %107 = vector.shape_cast %106 : vector<16x16x16xbf16> to vector<256x16xbf16>
    %108 = vector.extract_strided_slice %103 {offsets = [0, 2, 0], sizes = [16, 16, 16], strides = [1, 1, 1]} : vector<18x18x16xbf16> to vector<16x16x16xbf16>
    %109 = vector.shape_cast %108 : vector<16x16x16xbf16> to vector<256x16xbf16>
    %110 = vector.extract_strided_slice %103 {offsets = [1, 0, 0], sizes = [16, 16, 16], strides = [1, 1, 1]} : vector<18x18x16xbf16> to vector<16x16x16xbf16>
    %111 = vector.shape_cast %110 : vector<16x16x16xbf16> to vector<256x16xbf16>
    %112 = vector.extract_strided_slice %103 {offsets = [1, 1, 0], sizes = [16, 16, 16], strides = [1, 1, 1]} : vector<18x18x16xbf16> to vector<16x16x16xbf16>
    %113 = vector.shape_cast %112 : vector<16x16x16xbf16> to vector<256x16xbf16>
    %114 = vector.extract_strided_slice %103 {offsets = [1, 2, 0], sizes = [16, 16, 16], strides = [1, 1, 1]} : vector<18x18x16xbf16> to vector<16x16x16xbf16>
    %115 = vector.shape_cast %114 : vector<16x16x16xbf16> to vector<256x16xbf16>
    %116 = vector.extract_strided_slice %103 {offsets = [2, 0, 0], sizes = [16, 16, 16], strides = [1, 1, 1]} : vector<18x18x16xbf16> to vector<16x16x16xbf16>
    %117 = vector.shape_cast %116 : vector<16x16x16xbf16> to vector<256x16xbf16>
    %118 = vector.extract_strided_slice %103 {offsets = [2, 1, 0], sizes = [16, 16, 16], strides = [1, 1, 1]} : vector<18x18x16xbf16> to vector<16x16x16xbf16>
    %119 = vector.shape_cast %118 : vector<16x16x16xbf16> to vector<256x16xbf16>
    %120 = vector.extract_strided_slice %103 {offsets = [2, 2, 0], sizes = [16, 16, 16], strides = [1, 1, 1]} : vector<18x18x16xbf16> to vector<16x16x16xbf16>
    %121 = vector.shape_cast %120 : vector<16x16x16xbf16> to vector<256x16xbf16>
    %122 = tpu.concatenate %105, %107, %109, %111, %113, %115, %117, %119, %121 in 1 : vector<256x16xbf16>, vector<256x16xbf16>, vector<256x16xbf16>, vector<256x16xbf16>, vector<256x16xbf16>, vector<256x16xbf16>, vector<256x16xbf16>, vector<256x16xbf16>, vector<256x16xbf16> -> vector<256x144xbf16>
    %c0_43 = arith.constant 0 : index
    %c0_44 = arith.constant 0 : index
    %123 = vector.load %arg4[%c0_43, %c0_44] : memref<144x128xbf16, #tpu.memory_space<vmem>>, vector<144x128xbf16>
    %cst_45 = arith.constant dense<0.000000e+00> : vector<256x128xf32>
    %124 = tpu.matmul %122, %123, %cst_45 {dimension_numbers = #tpu.dot_dimension_numbers<[1], [0], [0], [1], [0, 0, 1, 1], [], []>} : vector<256x144xbf16>, vector<144x128xbf16>, vector<256x128xf32> -> vector<256x128xf32>
    %c0_46 = arith.constant 0 : index
    %c0_47 = arith.constant 0 : index
    %125 = vector.load %arg5[%c0_46, %c0_47] : memref<1x128xf32, #tpu.memory_space<vmem>>, vector<1x128xf32>
    %126 = vector.broadcast %125 : vector<1x128xf32> to vector<256x128xf32>
    %127 = arith.addf %124, %126 : vector<256x128xf32>
    %cst_48 = arith.constant 0.000000e+00 : f32
    %128 = vector.broadcast %cst_48 : f32 to vector<256x128xf32>
    %129 = arith.maximumf %127, %128 : vector<256x128xf32>
    %cst_49 = arith.constant dense<0.000000e+00> : vector<128xf32>
    %130 = vector.multi_reduction <add>, %129, %cst_49 [0] : vector<256x128xf32> to vector<128xf32>
    %131 = vector.shape_cast %130 : vector<128xf32> to vector<1x128xf32>
    %cst_50 = arith.constant 3.906250e-03 : f32
    %132 = vector.broadcast %cst_50 : f32 to vector<1x128xf32>
    %133 = arith.mulf %131, %132 : vector<1x128xf32>
    %134 = arith.mulf %133, %133 : vector<1x128xf32>
    %cst_51 = arith.constant dense<0.000000e+00> : vector<1xf32>
    %135 = vector.multi_reduction <add>, %134, %cst_51 [1] : vector<1x128xf32> to vector<1xf32>
    %136 = vector.shape_cast %135 : vector<1xf32> to vector<1x1xf32>
    %cst_52 = arith.constant 1.000000e-24 : f32
    %137 = vector.broadcast %cst_52 : f32 to vector<1x1xf32>
    %138 = arith.maximumf %136, %137 : vector<1x1xf32>
    %139 = math.rsqrt %138 : vector<1x1xf32>
    %140 = vector.broadcast %139 : vector<1x1xf32> to vector<1x128xf32>
    %141 = arith.mulf %133, %140 : vector<1x128xf32>
    %142 = tpu.concatenate %71, %141 in 0 : vector<1x128xf32>, vector<1x128xf32> -> vector<2x128xf32>
    %c0_53 = arith.constant 0 : index
    %c0_54 = arith.constant 0 : index
    %143 = vector.load %arg6[%c0_53, %c0_54] : memref<2x128xf32, #tpu.memory_space<vmem>>, vector<2x128xf32>
    tpu.vector_store %arg6[%c0_53, %c0_54], %142 {strides = array<i32>} : memref<2x128xf32, #tpu.memory_space<vmem>>, vector<2x128xf32>,
    return
  }
  func.func @transform_0(%arg0: i32) -> (i32, i32, i32, i32) {
    %c0_i32 = arith.constant 0 : i32
    %c0_i32_0 = arith.constant 0 : i32
    %c0_i32_1 = arith.constant 0 : i32
    %c0_i32_2 = arith.constant 0 : i32
    return %arg0, %c0_i32, %c0_i32_0, %c0_i32_1 : i32, i32, i32, i32
  }
  func.func @transform_1(%arg0: i32) -> (i32, i32) {
    %c0_i32 = arith.constant 0 : i32
    %c0_i32_0 = arith.constant 0 : i32
    %c0_i32_1 = arith.constant 0 : i32
    return %c0_i32, %c0_i32_0 : i32, i32
  }
  func.func @transform_2(%arg0: i32) -> (i32, i32) {
    %c0_i32 = arith.constant 0 : i32
    %c0_i32_0 = arith.constant 0 : i32
    %c0_i32_1 = arith.constant 0 : i32
    return %c0_i32, %c0_i32_0 : i32, i32
  }
  func.func @transform_3(%arg0: i32) -> (i32, i32) {
    %c0_i32 = arith.constant 0 : i32
    %c0_i32_0 = arith.constant 0 : i32
    %c0_i32_1 = arith.constant 0 : i32
    return %c0_i32, %c0_i32_0 : i32, i32
  }
  func.func @transform_4(%arg0: i32) -> (i32, i32) {
    %c0_i32 = arith.constant 0 : i32
    %c0_i32_0 = arith.constant 0 : i32
    %c0_i32_1 = arith.constant 0 : i32
    return %c0_i32, %c0_i32_0 : i32, i32
  }
  func.func @transform_5(%arg0: i32) -> (i32, i32) {
    %c0_i32 = arith.constant 0 : i32
    %c0_i32_0 = arith.constant 0 : i32
    return %arg0, %c0_i32 : i32, i32
  }
}

</mosaic_0001>

<llo_original>
// kernel: extractor_forward_extract.1
$region0: #{extractor_forward_extract.1}
  #allocation0 [shape = 'u32[]', space=smem, size = 0x4, offset = 0x4, fixed_abs, tag = 'smem constant byte address 0x4 - core index']
  #allocation1 [shape = 'u32[144,128]{1,0:T(1,128)}', space=vmem, size = 0x12000, scoped, tag = 'internal scratch']
  #allocation2 [shape = 'bf16[18,18,16]{2,1,0:T(8,128)(2,1)}', space=vmem, size = 0x1b000, scoped, tag = 'scratch operand']
  %s0 = inlined_call_operand.vmem [shape: bf16[2,18,18,4], index: 0, kind: input, shape index: {}]
  %s1 = inlined_call_operand.vmem [shape: bf16[36,16], index: 1, kind: input, shape index: {}]
  %s2 = inlined_call_operand.vmem [shape: f32[1,16], index: 2, kind: input, shape index: {}]
  %s3 = inlined_call_operand.vmem [shape: bf16[144,128], index: 3, kind: input, shape index: {}]
  %s4 = inlined_call_operand.vmem [shape: f32[1,128], index: 4, kind: input, shape index: {}]
  %s5 = inlined_call_operand.hbm [shape: f32[2,128], index: 5, kind: output, shape index: {}]
  %s6 = sld [smem:[#allocation0]]
  $region30: #{extractor_forward_extract.1} parent=0
    _
  %s8 = ssub.s32 1, %s6
  %s9 = scalar_select 0, %s8, %s6
  $region1: #{extractor_forward_extract.1} parent=0
    #allocation3 [shape = 'u8[1024]{0}', space=vmem, size = 0x400, scoped, tag = 'output window, operand 0, single buffered']
    #allocation4 [shape = 's32[1]{0}', space=sflag, size = 0x4, scoped, tag = 'scoped memory for extractor_forward_extract.1']
    %10 = vsyncpa [#allocation4], 0
    // Predicated region
    $region2: #{extractor_forward_extract.1} parent=1 // pred_check
      _
    $region3: #{extractor_forward_extract.1} parent=1 // pred_check_branch
      %12 = sbr.rel (0) target = $region5
    $region4: #{extractor_forward_extract.1} parent=1 // pred_region
      _
    $region5: #{extractor_forward_extract.1} parent=1 // pred_fallthru
      _
    // Predicated region
    $region6: #{extractor_forward_extract.1} parent=1 // pred_check
      _
    $region7: #{extractor_forward_extract.1} parent=1 // pred_check_branch
      %14 = sbr.rel (0) target = $region9
    $region8: #{extractor_forward_extract.1} parent=1 // pred_region
      _
    $region9: #{extractor_forward_extract.1} parent=1 // pred_fallthru
      _
    // Predicated region
    $region10: #{extractor_forward_extract.1} parent=1 // pred_check
      _
    $region11: #{extractor_forward_extract.1} parent=1 // pred_check_branch
      %16 = sbr.rel (0) target = $region13
    $region12: #{extractor_forward_extract.1} parent=1 // pred_region
      _
    $region13: #{extractor_forward_extract.1} parent=1 // pred_fallthru
      _
    // Predicated region
    $region14: #{extractor_forward_extract.1} parent=1 // pred_check
      _
    $region15: #{extractor_forward_extract.1} parent=1 // pred_check_branch
      %18 = sbr.rel (0) target = $region17
    $region16: #{extractor_forward_extract.1} parent=1 // pred_region
      _
    $region17: #{extractor_forward_extract.1} parent=1 // pred_fallthru
      _
    // Predicated region
    $region18: #{extractor_forward_extract.1} parent=1 // pred_check
      _
    $region19: #{extractor_forward_extract.1} parent=1 // pred_check_branch
      %20 = sbr.rel (0) target = $region21
    $region20: #{extractor_forward_extract.1} parent=1 // pred_region
      _
    $region21: #{extractor_forward_extract.1} parent=1 // pred_fallthru
      _
    %vm22 = vcmask 125952
    %23 = vst.msk [vmem:[#allocation2] sm:$0xf] %vm22, 0
    %24 = vst.msk [vmem:[#allocation2 + $0x4] sm:$0xf] %vm22, 0
    %vm25 = vcmask 122880
    %26 = vst.msk [vmem:[#allocation2 + $0x8] sm:$0x1] %vm25, 0
    %27 = vst.msk [vmem:[#allocation2 + $0xc] sm:$0xf] %vm22, 0
    %28 = vst.msk [vmem:[#allocation2 + $0x10] sm:$0xf] %vm22, 0
    %29 = vst.msk [vmem:[#allocation2 + $0x14] sm:$0x1] %vm25, 0
    %30 = vst.msk [vmem:[#allocation2 + $0x18] sm:$0xf] %vm22, 0
    %31 = vst.msk [vmem:[#allocation2 + $0x1c] sm:$0xf] %vm22, 0
    %32 = vst.msk [vmem:[#allocation2 + $0x20] sm:$0x1] %vm25, 0
    %33 = vst.msk [vmem:[#allocation2 + $0x24] sm:$0xf] %vm22, 0
    %34 = vst.msk [vmem:[#allocation2 + $0x28] sm:$0xf] %vm22, 0
    %35 = vst.msk [vmem:[#allocation2 + $0x2c] sm:$0x1] %vm25, 0
    %36 = vst.msk [vmem:[#allocation2 + $0x30] sm:$0xf] %vm22, 0
    %37 = vst.msk [vmem:[#allocation2 + $0x34] sm:$0xf] %vm22, 0
    %38 = vst.msk [vmem:[#allocation2 + $0x38] sm:$0x1] %vm25, 0
    %39 = vst.msk [vmem:[#allocation2 + $0x3c] sm:$0xf] %vm22, 0
    %40 = vst.msk [vmem:[#allocation2 + $0x40] sm:$0xf] %vm22, 0
    %41 = vst.msk [vmem:[#allocation2 + $0x44] sm:$0x1] %vm25, 0
    %42 = vst.msk [vmem:[#allocation2 + $0x48] sm:$0xf] %vm22, 0
    %43 = vst.msk [vmem:[#allocation2 + $0x4c] sm:$0xf] %vm22, 0
    %44 = vst.msk [vmem:[#allocation2 + $0x50] sm:$0x1] %vm25, 0
    %45 = vst.msk [vmem:[#allocation2 + $0x54] sm:$0xf] %vm22, 0
    %46 = vst.msk [vmem:[#allocation2 + $0x58] sm:$0xf] %vm22, 0
    %47 = vst.msk [vmem:[#allocation2 + $0x5c] sm:$0x1] %vm25, 0
    %48 = vst.msk [vmem:[#allocation2 + $0x60] sm:$0xf] %vm22, 0
    %49 = vst.msk [vmem:[#allocation2 + $0x64] sm:$0xf] %vm22, 0
    %50 = vst.msk [vmem:[#allocation2 + $0x68] sm:$0x1] %vm25, 0
    %51 = vst.msk [vmem:[#allocation2 + $0x6c] sm:$0xf] %vm22, 0
    %52 = vst.msk [vmem:[#allocation2 + $0x70] sm:$0xf] %vm22, 0
    %53 = vst.msk [vmem:[#allocation2 + $0x74] sm:$0x1] %vm25, 0
    %54 = vst.msk [vmem:[#allocation2 + $0x78] sm:$0xf] %vm22, 0
    %55 = vst.msk [vmem:[#allocation2 + $0x7c] sm:$0xf] %vm22, 0
    %56 = vst.msk [vmem:[#allocation2 + $0x80] sm:$0x1] %vm25, 0
    %57 = vst.msk [vmem:[#allocation2 + $0x84] sm:$0xf] %vm22, 0
    %58 = vst.msk [vmem:[#allocation2 + $0x88] sm:$0xf] %vm22, 0
    %59 = vst.msk [vmem:[#allocation2 + $0x8c] sm:$0x1] %vm25, 0
    %60 = vst.msk [vmem:[#allocation2 + $0x90] sm:$0xf] %vm22, 0
    %61 = vst.msk [vmem:[#allocation2 + $0x94] sm:$0xf] %vm22, 0
    %62 = vst.msk [vmem:[#allocation2 + $0x98] sm:$0x1] %vm25, 0
    %63 = vst.msk [vmem:[#allocation2 + $0x9c] sm:$0xf] %vm22, 0
    %64 = vst.msk [vmem:[#allocation2 + $0xa0] sm:$0xf] %vm22, 0
    %65 = vst.msk [vmem:[#allocation2 + $0xa4] sm:$0x1] %vm25, 0
    %66 = vst.msk [vmem:[#allocation2 + $0xa8] sm:$0xf] %vm22, 0
    %67 = vst.msk [vmem:[#allocation2 + $0xac] sm:$0xf] %vm22, 0
    %68 = vst.msk [vmem:[#allocation2 + $0xb0] sm:$0x1] %vm25, 0
    %69 = vst.msk [vmem:[#allocation2 + $0xb4] sm:$0xf] %vm22, 0
    %70 = vst.msk [vmem:[#allocation2 + $0xb8] sm:$0xf] %vm22, 0
    %71 = vst.msk [vmem:[#allocation2 + $0xbc] sm:$0x1] %vm25, 0
    %72 = vst.msk [vmem:[#allocation2 + $0xc0] sm:$0xf] %vm22, 0
    %73 = vst.msk [vmem:[#allocation2 + $0xc4] sm:$0xf] %vm22, 0
    %74 = vst.msk [vmem:[#allocation2 + $0xc8] sm:$0x1] %vm25, 0
    %75 = vst.msk [vmem:[#allocation2 + $0xcc] sm:$0xf] %vm22, 0
    %76 = vst.msk [vmem:[#allocation2 + $0xd0] sm:$0xf] %vm22, 0
    %77 = vst.msk [vmem:[#allocation2 + $0xd4] sm:$0x1] %vm25, 0
    %v78 = vld [vmem:[%s0] sm:$0xf]
    %v79 = vld [vmem:[%s0 + $0x4] sm:$0xf]
    %v80 = vld [vmem:[%s0 + $0x8] sm:$0x1]
    %v81 = vld [vmem:[%s0 + $0xc] sm:$0xf]
    %v82 = vld [vmem:[%s0 + $0x10] sm:$0xf]
    %v83 = vld [vmem:[%s0 + $0x14] sm:$0x1]
    %v84 = vld [vmem:[%s0 + $0x18] sm:$0xf]
    %v85 = vld [vmem:[%s0 + $0x1c] sm:$0xf]
    %v86 = vld [vmem:[%s0 + $0x20] sm:$0x1]
    %v87 = vld [vmem:[%s0 + $0x24] sm:$0xf]
    %v88 = vld [vmem:[%s0 + $0x28] sm:$0xf]
    %v89 = vld [vmem:[%s0 + $0x2c] sm:$0x1]
    %v90 = vld [vmem:[%s0 + $0x30] sm:$0xf]
    %v91 = vld [vmem:[%s0 + $0x34] sm:$0xf]
    %v92 = vld [vmem:[%s0 + $0x38] sm:$0x1]
    %v93 = vld [vmem:[%s0 + $0x3c] sm:$0xf]
    %v94 = vld [vmem:[%s0 + $0x40] sm:$0xf]
    %v95 = vld [vmem:[%s0 + $0x44] sm:$0x1]
    %v96 = vld [vmem:[%s0 + $0x48] sm:$0xf]
    %v97 = vld [vmem:[%s0 + $0x4c] sm:$0xf]
    %v98 = vld [vmem:[%s0 + $0x50] sm:$0x1]
    %v99 = vld [vmem:[%s0 + $0x54] sm:$0xf]
    %v100 = vld [vmem:[%s0 + $0x58] sm:$0xf]
    %v101 = vld [vmem:[%s0 + $0x5c] sm:$0x1]
    %v102 = vld [vmem:[%s0 + $0x60] sm:$0xf]
    %v103 = vld [vmem:[%s0 + $0x64] sm:$0xf]
    %v104 = vld [vmem:[%s0 + $0x68] sm:$0x1]
    %v105 = vld [vmem:[%s0 + $0x6c] sm:$0xf]
    %v106 = vld [vmem:[%s0 + $0x70] sm:$0xf]
    %v107 = vld [vmem:[%s0 + $0x74] sm:$0x1]
    %v108 = vld [vmem:[%s0 + $0x78] sm:$0xf]
    %v109 = vld [vmem:[%s0 + $0x7c] sm:$0xf]
    %v110 = vld [vmem:[%s0 + $0x80] sm:$0x1]
    %v111 = vld [vmem:[%s0 + $0x84] sm:$0xf]
    %v112 = vld [vmem:[%s0 + $0x88] sm:$0xf]
    %v113 = vld [vmem:[%s0 + $0x8c] sm:$0x1]
    %v114 = vld [vmem:[%s0 + $0x90] sm:$0xf]
    %v115 = vld [vmem:[%s0 + $0x94] sm:$0xf]
    %v116 = vld [vmem:[%s0 + $0x98] sm:$0x1]
    %v117 = vld [vmem:[%s0 + $0x9c] sm:$0xf]
    %v118 = vld [vmem:[%s0 + $0xa0] sm:$0xf]
    %v119 = vld [vmem:[%s0 + $0xa4] sm:$0x1]
    %v120 = vld [vmem:[%s0 + $0xa8] sm:$0xf]
    %v121 = vld [vmem:[%s0 + $0xac] sm:$0xf]
    %v122 = vld [vmem:[%s0 + $0xb0] sm:$0x1]
    %v123 = vld [vmem:[%s0 + $0xb4] sm:$0xf]
    %v124 = vld [vmem:[%s0 + $0xb8] sm:$0xf]
    %v125 = vld [vmem:[%s0 + $0xbc] sm:$0x1]
    %v126 = vld [vmem:[%s0 + $0xc0] sm:$0xf]
    %v127 = vld [vmem:[%s0 + $0xc4] sm:$0xf]
    %v128 = vld [vmem:[%s0 + $0xc8] sm:$0x1]
    %v129 = vld [vmem:[%s0 + $0xcc] sm:$0xf]
    %v130 = vld [vmem:[%s0 + $0xd0] sm:$0xf]
    %v131 = vld [vmem:[%s0 + $0xd4] sm:$0x1]
    %vm132 = vsmask.f32 3328
    %vm133 = vsmask.f32 7440
    %vm134 = vmor %vm132, %vm133
    %v136 = vshrl.u32 %v78, 16
    %v138 = vrot.slane %v136, 4
    %v139 = vshll.u32 %v78, 16
    %v141 = vrot.slane %v139, 5
    %v142 = vor.u32 %v138, %v141
    %v143 = vrot.slane %v142, 4
    %v145 = vshll.u32 %v79, 16
    %v147 = vrot.slane %v145, 5
    %v148 = vsel %vm134, %v143, %v147
    %v149 = vshrl.u32 %v79, 16
    %v151 = vrot.slane %v149, 4
    %v152 = vor.u32 %v151, %v147
    %v153 = vrot.slane %v152, 4
    %v155 = vshll.u32 %v80, 16
    %v157 = vrot.slane %v155, 5
    %v158 = vsel %vm134, %v153, %v157
    %v160 = vshrl.u32 %v81, 16
    %v162 = vrot.slane %v160, 4
    %v163 = vshll.u32 %v81, 16
    %v165 = vrot.slane %v163, 5
    %v166 = vor.u32 %v162, %v165
    %v167 = vrot.slane %v166, 4
    %v169 = vshll.u32 %v82, 16
    %v171 = vrot.slane %v169, 5
    %v172 = vsel %vm134, %v167, %v171
    %v173 = vshrl.u32 %v82, 16
    %v175 = vrot.slane %v173, 4
    %v176 = vor.u32 %v175, %v171
    %v177 = vrot.slane %v176, 4
    %v179 = vshll.u32 %v83, 16
    %v181 = vrot.slane %v179, 5
    %v182 = vsel %vm134, %v177, %v181
    %v184 = vshrl.u32 %v84, 16
    %v186 = vrot.slane %v184, 4
    %v187 = vshll.u32 %v84, 16
    %v189 = vrot.slane %v187, 5
    %v190 = vor.u32 %v186, %v189
    %v191 = vrot.slane %v190, 4
    %v193 = vshll.u32 %v85, 16
    %v195 = vrot.slane %v193, 5
    %v196 = vsel %vm134, %v191, %v195
    %v197 = vshrl.u32 %v85, 16
    %v199 = vrot.slane %v197, 4
    %v200 = vor.u32 %v199, %v195
    %v201 = vrot.slane %v200, 4
    %v203 = vshll.u32 %v86, 16
    %v205 = vrot.slane %v203, 5
    %v206 = vsel %vm134, %v201, %v205
    %v208 = vshrl.u32 %v87, 16
    %v210 = vrot.slane %v208, 4
    %v211 = vshll.u32 %v87, 16
    %v213 = vrot.slane %v211, 5
    %v214 = vor.u32 %v210, %v213
    %v215 = vrot.slane %v214, 4
    %v217 = vshll.u32 %v88, 16
    %v219 = vrot.slane %v217, 5
    %v220 = vsel %vm134, %v215, %v219
    %v221 = vshrl.u32 %v88, 16
    %v223 = vrot.slane %v221, 4
    %v224 = vor.u32 %v223, %v219
    %v225 = vrot.slane %v224, 4
    %v227 = vshll.u32 %v89, 16
    %v229 = vrot.slane %v227, 5
    %v230 = vsel %vm134, %v225, %v229
    %v232 = vshrl.u32 %v90, 16
    %v234 = vrot.slane %v232, 4
    %v235 = vshll.u32 %v90, 16
    %v237 = vrot.slane %v235, 5
    %v238 = vor.u32 %v234, %v237
    %v239 = vrot.slane %v238, 4
    %v241 = vshll.u32 %v91, 16
    %v243 = vrot.slane %v241, 5
    %v244 = vsel %vm134, %v239, %v243
    %v245 = vshrl.u32 %v91, 16
    %v247 = vrot.slane %v245, 4
    %v248 = vor.u32 %v247, %v243
    %v249 = vrot.slane %v248, 4
    %v251 = vshll.u32 %v92, 16
    %v253 = vrot.slane %v251, 5
    %v254 = vsel %vm134, %v249, %v253
    %v256 = vshrl.u32 %v93, 16
    %v258 = vrot.slane %v256, 4
    %v259 = vshll.u32 %v93, 16
    %v261 = vrot.slane %v259, 5
    %v262 = vor.u32 %v258, %v261
    %v263 = vrot.slane %v262, 4
    %v265 = vshll.u32 %v94, 16
    %v267 = vrot.slane %v265, 5
    %v268 = vsel %vm134, %v263, %v267
    %v269 = vshrl.u32 %v94, 16
    %v271 = vrot.slane %v269, 4
    %v272 = vor.u32 %v271, %v267
    %v273 = vrot.slane %v272, 4
    %v275 = vshll.u32 %v95, 16
    %v277 = vrot.slane %v275, 5
    %v278 = vsel %vm134, %v273, %v277
    %v280 = vshrl.u32 %v96, 16
    %v282 = vrot.slane %v280, 4
    %v283 = vshll.u32 %v96, 16
    %v285 = vrot.slane %v283, 5
    %v286 = vor.u32 %v282, %v285
    %v287 = vrot.slane %v286, 4
    %v289 = vshll.u32 %v97, 16
    %v291 = vrot.slane %v289, 5
    %v292 = vsel %vm134, %v287, %v291
    %v293 = vshrl.u32 %v97, 16
    %v295 = vrot.slane %v293, 4
    %v296 = vor.u32 %v295, %v291
    %v297 = vrot.slane %v296, 4
    %v299 = vshll.u32 %v98, 16
    %v301 = vrot.slane %v299, 5
    %v302 = vsel %vm134, %v297, %v301
    %v304 = vshrl.u32 %v99, 16
    %v306 = vrot.slane %v304, 4
    %v307 = vshll.u32 %v99, 16
    %v309 = vrot.slane %v307, 5
    %v310 = vor.u32 %v306, %v309
    %v311 = vrot.slane %v310, 4
    %v313 = vshll.u32 %v100, 16
    %v315 = vrot.slane %v313, 5
    %v316 = vsel %vm134, %v311, %v315
    %v317 = vshrl.u32 %v100, 16
    %v319 = vrot.slane %v317, 4
    %v320 = vor.u32 %v319, %v315
    %v321 = vrot.slane %v320, 4
    %v323 = vshll.u32 %v101, 16
    %v325 = vrot.slane %v323, 5
    %v326 = vsel %vm134, %v321, %v325
    %v328 = vshrl.u32 %v102, 16
    %v330 = vrot.slane %v328, 4
    %v331 = vshll.u32 %v102, 16
    %v333 = vrot.slane %v331, 5
    %v334 = vor.u32 %v330, %v333
    %v335 = vrot.slane %v334, 4
    %v337 = vshll.u32 %v103, 16
    %v339 = vrot.slane %v337, 5
    %v340 = vsel %vm134, %v335, %v339
    %v341 = vshrl.u32 %v103, 16
    %v343 = vrot.slane %v341, 4
    %v344 = vor.u32 %v343, %v339
    %v345 = vrot.slane %v344, 4
    %v347 = vshll.u32 %v104, 16
    %v349 = vrot.slane %v347, 5
    %v350 = vsel %vm134, %v345, %v349
    %v352 = vshrl.u32 %v105, 16
    %v354 = vrot.slane %v352, 4
    %v355 = vshll.u32 %v105, 16
    %v357 = vrot.slane %v355, 5
    %v358 = vor.u32 %v354, %v357
    %v359 = vrot.slane %v358, 4
    %v361 = vshll.u32 %v106, 16
    %v363 = vrot.slane %v361, 5
    %v364 = vsel %vm134, %v359, %v363
    %v365 = vshrl.u32 %v106, 16
    %v367 = vrot.slane %v365, 4
    %v368 = vor.u32 %v367, %v363
    %v369 = vrot.slane %v368, 4
    %v371 = vshll.u32 %v107, 16
    %v373 = vrot.slane %v371, 5
    %v374 = vsel %vm134, %v369, %v373
    %v376 = vshrl.u32 %v108, 16
    %v378 = vrot.slane %v376, 4
    %v379 = vshll.u32 %v108, 16
    %v381 = vrot.slane %v379, 5
    %v382 = vor.u32 %v378, %v381
    %v383 = vrot.slane %v382, 4
    %v385 = vshll.u32 %v109, 16
    %v387 = vrot.slane %v385, 5
    %v388 = vsel %vm134, %v383, %v387
    %v389 = vshrl.u32 %v109, 16
    %v391 = vrot.slane %v389, 4
    %v392 = vor.u32 %v391, %v387
    %v393 = vrot.slane %v392, 4
    %v395 = vshll.u32 %v110, 16
    %v397 = vrot.slane %v395, 5
    %v398 = vsel %vm134, %v393, %v397
    %v400 = vshrl.u32 %v111, 16
    %v402 = vrot.slane %v400, 4
    %v403 = vshll.u32 %v111, 16
    %v405 = vrot.slane %v403, 5
    %v406 = vor.u32 %v402, %v405
    %v407 = vrot.slane %v406, 4
    %v409 = vshll.u32 %v112, 16
    %v411 = vrot.slane %v409, 5
    %v412 = vsel %vm134, %v407, %v411
    %v413 = vshrl.u32 %v112, 16
    %v415 = vrot.slane %v413, 4
    %v416 = vor.u32 %v415, %v411
    %v417 = vrot.slane %v416, 4
    %v419 = vshll.u32 %v113, 16
    %v421 = vrot.slane %v419, 5
    %v422 = vsel %vm134, %v417, %v421
    %v424 = vshrl.u32 %v114, 16
    %v426 = vrot.slane %v424, 4
    %v427 = vshll.u32 %v114, 16
    %v429 = vrot.slane %v427, 5
    %v430 = vor.u32 %v426, %v429
    %v431 = vrot.slane %v430, 4
    %v433 = vshll.u32 %v115, 16
    %v435 = vrot.slane %v433, 5
    %v436 = vsel %vm134, %v431, %v435
    %v437 = vshrl.u32 %v115, 16
    %v439 = vrot.slane %v437, 4
    %v440 = vor.u32 %v439, %v435
    %v441 = vrot.slane %v440, 4
    %v443 = vshll.u32 %v116, 16
    %v445 = vrot.slane %v443, 5
    %v446 = vsel %vm134, %v441, %v445
    %v448 = vshrl.u32 %v117, 16
    %v450 = vrot.slane %v448, 4
    %v451 = vshll.u32 %v117, 16
    %v453 = vrot.slane %v451, 5
    %v454 = vor.u32 %v450, %v453
    %v455 = vrot.slane %v454, 4
    %v457 = vshll.u32 %v118, 16
    %v459 = vrot.slane %v457, 5
    %v460 = vsel %vm134, %v455, %v459
    %v461 = vshrl.u32 %v118, 16
    %v463 = vrot.slane %v461, 4
    %v464 = vor.u32 %v463, %v459
    %v465 = vrot.slane %v464, 4
    %v467 = vshll.u32 %v119, 16
    %v469 = vrot.slane %v467, 5
    %v470 = vsel %vm134, %v465, %v469
    %v472 = vshrl.u32 %v120, 16
    %v474 = vrot.slane %v472, 4
    %v475 = vshll.u32 %v120, 16
    %v477 = vrot.slane %v475, 5
    %v478 = vor.u32 %v474, %v477
    %v479 = vrot.slane %v478, 4
    %v481 = vshll.u32 %v121, 16
    %v483 = vrot.slane %v481, 5
    %v484 = vsel %vm134, %v479, %v483
    %v485 = vshrl.u32 %v121, 16
    %v487 = vrot.slane %v485, 4
    %v488 = vor.u32 %v487, %v483
    %v489 = vrot.slane %v488, 4
    %v491 = vshll.u32 %v122, 16
    %v493 = vrot.slane %v491, 5
    %v494 = vsel %vm134, %v489, %v493
    %v496 = vshrl.u32 %v123, 16
    %v498 = vrot.slane %v496, 4
    %v499 = vshll.u32 %v123, 16
    %v501 = vrot.slane %v499, 5
    %v502 = vor.u32 %v498, %v501
    %v503 = vrot.slane %v502, 4
    %v505 = vshll.u32 %v124, 16
    %v507 = vrot.slane %v505, 5
    %v508 = vsel %vm134, %v503, %v507
    %v509 = vshrl.u32 %v124, 16
    %v511 = vrot.slane %v509, 4
    %v512 = vor.u32 %v511, %v507
    %v513 = vrot.slane %v512, 4
    %v515 = vshll.u32 %v125, 16
    %v517 = vrot.slane %v515, 5
    %v518 = vsel %vm134, %v513, %v517
    %vm567 = vcmask 1042432
    %vm568 = vcmask 1046532
    %vm569 = vmor %vm567, %vm568
    %v570 = vrot.slane %v78, 5
    %v571 = vrot.slane %v570, 4
    %v572 = vrot.slane %v79, 5
    %v573 = vsel %vm569, %v571, %v572
    %v574 = vrot.slane %v572, 4
    %v575 = vrot.slane %v80, 5
    %v576 = vsel %vm569, %v574, %v575
    %v577 = vrot.slane %v81, 5
    %v578 = vrot.slane %v577, 4
    %v579 = vrot.slane %v82, 5
    %v580 = vsel %vm569, %v578, %v579
    %v581 = vrot.slane %v579, 4
    %v582 = vrot.slane %v83, 5
    %v583 = vsel %vm569, %v581, %v582
    %v584 = vrot.slane %v84, 5
    %v585 = vrot.slane %v584, 4
    %v586 = vrot.slane %v85, 5
    %v587 = vsel %vm569, %v585, %v586
    %v588 = vrot.slane %v586, 4
    %v589 = vrot.slane %v86, 5
    %v590 = vsel %vm569, %v588, %v589
    %v591 = vrot.slane %v87, 5
    %v592 = vrot.slane %v591, 4
    %v593 = vrot.slane %v88, 5
    %v594 = vsel %vm569, %v592, %v593
    %v595 = vrot.slane %v593, 4
    %v596 = vrot.slane %v89, 5
    %v597 = vsel %vm569, %v595, %v596
    %v598 = vrot.slane %v90, 5
    %v599 = vrot.slane %v598, 4
    %v600 = vrot.slane %v91, 5
    %v601 = vsel %vm569, %v599, %v600
    %v602 = vrot.slane %v600, 4
    %v603 = vrot.slane %v92, 5
    %v604 = vsel %vm569, %v602, %v603
    %v605 = vrot.slane %v93, 5
    %v606 = vrot.slane %v605, 4
    %v607 = vrot.slane %v94, 5
    %v608 = vsel %vm569, %v606, %v607
    %v609 = vrot.slane %v607, 4
    %v610 = vrot.slane %v95, 5
    %v611 = vsel %vm569, %v609, %v610
    %v612 = vrot.slane %v96, 5
    %v613 = vrot.slane %v612, 4
    %v614 = vrot.slane %v97, 5
    %v615 = vsel %vm569, %v613, %v614
    %v616 = vrot.slane %v614, 4
    %v617 = vrot.slane %v98, 5
    %v618 = vsel %vm569, %v616, %v617
    %v619 = vrot.slane %v99, 5
    %v620 = vrot.slane %v619, 4
    %v621 = vrot.slane %v100, 5
    %v622 = vsel %vm569, %v620, %v621
    %v623 = vrot.slane %v621, 4
    %v624 = vrot.slane %v101, 5
    %v625 = vsel %vm569, %v623, %v624
    %v626 = vrot.slane %v102, 5
    %v627 = vrot.slane %v626, 4
    %v628 = vrot.slane %v103, 5
    %v629 = vsel %vm569, %v627, %v628
    %v630 = vrot.slane %v628, 4
    %v631 = vrot.slane %v104, 5
    %v632 = vsel %vm569, %v630, %v631
    %v633 = vrot.slane %v105, 5
    %v634 = vrot.slane %v633, 4
    %v635 = vrot.slane %v106, 5
    %v636 = vsel %vm569, %v634, %v635
    %v637 = vrot.slane %v635, 4
    %v638 = vrot.slane %v107, 5
    %v639 = vsel %vm569, %v637, %v638
    %v640 = vrot.slane %v108, 5
    %v641 = vrot.slane %v640, 4
    %v642 = vrot.slane %v109, 5
    %v643 = vsel %vm569, %v641, %v642
    %v644 = vrot.slane %v642, 4
    %v645 = vrot.slane %v110, 5
    %v646 = vsel %vm569, %v644, %v645
    %v647 = vrot.slane %v111, 5
    %v648 = vrot.slane %v647, 4
    %v649 = vrot.slane %v112, 5
    %v650 = vsel %vm569, %v648, %v649
    %v651 = vrot.slane %v649, 4
    %v652 = vrot.slane %v113, 5
    %v653 = vsel %vm569, %v651, %v652
    %v654 = vrot.slane %v114, 5
    %v655 = vrot.slane %v654, 4
    %v656 = vrot.slane %v115, 5
    %v657 = vsel %vm569, %v655, %v656
    %v658 = vrot.slane %v656, 4
    %v659 = vrot.slane %v116, 5
    %v660 = vsel %vm569, %v658, %v659
    %v661 = vrot.slane %v117, 5
    %v662 = vrot.slane %v661, 4
    %v663 = vrot.slane %v118, 5
    %v664 = vsel %vm569, %v662, %v663
    %v665 = vrot.slane %v663, 4
    %v666 = vrot.slane %v119, 5
    %v667 = vsel %vm569, %v665, %v666
    %v668 = vrot.slane %v120, 5
    %v669 = vrot.slane %v668, 4
    %v670 = vrot.slane %v121, 5
    %v671 = vsel %vm569, %v669, %v670
    %v672 = vrot.slane %v670, 4
    %v673 = vrot.slane %v122, 5
    %v674 = vsel %vm569, %v672, %v673
    %v675 = vrot.slane %v123, 5
    %v676 = vrot.slane %v675, 4
    %v677 = vrot.slane %v124, 5
    %v678 = vsel %vm569, %v676, %v677
    %v679 = vrot.slane %v677, 4
    %v680 = vrot.slane %v125, 5
    %v681 = vsel %vm569, %v679, %v680
    %v683 = vshrl.u32 %v126, 16
    %v685 = vrot.slane %v683, 4
    %v686 = vshll.u32 %v126, 16
    %v688 = vrot.slane %v686, 5
    %v689 = vor.u32 %v685, %v688
    %v690 = vrot.slane %v689, 4
    %v692 = vshll.u32 %v127, 16
    %v694 = vrot.slane %v692, 5
    %v695 = vsel %vm134, %v690, %v694
    %v696 = vshrl.u32 %v127, 16
    %v698 = vrot.slane %v696, 4
    %v699 = vor.u32 %v698, %v694
    %v700 = vrot.slane %v699, 4
    %v702 = vshll.u32 %v128, 16
    %v704 = vrot.slane %v702, 5
    %v705 = vsel %vm134, %v700, %v704
    %v709 = vrot.slane %v126, 5
    %v710 = vrot.slane %v709, 4
    %v711 = vrot.slane %v127, 5
    %v712 = vsel %vm569, %v710, %v711
    %v713 = vrot.slane %v711, 4
    %v714 = vrot.slane %v128, 5
    %v715 = vsel %vm569, %v713, %v714
    %v717 = vshrl.u32 %v129, 16
    %v719 = vrot.slane %v717, 4
    %v720 = vshll.u32 %v129, 16
    %v722 = vrot.slane %v720, 5
    %v723 = vor.u32 %v719, %v722
    %v724 = vrot.slane %v723, 4
    %v726 = vshll.u32 %v130, 16
    %v728 = vrot.slane %v726, 5
    %v729 = vsel %vm134, %v724, %v728
    %v730 = vshrl.u32 %v130, 16
    %v732 = vrot.slane %v730, 4
    %v733 = vor.u32 %v732, %v728
    %v734 = vrot.slane %v733, 4
    %v736 = vshll.u32 %v131, 16
    %v738 = vrot.slane %v736, 5
    %v739 = vsel %vm134, %v734, %v738
    %v743 = vrot.slane %v129, 5
    %v744 = vrot.slane %v743, 4
    %v745 = vrot.slane %v130, 5
    %v746 = vsel %vm569, %v744, %v745
    %v747 = vrot.slane %v745, 4
    %v748 = vrot.slane %v131, 5
    %v749 = vsel %vm569, %v747, %v748
    %v750 = vunpack.c.l.b16 %v78
    %v751 = vunpack.c.l.b16 %v79
    %v752 = vunpack.c.l.b16 %v81
    %v753 = vunpack.c.l.b16 %v82
    %v754 = vunpack.c.l.b16 %v84
    %v755 = vunpack.c.l.b16 %v85
    %v756 = vunpack.c.l.b16 %v87
    %v757 = vunpack.c.l.b16 %v88
    %v758 = vunpack.c.l.b16 %v90
    %v759 = vunpack.c.l.b16 %v91
    %v760 = vunpack.c.l.b16 %v93
    %v761 = vunpack.c.l.b16 %v94
    %v762 = vunpack.c.l.b16 %v96
    %v763 = vunpack.c.l.b16 %v97
    %v764 = vunpack.c.l.b16 %v99
    %v765 = vunpack.c.l.b16 %v100
    %v766 = vunpack.c.l.b16 %v102
    %v767 = vunpack.c.l.b16 %v103
    %v768 = vunpack.c.l.b16 %v105
    %v769 = vunpack.c.l.b16 %v106
    %v770 = vunpack.c.l.b16 %v108
    %v771 = vunpack.c.l.b16 %v109
    %v772 = vunpack.c.l.b16 %v111
    %v773 = vunpack.c.l.b16 %v112
    %v774 = vunpack.c.l.b16 %v114
    %v775 = vunpack.c.l.b16 %v115
    %v776 = vunpack.c.l.b16 %v117
    %v777 = vunpack.c.l.b16 %v118
    %v778 = vunpack.c.l.b16 %v120
    %v779 = vunpack.c.l.b16 %v121
    %v780 = vunpack.c.l.b16 %v123
    %v781 = vunpack.c.l.b16 %v124
    %v782 = vpack.c.b16 %v751, %v750
    %v783 = vpack.c.b16 %v753, %v752
    %v784 = vpack.c.b16 %v755, %v754
    %v785 = vpack.c.b16 %v757, %v756
    %v786 = vpack.c.b16 %v759, %v758
    %v787 = vpack.c.b16 %v761, %v760
    %v788 = vpack.c.b16 %v763, %v762
    %v789 = vpack.c.b16 %v765, %v764
    %v790 = vpack.c.b16 %v767, %v766
    %v791 = vpack.c.b16 %v769, %v768
    %v792 = vpack.c.b16 %v771, %v770
    %v793 = vpack.c.b16 %v773, %v772
    %v794 = vpack.c.b16 %v775, %v774
    %v795 = vpack.c.b16 %v777, %v776
    %v796 = vpack.c.b16 %v779, %v778
    %v797 = vpack.c.b16 %v781, %v780
    %v798 = vunpack.c.l.b16 %v148
    %v799 = vunpack.c.l.b16 %v158
    %v800 = vunpack.c.l.b16 %v172
    %v801 = vunpack.c.l.b16 %v182
    %v802 = vunpack.c.l.b16 %v196
    %v803 = vunpack.c.l.b16 %v206
    %v804 = vunpack.c.l.b16 %v220
    %v805 = vunpack.c.l.b16 %v230
    %v806 = vunpack.c.l.b16 %v244
    %v807 = vunpack.c.l.b16 %v254
    %v808 = vunpack.c.l.b16 %v268
    %v809 = vunpack.c.l.b16 %v278
    %v810 = vunpack.c.l.b16 %v292
    %v811 = vunpack.c.l.b16 %v302
    %v812 = vunpack.c.l.b16 %v316
    %v813 = vunpack.c.l.b16 %v326
    %v814 = vunpack.c.l.b16 %v340
    %v815 = vunpack.c.l.b16 %v350
    %v816 = vunpack.c.l.b16 %v364
    %v817 = vunpack.c.l.b16 %v374
    %v818 = vunpack.c.l.b16 %v388
    %v819 = vunpack.c.l.b16 %v398
    %v820 = vunpack.c.l.b16 %v412
    %v821 = vunpack.c.l.b16 %v422
    %v822 = vunpack.c.l.b16 %v436
    %v823 = vunpack.c.l.b16 %v446
    %v824 = vunpack.c.l.b16 %v460
    %v825 = vunpack.c.l.b16 %v470
    %v826 = vunpack.c.l.b16 %v484
    %v827 = vunpack.c.l.b16 %v494
    %v828 = vunpack.c.l.b16 %v508
    %v829 = vunpack.c.l.b16 %v518
    %v830 = vpack.c.b16 %v799, %v798
    %v831 = vpack.c.b16 %v801, %v800
    %v832 = vpack.c.b16 %v803, %v802
    %v833 = vpack.c.b16 %v805, %v804
    %v834 = vpack.c.b16 %v807, %v806
    %v835 = vpack.c.b16 %v809, %v808
    %v836 = vpack.c.b16 %v811, %v810
    %v837 = vpack.c.b16 %v813, %v812
    %v838 = vpack.c.b16 %v815, %v814
    %v839 = vpack.c.b16 %v817, %v816
    %v840 = vpack.c.b16 %v819, %v818
    %v841 = vpack.c.b16 %v821, %v820
    %v842 = vpack.c.b16 %v823, %v822
    %v843 = vpack.c.b16 %v825, %v824
    %v844 = vpack.c.b16 %v827, %v826
    %v845 = vpack.c.b16 %v829, %v828
    %846 = vrot.lane.b32.xlu0 %v830, 4
    %v847 = vpop.permute.xlu0 %846
    %848 = vrot.lane.b32.xlu0 %v831, 4
    %v849 = vpop.permute.xlu0 %848
    %850 = vrot.lane.b32.xlu0 %v832, 4
    %v851 = vpop.permute.xlu0 %850
    %852 = vrot.lane.b32.xlu0 %v833, 4
    %v853 = vpop.permute.xlu0 %852
    %854 = vrot.lane.b32.xlu0 %v834, 4
    %v855 = vpop.permute.xlu0 %854
    %856 = vrot.lane.b32.xlu0 %v835, 4
    %v857 = vpop.permute.xlu0 %856
    %858 = vrot.lane.b32.xlu0 %v836, 4
    %v859 = vpop.permute.xlu0 %858
    %860 = vrot.lane.b32.xlu0 %v837, 4
    %v861 = vpop.permute.xlu0 %860
    %862 = vrot.lane.b32.xlu0 %v838, 4
    %v863 = vpop.permute.xlu0 %862
    %864 = vrot.lane.b32.xlu0 %v839, 4
    %v865 = vpop.permute.xlu0 %864
    %866 = vrot.lane.b32.xlu0 %v840, 4
    %v867 = vpop.permute.xlu0 %866
    %868 = vrot.lane.b32.xlu0 %v841, 4
    %v869 = vpop.permute.xlu0 %868
    %870 = vrot.lane.b32.xlu0 %v842, 4
    %v871 = vpop.permute.xlu0 %870
    %872 = vrot.lane.b32.xlu0 %v843, 4
    %v873 = vpop.permute.xlu0 %872
    %874 = vrot.lane.b32.xlu0 %v844, 4
    %v875 = vpop.permute.xlu0 %874
    %876 = vrot.lane.b32.xlu0 %v845, 4
    %v877 = vpop.permute.xlu0 %876
    %v878 = vunpack.c.l.b16 %v573
    %v879 = vunpack.c.l.b16 %v576
    %v880 = vunpack.c.l.b16 %v580
    %v881 = vunpack.c.l.b16 %v583
    %v882 = vunpack.c.l.b16 %v587
    %v883 = vunpack.c.l.b16 %v590
    %v884 = vunpack.c.l.b16 %v594
    %v885 = vunpack.c.l.b16 %v597
    %v886 = vunpack.c.l.b16 %v601
    %v887 = vunpack.c.l.b16 %v604
    %v888 = vunpack.c.l.b16 %v608
    %v889 = vunpack.c.l.b16 %v611
    %v890 = vunpack.c.l.b16 %v615
    %v891 = vunpack.c.l.b16 %v618
    %v892 = vunpack.c.l.b16 %v622
    %v893 = vunpack.c.l.b16 %v625
    %v894 = vunpack.c.l.b16 %v629
    %v895 = vunpack.c.l.b16 %v632
    %v896 = vunpack.c.l.b16 %v636
    %v897 = vunpack.c.l.b16 %v639
    %v898 = vunpack.c.l.b16 %v643
    %v899 = vunpack.c.l.b16 %v646
    %v900 = vunpack.c.l.b16 %v650
    %v901 = vunpack.c.l.b16 %v653
    %v902 = vunpack.c.l.b16 %v657
    %v903 = vunpack.c.l.b16 %v660
    %v904 = vunpack.c.l.b16 %v664
    %v905 = vunpack.c.l.b16 %v667
    %v906 = vunpack.c.l.b16 %v671
    %v907 = vunpack.c.l.b16 %v674
    %v908 = vunpack.c.l.b16 %v678
    %v909 = vunpack.c.l.b16 %v681
    %v910 = vpack.c.b16 %v879, %v878
    %v911 = vpack.c.b16 %v881, %v880
    %v912 = vpack.c.b16 %v883, %v882
    %v913 = vpack.c.b16 %v885, %v884
    %v914 = vpack.c.b16 %v887, %v886
    %v915 = vpack.c.b16 %v889, %v888
    %v916 = vpack.c.b16 %v891, %v890
    %v917 = vpack.c.b16 %v893, %v892
    %v918 = vpack.c.b16 %v895, %v894
    %v919 = vpack.c.b16 %v897, %v896
    %v920 = vpack.c.b16 %v899, %v898
    %v921 = vpack.c.b16 %v901, %v900
    %v922 = vpack.c.b16 %v903, %v902
    %v923 = vpack.c.b16 %v905, %v904
    %v924 = vpack.c.b16 %v907, %v906
    %v925 = vpack.c.b16 %v909, %v908
    %926 = vrot.lane.b32.xlu0 %v910, 8
    %v927 = vpop.permute.xlu0 %926
    %928 = vrot.lane.b32.xlu0 %v911, 8
    %v929 = vpop.permute.xlu0 %928
    %930 = vrot.lane.b32.xlu0 %v912, 8
    %v931 = vpop.permute.xlu0 %930
    %932 = vrot.lane.b32.xlu0 %v913, 8
    %v933 = vpop.permute.xlu0 %932
    %934 = vrot.lane.b32.xlu0 %v914, 8
    %v935 = vpop.permute.xlu0 %934
    %936 = vrot.lane.b32.xlu0 %v915, 8
    %v937 = vpop.permute.xlu0 %936
    %938 = vrot.lane.b32.xlu0 %v916, 8
    %v939 = vpop.permute.xlu0 %938
    %940 = vrot.lane.b32.xlu0 %v917, 8
    %v941 = vpop.permute.xlu0 %940
    %942 = vrot.lane.b32.xlu0 %v918, 8
    %v943 = vpop.permute.xlu0 %942
    %944 = vrot.lane.b32.xlu0 %v919, 8
    %v945 = vpop.permute.xlu0 %944
    %946 = vrot.lane.b32.xlu0 %v920, 8
    %v947 = vpop.permute.xlu0 %946
    %948 = vrot.lane.b32.xlu0 %v921, 8
    %v949 = vpop.permute.xlu0 %948
    %950 = vrot.lane.b32.xlu0 %v922, 8
    %v951 = vpop.permute.xlu0 %950
    %952 = vrot.lane.b32.xlu0 %v923, 8
    %v953 = vpop.permute.xlu0 %952
    %954 = vrot.lane.b32.xlu0 %v924, 8
    %v955 = vpop.permute.xlu0 %954
    %956 = vrot.lane.b32.xlu0 %v925, 8
    %v957 = vpop.permute.xlu0 %956
    %v958 = vunpack.c.l.b16 %v126
    %v959 = vunpack.c.l.b16 %v127
    %v960 = vpack.c.b16 %v959, %v958
    %961 = vrot.lane.b32.xlu0 %v783, 12
    %v962 = vpop.permute.xlu0 %961
    %963 = vrot.lane.b32.xlu0 %v784, 12
    %v964 = vpop.permute.xlu0 %963
    %965 = vrot.lane.b32.xlu0 %v785, 12
    %v966 = vpop.permute.xlu0 %965
    %967 = vrot.lane.b32.xlu0 %v786, 12
    %v968 = vpop.permute.xlu0 %967
    %969 = vrot.lane.b32.xlu0 %v787, 12
    %v970 = vpop.permute.xlu0 %969
    %971 = vrot.lane.b32.xlu0 %v788, 12
    %v972 = vpop.permute.xlu0 %971
    %973 = vrot.lane.b32.xlu0 %v789, 12
    %v974 = vpop.permute.xlu0 %973
    %975 = vrot.lane.b32.xlu0 %v790, 12
    %v976 = vpop.permute.xlu0 %975
    %977 = vrot.lane.b32.xlu0 %v791, 12
    %v978 = vpop.permute.xlu0 %977
    %979 = vrot.lane.b32.xlu0 %v792, 12
    %v980 = vpop.permute.xlu0 %979
    %981 = vrot.lane.b32.xlu0 %v793, 12
    %v982 = vpop.permute.xlu0 %981
    %983 = vrot.lane.b32.xlu0 %v794, 12
    %v984 = vpop.permute.xlu0 %983
    %985 = vrot.lane.b32.xlu0 %v795, 12
    %v986 = vpop.permute.xlu0 %985
    %987 = vrot.lane.b32.xlu0 %v796, 12
    %v988 = vpop.permute.xlu0 %987
    %989 = vrot.lane.b32.xlu0 %v797, 12
    %v990 = vpop.permute.xlu0 %989
    %991 = vrot.lane.b32.xlu0 %v960, 12
    %v992 = vpop.permute.xlu0 %991
    %v993 = vunpack.c.l.b16 %v695
    %v994 = vunpack.c.l.b16 %v705
    %v995 = vpack.c.b16 %v994, %v993
    %996 = vrot.lane.b32.xlu0 %v831, 16
    %v997 = vpop.permute.xlu0 %996
    %998 = vrot.lane.b32.xlu0 %v832, 16
    %v999 = vpop.permute.xlu0 %998
    %1000 = vrot.lane.b32.xlu0 %v833, 16
    %v1001 = vpop.permute.xlu0 %1000
    %1002 = vrot.lane.b32.xlu0 %v834, 16
    %v1003 = vpop.permute.xlu0 %1002
    %1004 = vrot.lane.b32.xlu0 %v835, 16
    %v1005 = vpop.permute.xlu0 %1004
    %1006 = vrot.lane.b32.xlu0 %v836, 16
    %v1007 = vpop.permute.xlu0 %1006
    %1008 = vrot.lane.b32.xlu0 %v837, 16
    %v1009 = vpop.permute.xlu0 %1008
    %1010 = vrot.lane.b32.xlu0 %v838, 16
    %v1011 = vpop.permute.xlu0 %1010
    %1012 = vrot.lane.b32.xlu0 %v839, 16
    %v1013 = vpop.permute.xlu0 %1012
    %1014 = vrot.lane.b32.xlu0 %v840, 16
    %v1015 = vpop.permute.xlu0 %1014
    %1016 = vrot.lane.b32.xlu0 %v841, 16
    %v1017 = vpop.permute.xlu0 %1016
    %1018 = vrot.lane.b32.xlu0 %v842, 16
    %v1019 = vpop.permute.xlu0 %1018
    %1020 = vrot.lane.b32.xlu0 %v843, 16
    %v1021 = vpop.permute.xlu0 %1020
    %1022 = vrot.lane.b32.xlu0 %v844, 16
    %v1023 = vpop.permute.xlu0 %1022
    %1024 = vrot.lane.b32.xlu0 %v845, 16
    %v1025 = vpop.permute.xlu0 %1024
    %1026 = vrot.lane.b32.xlu0 %v995, 16
    %v1027 = vpop.permute.xlu0 %1026
    %v1028 = vunpack.c.l.b16 %v712
    %v1029 = vunpack.c.l.b16 %v715
    %v1030 = vpack.c.b16 %v1029, %v1028
    %1031 = vrot.lane.b32.xlu0 %v911, 20
    %v1032 = vpop.permute.xlu0 %1031
    %1033 = vrot.lane.b32.xlu0 %v912, 20
    %v1034 = vpop.permute.xlu0 %1033
    %1035 = vrot.lane.b32.xlu0 %v913, 20
    %v1036 = vpop.permute.xlu0 %1035
    %1037 = vrot.lane.b32.xlu0 %v914, 20
    %v1038 = vpop.permute.xlu0 %1037
    %1039 = vrot.lane.b32.xlu0 %v915, 20
    %v1040 = vpop.permute.xlu0 %1039
    %1041 = vrot.lane.b32.xlu0 %v916, 20
    %v1042 = vpop.permute.xlu0 %1041
    %1043 = vrot.lane.b32.xlu0 %v917, 20
    %v1044 = vpop.permute.xlu0 %1043
    %1045 = vrot.lane.b32.xlu0 %v918, 20
    %v1046 = vpop.permute.xlu0 %1045
    %1047 = vrot.lane.b32.xlu0 %v919, 20
    %v1048 = vpop.permute.xlu0 %1047
    %1049 = vrot.lane.b32.xlu0 %v920, 20
    %v1050 = vpop.permute.xlu0 %1049
    %1051 = vrot.lane.b32.xlu0 %v921, 20
    %v1052 = vpop.permute.xlu0 %1051
    %1053 = vrot.lane.b32.xlu0 %v922, 20
    %v1054 = vpop.permute.xlu0 %1053
    %1055 = vrot.lane.b32.xlu0 %v923, 20
    %v1056 = vpop.permute.xlu0 %1055
    %1057 = vrot.lane.b32.xlu0 %v924, 20
    %v1058 = vpop.permute.xlu0 %1057
    %1059 = vrot.lane.b32.xlu0 %v925, 20
    %v1060 = vpop.permute.xlu0 %1059
    %1061 = vrot.lane.b32.xlu0 %v1030, 20
    %v1062 = vpop.permute.xlu0 %1061
    %v1063 = vunpack.c.l.b16 %v129
    %v1064 = vunpack.c.l.b16 %v130
    %v1065 = vpack.c.b16 %v1064, %v1063
    %1066 = vrot.lane.b32.xlu0 %v784, 24
    %v1067 = vpop.permute.xlu0 %1066
    %1068 = vrot.lane.b32.xlu0 %v785, 24
    %v1069 = vpop.permute.xlu0 %1068
    %1070 = vrot.lane.b32.xlu0 %v786, 24
    %v1071 = vpop.permute.xlu0 %1070
    %1072 = vrot.lane.b32.xlu0 %v787, 24
    %v1073 = vpop.permute.xlu0 %1072
    %1074 = vrot.lane.b32.xlu0 %v788, 24
    %v1075 = vpop.permute.xlu0 %1074
    %1076 = vrot.lane.b32.xlu0 %v789, 24
    %v1077 = vpop.permute.xlu0 %1076
    %1078 = vrot.lane.b32.xlu0 %v790, 24
    %v1079 = vpop.permute.xlu0 %1078
    %1080 = vrot.lane.b32.xlu0 %v791, 24
    %v1081 = vpop.permute.xlu0 %1080
    %1082 = vrot.lane.b32.xlu0 %v792, 24
    %v1083 = vpop.permute.xlu0 %1082
    %1084 = vrot.lane.b32.xlu0 %v793, 24
    %v1085 = vpop.permute.xlu0 %1084
    %1086 = vrot.lane.b32.xlu0 %v794, 24
    %v1087 = vpop.permute.xlu0 %1086
    %1088 = vrot.lane.b32.xlu0 %v795, 24
    %v1089 = vpop.permute.xlu0 %1088
    %1090 = vrot.lane.b32.xlu0 %v796, 24
    %v1091 = vpop.permute.xlu0 %1090
    %1092 = vrot.lane.b32.xlu0 %v797, 24
    %v1093 = vpop.permute.xlu0 %1092
    %1094 = vrot.lane.b32.xlu0 %v960, 24
    %v1095 = vpop.permute.xlu0 %1094
    %1096 = vrot.lane.b32.xlu0 %v1065, 24
    %v1097 = vpop.permute.xlu0 %1096
    %v1098 = vunpack.c.l.b16 %v729
    %v1099 = vunpack.c.l.b16 %v739
    %v1100 = vpack.c.b16 %v1099, %v1098
    %1101 = vrot.lane.b32.xlu0 %v832, 28
    %v1102 = vpop.permute.xlu0 %1101
    %1103 = vrot.lane.b32.xlu0 %v833, 28
    %v1104 = vpop.permute.xlu0 %1103
    %1105 = vrot.lane.b32.xlu0 %v834, 28
    %v1106 = vpop.permute.xlu0 %1105
    %1107 = vrot.lane.b32.xlu0 %v835, 28
    %v1108 = vpop.permute.xlu0 %1107
    %1109 = vrot.lane.b32.xlu0 %v836, 28
    %v1110 = vpop.permute.xlu0 %1109
    %1111 = vrot.lane.b32.xlu0 %v837, 28
    %v1112 = vpop.permute.xlu0 %1111
    %1113 = vrot.lane.b32.xlu0 %v838, 28
    %v1114 = vpop.permute.xlu0 %1113
    %1115 = vrot.lane.b32.xlu0 %v839, 28
    %v1116 = vpop.permute.xlu0 %1115
    %1117 = vrot.lane.b32.xlu0 %v840, 28
    %v1118 = vpop.permute.xlu0 %1117
    %1119 = vrot.lane.b32.xlu0 %v841, 28
    %v1120 = vpop.permute.xlu0 %1119
    %1121 = vrot.lane.b32.xlu0 %v842, 28
    %v1122 = vpop.permute.xlu0 %1121
    %1123 = vrot.lane.b32.xlu0 %v843, 28
    %v1124 = vpop.permute.xlu0 %1123
    %1125 = vrot.lane.b32.xlu0 %v844, 28
    %v1126 = vpop.permute.xlu0 %1125
    %1127 = vrot.lane.b32.xlu0 %v845, 28
    %v1128 = vpop.permute.xlu0 %1127
    %1129 = vrot.lane.b32.xlu0 %v995, 28
    %v1130 = vpop.permute.xlu0 %1129
    %1131 = vrot.lane.b32.xlu0 %v1100, 28
    %v1132 = vpop.permute.xlu0 %1131
    %v1133 = vunpack.c.l.b16 %v746
    %v1134 = vunpack.c.l.b16 %v749
    %v1135 = vpack.c.b16 %v1134, %v1133
    %1136 = vrot.lane.b32.xlu0 %v912, 32
    %v1137 = vpop.permute.xlu0 %1136
    %1138 = vrot.lane.b32.xlu0 %v913, 32
    %v1139 = vpop.permute.xlu0 %1138
    %1140 = vrot.lane.b32.xlu0 %v914, 32
    %v1141 = vpop.permute.xlu0 %1140
    %1142 = vrot.lane.b32.xlu0 %v915, 32
    %v1143 = vpop.permute.xlu0 %1142
    %1144 = vrot.lane.b32.xlu0 %v916, 32
    %v1145 = vpop.permute.xlu0 %1144
    %1146 = vrot.lane.b32.xlu0 %v917, 32
    %v1147 = vpop.permute.xlu0 %1146
    %1148 = vrot.lane.b32.xlu0 %v918, 32
    %v1149 = vpop.permute.xlu0 %1148
    %1150 = vrot.lane.b32.xlu0 %v919, 32
    %v1151 = vpop.permute.xlu0 %1150
    %1152 = vrot.lane.b32.xlu0 %v920, 32
    %v1153 = vpop.permute.xlu0 %1152
    %1154 = vrot.lane.b32.xlu0 %v921, 32
    %v1155 = vpop.permute.xlu0 %1154
    %1156 = vrot.lane.b32.xlu0 %v922, 32
    %v1157 = vpop.permute.xlu0 %1156
    %1158 = vrot.lane.b32.xlu0 %v923, 32
    %v1159 = vpop.permute.xlu0 %1158
    %1160 = vrot.lane.b32.xlu0 %v924, 32
    %v1161 = vpop.permute.xlu0 %1160
    %1162 = vrot.lane.b32.xlu0 %v925, 32
    %v1163 = vpop.permute.xlu0 %1162
    %1164 = vrot.lane.b32.xlu0 %v1030, 32
    %v1165 = vpop.permute.xlu0 %1164
    %1166 = vrot.lane.b32.xlu0 %v1135, 32
    %v1167 = vpop.permute.xlu0 %1166
    %vm1168 = vcmask 31744
    %v1171 = vsel %vm1168, %v782, %v847
    %v1174 = vsel %vm1168, %v783, %v849
    %v1177 = vsel %vm1168, %v784, %v851
    %v1180 = vsel %vm1168, %v785, %v853
    %v1183 = vsel %vm1168, %v786, %v855
    %v1186 = vsel %vm1168, %v787, %v857
    %v1189 = vsel %vm1168, %v788, %v859
    %v1192 = vsel %vm1168, %v789, %v861
    %v1195 = vsel %vm1168, %v790, %v863
    %v1198 = vsel %vm1168, %v791, %v865
    %v1201 = vsel %vm1168, %v792, %v867
    %v1204 = vsel %vm1168, %v793, %v869
    %v1207 = vsel %vm1168, %v794, %v871
    %v1210 = vsel %vm1168, %v795, %v873
    %v1213 = vsel %vm1168, %v796, %v875
    %v1216 = vsel %vm1168, %v797, %v877
    %vm1217 = vcmask 64512
    %v1219 = vsel %vm1217, %v1171, %v927
    %v1221 = vsel %vm1217, %v1174, %v929
    %v1223 = vsel %vm1217, %v1177, %v931
    %v1225 = vsel %vm1217, %v1180, %v933
    %v1227 = vsel %vm1217, %v1183, %v935
    %v1229 = vsel %vm1217, %v1186, %v937
    %v1231 = vsel %vm1217, %v1189, %v939
    %v1233 = vsel %vm1217, %v1192, %v941
    %v1235 = vsel %vm1217, %v1195, %v943
    %v1237 = vsel %vm1217, %v1198, %v945
    %v1239 = vsel %vm1217, %v1201, %v947
    %v1241 = vsel %vm1217, %v1204, %v949
    %v1243 = vsel %vm1217, %v1207, %v951
    %v1245 = vsel %vm1217, %v1210, %v953
    %v1247 = vsel %vm1217, %v1213, %v955
    %v1249 = vsel %vm1217, %v1216, %v957
    %vm1250 = vcmask 97280
    %v1252 = vsel %vm1250, %v1219, %v962
    %v1254 = vsel %vm1250, %v1221, %v964
    %v1256 = vsel %vm1250, %v1223, %v966
    %v1258 = vsel %vm1250, %v1225, %v968
    %v1260 = vsel %vm1250, %v1227, %v970
    %v1262 = vsel %vm1250, %v1229, %v972
    %v1264 = vsel %vm1250, %v1231, %v974
    %v1266 = vsel %vm1250, %v1233, %v976
    %v1268 = vsel %vm1250, %v1235, %v978
    %v1270 = vsel %vm1250, %v1237, %v980
    %v1272 = vsel %vm1250, %v1239, %v982
    %v1274 = vsel %vm1250, %v1241, %v984
    %v1276 = vsel %vm1250, %v1243, %v986
    %v1278 = vsel %vm1250, %v1245, %v988
    %v1280 = vsel %vm1250, %v1247, %v990
    %v1282 = vsel %vm1250, %v1249, %v992
    %vm1283 = vcmask 130048
    %v1285 = vsel %vm1283, %v1252, %v997
    %v1287 = vsel %vm1283, %v1254, %v999
    %v1289 = vsel %vm1283, %v1256, %v1001
    %v1291 = vsel %vm1283, %v1258, %v1003
    %v1293 = vsel %vm1283, %v1260, %v1005
    %v1295 = vsel %vm1283, %v1262, %v1007
    %v1297 = vsel %vm1283, %v1264, %v1009
    %v1299 = vsel %vm1283, %v1266, %v1011
    %v1301 = vsel %vm1283, %v1268, %v1013
    %v1303 = vsel %vm1283, %v1270, %v1015
    %v1305 = vsel %vm1283, %v1272, %v1017
    %v1307 = vsel %vm1283, %v1274, %v1019
    %v1309 = vsel %vm1283, %v1276, %v1021
    %v1311 = vsel %vm1283, %v1278, %v1023
    %v1313 = vsel %vm1283, %v1280, %v1025
    %v1315 = vsel %vm1283, %v1282, %v1027
    %vm1316 = vcmask 162816
    %v1318 = vsel %vm1316, %v1285, %v1032
    %v1320 = vsel %vm1316, %v1287, %v1034
    %v1322 = vsel %vm1316, %v1289, %v1036
    %v1324 = vsel %vm1316, %v1291, %v1038
    %v1326 = vsel %vm1316, %v1293, %v1040
    %v1328 = vsel %vm1316, %v1295, %v1042
    %v1330 = vsel %vm1316, %v1297, %v1044
    %v1332 = vsel %vm1316, %v1299, %v1046
    %v1334 = vsel %vm1316, %v1301, %v1048
    %v1336 = vsel %vm1316, %v1303, %v1050
    %v1338 = vsel %vm1316, %v1305, %v1052
    %v1340 = vsel %vm1316, %v1307, %v1054
    %v1342 = vsel %vm1316, %v1309, %v1056
    %v1344 = vsel %vm1316, %v1311, %v1058
    %v1346 = vsel %vm1316, %v1313, %v1060
    %v1348 = vsel %vm1316, %v1315, %v1062
    %vm1349 = vcmask 195584
    %v1351 = vsel %vm1349, %v1318, %v1067
    %v1353 = vsel %vm1349, %v1320, %v1069
    %v1355 = vsel %vm1349, %v1322, %v1071
    %v1357 = vsel %vm1349, %v1324, %v1073
    %v1359 = vsel %vm1349, %v1326, %v1075
    %v1361 = vsel %vm1349, %v1328, %v1077
    %v1363 = vsel %vm1349, %v1330, %v1079
    %v1365 = vsel %vm1349, %v1332, %v1081
    %v1367 = vsel %vm1349, %v1334, %v1083
    %v1369 = vsel %vm1349, %v1336, %v1085
    %v1371 = vsel %vm1349, %v1338, %v1087
    %v1373 = vsel %vm1349, %v1340, %v1089
    %v1375 = vsel %vm1349, %v1342, %v1091
    %v1377 = vsel %vm1349, %v1344, %v1093
    %v1379 = vsel %vm1349, %v1346, %v1095
    %v1381 = vsel %vm1349, %v1348, %v1097
    %vm1382 = vcmask 228352
    %v1384 = vsel %vm1382, %v1351, %v1102
    %v1386 = vsel %vm1382, %v1353, %v1104
    %v1388 = vsel %vm1382, %v1355, %v1106
    %v1390 = vsel %vm1382, %v1357, %v1108
    %v1392 = vsel %vm1382, %v1359, %v1110
    %v1394 = vsel %vm1382, %v1361, %v1112
    %v1396 = vsel %vm1382, %v1363, %v1114
    %v1398 = vsel %vm1382, %v1365, %v1116
    %v1400 = vsel %vm1382, %v1367, %v1118
    %v1402 = vsel %vm1382, %v1369, %v1120
    %v1404 = vsel %vm1382, %v1371, %v1122
    %v1406 = vsel %vm1382, %v1373, %v1124
    %v1408 = vsel %vm1382, %v1375, %v1126
    %v1410 = vsel %vm1382, %v1377, %v1128
    %v1412 = vsel %vm1382, %v1379, %v1130
    %v1414 = vsel %vm1382, %v1381, %v1132
    %vm1415 = vcmask 261120
    %v1417 = vsel %vm1415, %v1384, %v1137
    %v1419 = vsel %vm1415, %v1386, %v1139
    %v1421 = vsel %vm1415, %v1388, %v1141
    %v1423 = vsel %vm1415, %v1390, %v1143
    %v1425 = vsel %vm1415, %v1392, %v1145
    %v1427 = vsel %vm1415, %v1394, %v1147
    %v1429 = vsel %vm1415, %v1396, %v1149
    %v1431 = vsel %vm1415, %v1398, %v1151
    %v1433 = vsel %vm1415, %v1400, %v1153
    %v1435 = vsel %vm1415, %v1402, %v1155
    %v1437 = vsel %vm1415, %v1404, %v1157
    %v1439 = vsel %vm1415, %v1406, %v1159
    %v1441 = vsel %vm1415, %v1408, %v1161
    %v1443 = vsel %vm1415, %v1410, %v1163
    %v1445 = vsel %vm1415, %v1412, %v1165
    %v1447 = vsel %vm1415, %v1414, %v1167
    %v1448 = vld [vmem:[%s1] sm:$0xf]
    %v1449 = vld [vmem:[%s1 + $0x4] sm:$0xf]
    %v1450 = vld [vmem:[%s1 + $0x8] sm:$0xf]
    %v1451 = vld [vmem:[%s1 + $0xc] sm:$0xf]
    %v1452 = vld [vmem:[%s1 + $0x10] sm:$0x3]
    %v1453 = vld [vmem:[%s2] sm:$0x1]
    %v1455 = vlaneseq
    %v1456 = vshrl.u32 %v1455, 7
    %v1457 = vsub.s32 0, %v1456
    %v1458 = vrot.slane %v1453, %v1457
    %v1465 = vunpack.c.l.b16 %v1448
    %v1466 = vunpack.c.l.b16 %v1449
    %v1467 = vunpack.c.l.b16 %v1450
    %v1468 = vunpack.c.l.b16 %v1451
    %v1469 = vunpack.c.l.b16 %v1452
    %v1470 = vpack.c.b16 %v1466, %v1465
    %v1471 = vpack.c.b16 %v1468, %v1467
    %v1472 = vpack.c.b16 %v1469, %v1469
    %vm1475 = vcmask 293888
    %v1476 = vsel %vm1475, %v1417, 0
    %v1478 = vsel %vm1475, %v1419, 0
    %v1480 = vsel %vm1475, %v1421, 0
    %v1482 = vsel %vm1475, %v1423, 0
    %v1484 = vsel %vm1475, %v1425, 0
    %v1486 = vsel %vm1475, %v1427, 0
    %v1488 = vsel %vm1475, %v1429, 0
    %v1490 = vsel %vm1475, %v1431, 0
    %v1492 = vsel %vm1475, %v1433, 0
    %v1494 = vsel %vm1475, %v1435, 0
    %v1496 = vsel %vm1475, %v1437, 0
    %v1498 = vsel %vm1475, %v1439, 0
    %v1500 = vsel %vm1475, %v1441, 0
    %v1502 = vsel %vm1475, %v1443, 0
    %v1504 = vsel %vm1475, %v1445, 0
    %v1506 = vsel %vm1475, %v1447, 0
    %vm1508 = vcmask 1041408
    %v1510 = vsel %vm1508, %v1472, 0
    %1512 = vmatprep.subr.bf16.mxu0 0
    %1513 = vmatpush1.bf16.msra.mxu0 0
    %1514 = vmatprep.subr.bf16.mxu0 0
    %1515 = vmatpush1.bf16.msra.mxu0 0
    %1516 = vmatprep.subr.bf16.mxu0 0
    %1517 = vmatpush1.bf16.msra.mxu0 0
    %1518 = vmatprep.subr.bf16.mxu0 0
    %1519 = vmatpush1.bf16.msra.mxu0 0
    %1520 = vmatprep.subr.bf16.mxu0 0
    %1521 = vmatpush1.bf16.msra.mxu0 0
    %1522 = vmatprep.subr.bf16.mxu0 0
    %1523 = vmatpush1.bf16.msra.mxu0 %v1510
    %1524 = vmatprep.subr.bf16.mxu0 0
    %1525 = vmatpush1.bf16.msra.mxu0 %v1471
    %1526 = vmatprep.subr.bf16.mxu0 0
    %1527 = vmatpush1.bf16.msra.mxu0 %v1470
    %1528 = vmatprep.subr.bf16.mxu0 0
    %1529 = vmatpush2.bf16.msra.mxu0 0
    %1530 = vmatprep.subr.bf16.mxu0 0
    %1531 = vmatpush2.bf16.msra.mxu0 0
    %1532 = vmatprep.subr.bf16.mxu0 0
    %1533 = vmatpush2.bf16.msra.mxu0 0
    %1534 = vmatprep.subr.bf16.mxu0 0
    %1535 = vmatpush2.bf16.msra.mxu0 0
    %1536 = vmatprep.subr.bf16.mxu0 0
    %1537 = vmatpush2.bf16.msra.mxu0 0
    %1538 = vmatprep.subr.bf16.mxu0 0
    %1539 = vmatpush2.bf16.msra.mxu0 0
    %1540 = vmatprep.subr.bf16.mxu0 0
    %1541 = vmatpush2.bf16.msra.mxu0 0
    %1542 = vmatprep.subr.bf16.mxu0 0
    %1543 = vmatpush2.bf16.msra.mxu0 0
    %1544 = vmatprep.mubr.bf16.mxu0 0
    %1545 = vmatmul.mubr.bf16.gmra.mxu0 %v1476
    %v1546 = vpop.f32.mrf.mxu0
    %v1547 = vadd.f32 %v1458, %v1546
    %v1548 = vpop.f32.mrf.mxu0
    %v1549 = vpop.f32.mrf.mxu0
    %v1550 = vadd.f32 %v1458, %v1549
    %v1551 = vpop.f32.mrf.mxu0
    %1552 = vmatprep.mubr.bf16.mxu0 0
    %1553 = vmatmul.mubr.bf16.gmra.mxu0 %v1478
    %v1554 = vpop.f32.mrf.mxu0
    %v1555 = vadd.f32 %v1458, %v1554
    %v1556 = vpop.f32.mrf.mxu0
    %v1557 = vpop.f32.mrf.mxu0
    %v1558 = vadd.f32 %v1458, %v1557
    %v1559 = vpop.f32.mrf.mxu0
    %1560 = vmatprep.mubr.bf16.mxu0 0
    %1561 = vmatmul.mubr.bf16.gmra.mxu0 %v1480
    %v1562 = vpop.f32.mrf.mxu0
    %v1563 = vadd.f32 %v1458, %v1562
    %v1564 = vpop.f32.mrf.mxu0
    %v1565 = vpop.f32.mrf.mxu0
    %v1566 = vadd.f32 %v1458, %v1565
    %v1567 = vpop.f32.mrf.mxu0
    %1568 = vmatprep.mubr.bf16.mxu0 0
    %1569 = vmatmul.mubr.bf16.gmra.mxu0 %v1482
    %v1570 = vpop.f32.mrf.mxu0
    %v1571 = vadd.f32 %v1458, %v1570
    %v1572 = vpop.f32.mrf.mxu0
    %v1573 = vpop.f32.mrf.mxu0
    %v1574 = vadd.f32 %v1458, %v1573
    %v1575 = vpop.f32.mrf.mxu0
    %1576 = vmatprep.mubr.bf16.mxu0 0
    %1577 = vmatmul.mubr.bf16.gmra.mxu0 %v1484
    %v1578 = vpop.f32.mrf.mxu0
    %v1579 = vadd.f32 %v1458, %v1578
    %v1580 = vpop.f32.mrf.mxu0
    %v1581 = vpop.f32.mrf.mxu0
    %v1582 = vadd.f32 %v1458, %v1581
    %v1583 = vpop.f32.mrf.mxu0
    %1584 = vmatprep.mubr.bf16.mxu0 0
    %1585 = vmatmul.mubr.bf16.gmra.mxu0 %v1486
    %v1586 = vpop.f32.mrf.mxu0
    %v1587 = vadd.f32 %v1458, %v1586
    %v1588 = vpop.f32.mrf.mxu0
    %v1589 = vpop.f32.mrf.mxu0
    %v1590 = vadd.f32 %v1458, %v1589
    %v1591 = vpop.f32.mrf.mxu0
    %1592 = vmatprep.mubr.bf16.mxu0 0
    %1593 = vmatmul.mubr.bf16.gmra.mxu0 %v1488
    %v1594 = vpop.f32.mrf.mxu0
    %v1595 = vadd.f32 %v1458, %v1594
    %v1596 = vpop.f32.mrf.mxu0
    %v1597 = vpop.f32.mrf.mxu0
    %v1598 = vadd.f32 %v1458, %v1597
    %v1599 = vpop.f32.mrf.mxu0
    %1600 = vmatprep.mubr.bf16.mxu0 0
    %1601 = vmatmul.mubr.bf16.gmra.mxu0 %v1490
    %v1602 = vpop.f32.mrf.mxu0
    %v1603 = vadd.f32 %v1458, %v1602
    %v1604 = vpop.f32.mrf.mxu0
    %v1605 = vpop.f32.mrf.mxu0
    %v1606 = vadd.f32 %v1458, %v1605
    %v1607 = vpop.f32.mrf.mxu0
    %1608 = vmatprep.mubr.bf16.mxu0 0
    %1609 = vmatmul.mubr.bf16.gmra.mxu0 %v1492
    %v1610 = vpop.f32.mrf.mxu0
    %v1611 = vadd.f32 %v1458, %v1610
    %v1612 = vpop.f32.mrf.mxu0
    %v1613 = vpop.f32.mrf.mxu0
    %v1614 = vadd.f32 %v1458, %v1613
    %v1615 = vpop.f32.mrf.mxu0
    %1616 = vmatprep.mubr.bf16.mxu0 0
    %1617 = vmatmul.mubr.bf16.gmra.mxu0 %v1494
    %v1618 = vpop.f32.mrf.mxu0
    %v1619 = vadd.f32 %v1458, %v1618
    %v1620 = vpop.f32.mrf.mxu0
    %v1621 = vpop.f32.mrf.mxu0
    %v1622 = vadd.f32 %v1458, %v1621
    %v1623 = vpop.f32.mrf.mxu0
    %1624 = vmatprep.mubr.bf16.mxu0 0
    %1625 = vmatmul.mubr.bf16.gmra.mxu0 %v1496
    %v1626 = vpop.f32.mrf.mxu0
    %v1627 = vadd.f32 %v1458, %v1626
    %v1628 = vpop.f32.mrf.mxu0
    %v1629 = vpop.f32.mrf.mxu0
    %v1630 = vadd.f32 %v1458, %v1629
    %v1631 = vpop.f32.mrf.mxu0
    %1632 = vmatprep.mubr.bf16.mxu0 0
    %1633 = vmatmul.mubr.bf16.gmra.mxu0 %v1498
    %v1634 = vpop.f32.mrf.mxu0
    %v1635 = vadd.f32 %v1458, %v1634
    %v1636 = vpop.f32.mrf.mxu0
    %v1637 = vpop.f32.mrf.mxu0
    %v1638 = vadd.f32 %v1458, %v1637
    %v1639 = vpop.f32.mrf.mxu0
    %1640 = vmatprep.mubr.bf16.mxu0 0
    %1641 = vmatmul.mubr.bf16.gmra.mxu0 %v1500
    %v1642 = vpop.f32.mrf.mxu0
    %v1643 = vadd.f32 %v1458, %v1642
    %v1644 = vpop.f32.mrf.mxu0
    %v1645 = vpop.f32.mrf.mxu0
    %v1646 = vadd.f32 %v1458, %v1645
    %v1647 = vpop.f32.mrf.mxu0
    %1648 = vmatprep.mubr.bf16.mxu0 0
    %1649 = vmatmul.mubr.bf16.gmra.mxu0 %v1502
    %v1650 = vpop.f32.mrf.mxu0
    %v1651 = vadd.f32 %v1458, %v1650
    %v1652 = vpop.f32.mrf.mxu0
    %v1653 = vpop.f32.mrf.mxu0
    %v1654 = vadd.f32 %v1458, %v1653
    %v1655 = vpop.f32.mrf.mxu0
    %1656 = vmatprep.mubr.bf16.mxu0 0
    %1657 = vmatmul.mubr.bf16.gmra.mxu0 %v1504
    %v1658 = vpop.f32.mrf.mxu0
    %v1659 = vadd.f32 %v1458, %v1658
    %v1660 = vpop.f32.mrf.mxu0
    %v1661 = vpop.f32.mrf.mxu0
    %v1662 = vadd.f32 %v1458, %v1661
    %v1663 = vpop.f32.mrf.mxu0
    %1664 = vmatprep.mubr.bf16.mxu0 0
    %1665 = vmatmul.mubr.bf16.gmra.mxu0 %v1506
    %v1666 = vpop.f32.mrf.mxu0
    %v1667 = vadd.f32 %v1458, %v1666
    %v1668 = vpop.f32.mrf.mxu0
    %v1669 = vpop.f32.mrf.mxu0
    %v1670 = vadd.f32 %v1458, %v1669
    %v1671 = vpop.f32.mrf.mxu0
    %1672 = vdwg.mxu0
    %v1673 = vmax.f32 %v1547, 0.0
    %v1674 = vmax.f32 %v1550, 0.0
    %v1675 = vmax.f32 %v1555, 0.0
    %v1676 = vmax.f32 %v1558, 0.0
    %v1677 = vmax.f32 %v1563, 0.0
    %v1678 = vmax.f32 %v1566, 0.0
    %v1679 = vmax.f32 %v1571, 0.0
    %v1680 = vmax.f32 %v1574, 0.0
    %v1681 = vmax.f32 %v1579, 0.0
    %v1682 = vmax.f32 %v1582, 0.0
    %v1683 = vmax.f32 %v1587, 0.0
    %v1684 = vmax.f32 %v1590, 0.0
    %v1685 = vmax.f32 %v1595, 0.0
    %v1686 = vmax.f32 %v1598, 0.0
    %v1687 = vmax.f32 %v1603, 0.0
    %v1688 = vmax.f32 %v1606, 0.0
    %v1689 = vmax.f32 %v1611, 0.0
    %v1690 = vmax.f32 %v1614, 0.0
    %v1691 = vmax.f32 %v1619, 0.0
    %v1692 = vmax.f32 %v1622, 0.0
    %v1693 = vmax.f32 %v1627, 0.0
    %v1694 = vmax.f32 %v1630, 0.0
    %v1695 = vmax.f32 %v1635, 0.0
    %v1696 = vmax.f32 %v1638, 0.0
    %v1697 = vmax.f32 %v1643, 0.0
    %v1698 = vmax.f32 %v1646, 0.0
    %v1699 = vmax.f32 %v1651, 0.0
    %v1700 = vmax.f32 %v1654, 0.0
    %v1701 = vmax.f32 %v1659, 0.0
    %v1702 = vmax.f32 %v1662, 0.0
    %v1703 = vmax.f32 %v1667, 0.0
    %v1704 = vmax.f32 %v1670, 0.0
    %v1705 = vpack.c.bf16 %v1674, %v1673
    %v1706 = vpack.c.bf16 %v1676, %v1675
    %v1707 = vpack.c.bf16 %v1678, %v1677
    %v1708 = vpack.c.bf16 %v1680, %v1679
    %v1709 = vpack.c.bf16 %v1682, %v1681
    %v1710 = vpack.c.bf16 %v1684, %v1683
    %v1711 = vpack.c.bf16 %v1686, %v1685
    %v1712 = vpack.c.bf16 %v1688, %v1687
    %v1713 = vpack.c.bf16 %v1690, %v1689
    %v1714 = vpack.c.bf16 %v1692, %v1691
    %v1715 = vpack.c.bf16 %v1694, %v1693
    %v1716 = vpack.c.bf16 %v1696, %v1695
    %v1717 = vpack.c.bf16 %v1698, %v1697
    %v1718 = vpack.c.bf16 %v1700, %v1699
    %v1719 = vpack.c.bf16 %v1702, %v1701
    %v1720 = vpack.c.bf16 %v1704, %v1703
    %v1737 = vunpack.c.l.b16 %v1705
    %v1738 = vunpack.c.h.b16 %v1705
    %v1739 = vunpack.c.l.b16 %v1706
    %v1740 = vunpack.c.h.b16 %v1706
    %v1741 = vunpack.c.l.b16 %v1707
    %v1742 = vunpack.c.h.b16 %v1707
    %v1743 = vunpack.c.l.b16 %v1708
    %v1744 = vunpack.c.h.b16 %v1708
    %v1745 = vunpack.c.l.b16 %v1709
    %v1746 = vunpack.c.h.b16 %v1709
    %v1747 = vunpack.c.l.b16 %v1710
    %v1748 = vunpack.c.h.b16 %v1710
    %v1749 = vunpack.c.l.b16 %v1711
    %v1750 = vunpack.c.h.b16 %v1711
    %v1751 = vunpack.c.l.b16 %v1712
    %v1752 = vunpack.c.h.b16 %v1712
    %v1753 = vunpack.c.l.b16 %v1713
    %v1754 = vunpack.c.h.b16 %v1713
    %v1755 = vunpack.c.l.b16 %v1714
    %v1756 = vunpack.c.h.b16 %v1714
    %v1757 = vunpack.c.l.b16 %v1715
    %v1758 = vunpack.c.h.b16 %v1715
    %v1759 = vunpack.c.l.b16 %v1716
    %v1760 = vunpack.c.h.b16 %v1716
    %v1761 = vunpack.c.l.b16 %v1717
    %v1762 = vunpack.c.h.b16 %v1717
    %v1763 = vunpack.c.l.b16 %v1718
    %v1764 = vunpack.c.h.b16 %v1718
    %v1765 = vunpack.c.l.b16 %v1719
    %v1766 = vunpack.c.h.b16 %v1719
    %v1767 = vunpack.c.l.b16 %v1720
    %v1768 = vunpack.c.h.b16 %v1720
    %v1769 = vpack.c.b16 %v1737, %v1737
    %v1770 = vpack.c.b16 %v1738, %v1738
    %v1771 = vpack.c.b16 %v1739, %v1739
    %v1772 = vpack.c.b16 %v1740, %v1740
    %v1773 = vpack.c.b16 %v1741, %v1741
    %v1774 = vpack.c.b16 %v1742, %v1742
    %v1775 = vpack.c.b16 %v1743, %v1743
    %v1776 = vpack.c.b16 %v1744, %v1744
    %v1777 = vpack.c.b16 %v1745, %v1745
    %v1778 = vpack.c.b16 %v1746, %v1746
    %v1779 = vpack.c.b16 %v1747, %v1747
    %v1780 = vpack.c.b16 %v1748, %v1748
    %v1781 = vpack.c.b16 %v1749, %v1749
    %v1782 = vpack.c.b16 %v1750, %v1750
    %v1783 = vpack.c.b16 %v1751, %v1751
    %v1784 = vpack.c.b16 %v1752, %v1752
    %v1785 = vpack.c.b16 %v1753, %v1753
    %v1786 = vpack.c.b16 %v1754, %v1754
    %v1787 = vpack.c.b16 %v1755, %v1755
    %v1788 = vpack.c.b16 %v1756, %v1756
    %v1789 = vpack.c.b16 %v1757, %v1757
    %v1790 = vpack.c.b16 %v1758, %v1758
    %v1791 = vpack.c.b16 %v1759, %v1759
    %v1792 = vpack.c.b16 %v1760, %v1760
    %v1793 = vpack.c.b16 %v1761, %v1761
    %v1794 = vpack.c.b16 %v1762, %v1762
    %v1795 = vpack.c.b16 %v1763, %v1763
    %v1796 = vpack.c.b16 %v1764, %v1764
    %v1797 = vpack.c.b16 %v1765, %v1765
    %v1798 = vpack.c.b16 %v1766, %v1766
    %v1799 = vpack.c.b16 %v1767, %v1767
    %v1800 = vpack.c.b16 %v1768, %v1768
    %vm1801 = vsmask.f32 256
    %vm1802 = vsmask.f32 4368
    %vm1803 = vmor %vm1801, %vm1802
    %v1805 = vshrl.u32 %v1769, 16
    %v1807 = vrot.slane %v1805, 7
    %v1808 = vshll.u32 %v1769, 16
    %v1810 = vor.u32 %v1807, %v1808
    %v1811 = vrot.slane %v1807, 4
    %v1813 = vshrl.u32 %v1770, 16
    %v1815 = vrot.slane %v1813, 7
    %v1816 = vshll.u32 %v1770, 16
    %v1818 = vor.u32 %v1815, %v1816
    %v1819 = vsel %vm1803, %v1811, %v1818
    %v1820 = vrot.slane %v1815, 4
    %v1822 = vshrl.u32 %v1771, 16
    %v1824 = vrot.slane %v1822, 7
    %v1825 = vshll.u32 %v1771, 16
    %v1827 = vor.u32 %v1824, %v1825
    %v1828 = vrot.slane %v1824, 4
    %v1830 = vshrl.u32 %v1772, 16
    %v1832 = vrot.slane %v1830, 7
    %v1833 = vshll.u32 %v1772, 16
    %v1835 = vor.u32 %v1832, %v1833
    %v1836 = vsel %vm1803, %v1828, %v1835
    %v1837 = vrot.slane %v1832, 4
    %v1839 = vshrl.u32 %v1773, 16
    %v1841 = vrot.slane %v1839, 7
    %v1842 = vshll.u32 %v1773, 16
    %v1844 = vor.u32 %v1841, %v1842
    %v1845 = vrot.slane %v1841, 4
    %v1847 = vshrl.u32 %v1774, 16
    %v1849 = vrot.slane %v1847, 7
    %v1850 = vshll.u32 %v1774, 16
    %v1852 = vor.u32 %v1849, %v1850
    %v1853 = vsel %vm1803, %v1845, %v1852
    %v1854 = vrot.slane %v1849, 4
    %v1856 = vshrl.u32 %v1775, 16
    %v1858 = vrot.slane %v1856, 7
    %v1859 = vshll.u32 %v1775, 16
    %v1861 = vor.u32 %v1858, %v1859
    %v1862 = vrot.slane %v1858, 4
    %v1864 = vshrl.u32 %v1776, 16
    %v1866 = vrot.slane %v1864, 7
    %v1867 = vshll.u32 %v1776, 16
    %v1869 = vor.u32 %v1866, %v1867
    %v1870 = vsel %vm1803, %v1862, %v1869
    %v1871 = vrot.slane %v1866, 4
    %v1873 = vshrl.u32 %v1777, 16
    %v1875 = vrot.slane %v1873, 7
    %v1876 = vshll.u32 %v1777, 16
    %v1878 = vor.u32 %v1875, %v1876
    %v1879 = vrot.slane %v1875, 4
    %v1881 = vshrl.u32 %v1778, 16
    %v1883 = vrot.slane %v1881, 7
    %v1884 = vshll.u32 %v1778, 16
    %v1886 = vor.u32 %v1883, %v1884
    %v1887 = vsel %vm1803, %v1879, %v1886
    %v1888 = vrot.slane %v1883, 4
    %v1890 = vshrl.u32 %v1779, 16
    %v1892 = vrot.slane %v1890, 7
    %v1893 = vshll.u32 %v1779, 16
    %v1895 = vor.u32 %v1892, %v1893
    %v1896 = vrot.slane %v1892, 4
    %v1898 = vshrl.u32 %v1780, 16
    %v1900 = vrot.slane %v1898, 7
    %v1901 = vshll.u32 %v1780, 16
    %v1903 = vor.u32 %v1900, %v1901
    %v1904 = vsel %vm1803, %v1896, %v1903
    %v1905 = vrot.slane %v1900, 4
    %v1907 = vshrl.u32 %v1781, 16
    %v1909 = vrot.slane %v1907, 7
    %v1910 = vshll.u32 %v1781, 16
    %v1912 = vor.u32 %v1909, %v1910
    %v1913 = vrot.slane %v1909, 4
    %v1915 = vshrl.u32 %v1782, 16
    %v1917 = vrot.slane %v1915, 7
    %v1918 = vshll.u32 %v1782, 16
    %v1920 = vor.u32 %v1917, %v1918
    %v1921 = vsel %vm1803, %v1913, %v1920
    %v1922 = vrot.slane %v1917, 4
    %v1924 = vshrl.u32 %v1783, 16
    %v1926 = vrot.slane %v1924, 7
    %v1927 = vshll.u32 %v1783, 16
    %v1929 = vor.u32 %v1926, %v1927
    %v1930 = vrot.slane %v1926, 4
    %v1932 = vshrl.u32 %v1784, 16
    %v1934 = vrot.slane %v1932, 7
    %v1935 = vshll.u32 %v1784, 16
    %v1937 = vor.u32 %v1934, %v1935
    %v1938 = vsel %vm1803, %v1930, %v1937
    %v1939 = vrot.slane %v1934, 4
    %v1941 = vshrl.u32 %v1785, 16
    %v1943 = vrot.slane %v1941, 7
    %v1944 = vshll.u32 %v1785, 16
    %v1946 = vor.u32 %v1943, %v1944
    %v1947 = vrot.slane %v1943, 4
    %v1949 = vshrl.u32 %v1786, 16
    %v1951 = vrot.slane %v1949, 7
    %v1952 = vshll.u32 %v1786, 16
    %v1954 = vor.u32 %v1951, %v1952
    %v1955 = vsel %vm1803, %v1947, %v1954
    %v1956 = vrot.slane %v1951, 4
    %v1958 = vshrl.u32 %v1787, 16
    %v1960 = vrot.slane %v1958, 7
    %v1961 = vshll.u32 %v1787, 16
    %v1963 = vor.u32 %v1960, %v1961
    %v1964 = vrot.slane %v1960, 4
    %v1966 = vshrl.u32 %v1788, 16
    %v1968 = vrot.slane %v1966, 7
    %v1969 = vshll.u32 %v1788, 16
    %v1971 = vor.u32 %v1968, %v1969
    %v1972 = vsel %vm1803, %v1964, %v1971
    %v1973 = vrot.slane %v1968, 4
    %v1975 = vshrl.u32 %v1789, 16
    %v1977 = vrot.slane %v1975, 7
    %v1978 = vshll.u32 %v1789, 16
    %v1980 = vor.u32 %v1977, %v1978
    %v1981 = vrot.slane %v1977, 4
    %v1983 = vshrl.u32 %v1790, 16
    %v1985 = vrot.slane %v1983, 7
    %v1986 = vshll.u32 %v1790, 16
    %v1988 = vor.u32 %v1985, %v1986
    %v1989 = vsel %vm1803, %v1981, %v1988
    %v1990 = vrot.slane %v1985, 4
    %v1992 = vshrl.u32 %v1791, 16
    %v1994 = vrot.slane %v1992, 7
    %v1995 = vshll.u32 %v1791, 16
    %v1997 = vor.u32 %v1994, %v1995
    %v1998 = vrot.slane %v1994, 4
    %v2000 = vshrl.u32 %v1792, 16
    %v2002 = vrot.slane %v2000, 7
    %v2003 = vshll.u32 %v1792, 16
    %v2005 = vor.u32 %v2002, %v2003
    %v2006 = vsel %vm1803, %v1998, %v2005
    %v2007 = vrot.slane %v2002, 4
    %v2009 = vshrl.u32 %v1793, 16
    %v2011 = vrot.slane %v2009, 7
    %v2012 = vshll.u32 %v1793, 16
    %v2014 = vor.u32 %v2011, %v2012
    %v2015 = vrot.slane %v2011, 4
    %v2017 = vshrl.u32 %v1794, 16
    %v2019 = vrot.slane %v2017, 7
    %v2020 = vshll.u32 %v1794, 16
    %v2022 = vor.u32 %v2019, %v2020
    %v2023 = vsel %vm1803, %v2015, %v2022
    %v2024 = vrot.slane %v2019, 4
    %v2026 = vshrl.u32 %v1795, 16
    %v2028 = vrot.slane %v2026, 7
    %v2029 = vshll.u32 %v1795, 16
    %v2031 = vor.u32 %v2028, %v2029
    %v2032 = vrot.slane %v2028, 4
    %v2034 = vshrl.u32 %v1796, 16
    %v2036 = vrot.slane %v2034, 7
    %v2037 = vshll.u32 %v1796, 16
    %v2039 = vor.u32 %v2036, %v2037
    %v2040 = vsel %vm1803, %v2032, %v2039
    %v2041 = vrot.slane %v2036, 4
    %v2043 = vshrl.u32 %v1797, 16
    %v2045 = vrot.slane %v2043, 7
    %v2046 = vshll.u32 %v1797, 16
    %v2048 = vor.u32 %v2045, %v2046
    %v2049 = vrot.slane %v2045, 4
    %v2051 = vshrl.u32 %v1798, 16
    %v2053 = vrot.slane %v2051, 7
    %v2054 = vshll.u32 %v1798, 16
    %v2056 = vor.u32 %v2053, %v2054
    %v2057 = vsel %vm1803, %v2049, %v2056
    %v2058 = vrot.slane %v2053, 4
    %v2060 = vshrl.u32 %v1799, 16
    %v2062 = vrot.slane %v2060, 7
    %v2063 = vshll.u32 %v1799, 16
    %v2065 = vor.u32 %v2062, %v2063
    %v2066 = vrot.slane %v2062, 4
    %v2068 = vshrl.u32 %v1800, 16
    %v2070 = vrot.slane %v2068, 7
    %v2071 = vshll.u32 %v1800, 16
    %v2073 = vor.u32 %v2070, %v2071
    %v2074 = vsel %vm1803, %v2066, %v2073
    %v2075 = vrot.slane %v2070, 4
    %s2124 = scalar_lea.vmem [#allocation2], 12
    %vm2125 = vcmask 125952
    %vm2126 = vsmask.f32 7938
    %vm2127 = vmand %vm2125, %vm2126
    %v2128 = vld [vmem:[%s2124] sm:$0xf]
    %v2129 = vsel %vm2127, %v1810, %v2128
    %2130 = vst [vmem:[%s2124] sm:$0xf] %v2129
    %2131 = vst.msk [vmem:[%s2124 + $0x4] sm:$0xf] %vm22, %v1819
    %vm2132 = vcmask 122880
    %vm2133 = vmand %vm2132, %vm1801
    %v2134 = vld [vmem:[%s2124 + $0x8] sm:$0x1]
    %v2135 = vsel %vm2133, %v1820, %v2134
    %2136 = vst [vmem:[%s2124 + $0x8] sm:$0x1] %v2135
    %v2137 = vld [vmem:[%s2124 + $0xc] sm:$0xf]
    %v2138 = vsel %vm2127, %v1827, %v2137
    %2139 = vst [vmem:[%s2124 + $0xc] sm:$0xf] %v2138
    %2140 = vst.msk [vmem:[%s2124 + $0x10] sm:$0xf] %vm22, %v1836
    %v2141 = vld [vmem:[%s2124 + $0x14] sm:$0x1]
    %v2142 = vsel %vm2133, %v1837, %v2141
    %2143 = vst [vmem:[%s2124 + $0x14] sm:$0x1] %v2142
    %v2144 = vld [vmem:[%s2124 + $0x18] sm:$0xf]
    %v2145 = vsel %vm2127, %v1844, %v2144
    %2146 = vst [vmem:[%s2124 + $0x18] sm:$0xf] %v2145
    %2147 = vst.msk [vmem:[%s2124 + $0x1c] sm:$0xf] %vm22, %v1853
    %v2148 = vld [vmem:[%s2124 + $0x20] sm:$0x1]
    %v2149 = vsel %vm2133, %v1854, %v2148
    %2150 = vst [vmem:[%s2124 + $0x20] sm:$0x1] %v2149
    %v2151 = vld [vmem:[%s2124 + $0x24] sm:$0xf]
    %v2152 = vsel %vm2127, %v1861, %v2151
    %2153 = vst [vmem:[%s2124 + $0x24] sm:$0xf] %v2152
    %2154 = vst.msk [vmem:[%s2124 + $0x28] sm:$0xf] %vm22, %v1870
    %v2155 = vld [vmem:[%s2124 + $0x2c] sm:$0x1]
    %v2156 = vsel %vm2133, %v1871, %v2155
    %2157 = vst [vmem:[%s2124 + $0x2c] sm:$0x1] %v2156
    %v2158 = vld [vmem:[%s2124 + $0x30] sm:$0xf]
    %v2159 = vsel %vm2127, %v1878, %v2158
    %2160 = vst [vmem:[%s2124 + $0x30] sm:$0xf] %v2159
    %2161 = vst.msk [vmem:[%s2124 + $0x34] sm:$0xf] %vm22, %v1887
    %v2162 = vld [vmem:[%s2124 + $0x38] sm:$0x1]
    %v2163 = vsel %vm2133, %v1888, %v2162
    %2164 = vst [vmem:[%s2124 + $0x38] sm:$0x1] %v2163
    %v2165 = vld [vmem:[%s2124 + $0x3c] sm:$0xf]
    %v2166 = vsel %vm2127, %v1895, %v2165
    %2167 = vst [vmem:[%s2124 + $0x3c] sm:$0xf] %v2166
    %2168 = vst.msk [vmem:[%s2124 + $0x40] sm:$0xf] %vm22, %v1904
    %v2169 = vld [vmem:[%s2124 + $0x44] sm:$0x1]
    %v2170 = vsel %vm2133, %v1905, %v2169
    %2171 = vst [vmem:[%s2124 + $0x44] sm:$0x1] %v2170
    %v2172 = vld [vmem:[%s2124 + $0x48] sm:$0xf]
    %v2173 = vsel %vm2127, %v1912, %v2172
    %2174 = vst [vmem:[%s2124 + $0x48] sm:$0xf] %v2173
    %2175 = vst.msk [vmem:[%s2124 + $0x4c] sm:$0xf] %vm22, %v1921
    %v2176 = vld [vmem:[%s2124 + $0x50] sm:$0x1]
    %v2177 = vsel %vm2133, %v1922, %v2176
    %2178 = vst [vmem:[%s2124 + $0x50] sm:$0x1] %v2177
    %v2179 = vld [vmem:[%s2124 + $0x54] sm:$0xf]
    %v2180 = vsel %vm2127, %v1929, %v2179
    %2181 = vst [vmem:[%s2124 + $0x54] sm:$0xf] %v2180
    %2182 = vst.msk [vmem:[%s2124 + $0x58] sm:$0xf] %vm22, %v1938
    %v2183 = vld [vmem:[%s2124 + $0x5c] sm:$0x1]
    %v2184 = vsel %vm2133, %v1939, %v2183
    %2185 = vst [vmem:[%s2124 + $0x5c] sm:$0x1] %v2184
    %v2186 = vld [vmem:[%s2124 + $0x60] sm:$0xf]
    %v2187 = vsel %vm2127, %v1946, %v2186
    %2188 = vst [vmem:[%s2124 + $0x60] sm:$0xf] %v2187
    %2189 = vst.msk [vmem:[%s2124 + $0x64] sm:$0xf] %vm22, %v1955
    %v2190 = vld [vmem:[%s2124 + $0x68] sm:$0x1]
    %v2191 = vsel %vm2133, %v1956, %v2190
    %2192 = vst [vmem:[%s2124 + $0x68] sm:$0x1] %v2191
    %v2193 = vld [vmem:[%s2124 + $0x6c] sm:$0xf]
    %v2194 = vsel %vm2127, %v1963, %v2193
    %2195 = vst [vmem:[%s2124 + $0x6c] sm:$0xf] %v2194
    %2196 = vst.msk [vmem:[%s2124 + $0x70] sm:$0xf] %vm22, %v1972
    %v2197 = vld [vmem:[%s2124 + $0x74] sm:$0x1]
    %v2198 = vsel %vm2133, %v1973, %v2197
    %2199 = vst [vmem:[%s2124 + $0x74] sm:$0x1] %v2198
    %v2200 = vld [vmem:[%s2124 + $0x78] sm:$0xf]
    %v2201 = vsel %vm2127, %v1980, %v2200
    %2202 = vst [vmem:[%s2124 + $0x78] sm:$0xf] %v2201
    %2203 = vst.msk [vmem:[%s2124 + $0x7c] sm:$0xf] %vm22, %v1989
    %v2204 = vld [vmem:[%s2124 + $0x80] sm:$0x1]
    %v2205 = vsel %vm2133, %v1990, %v2204
    %2206 = vst [vmem:[%s2124 + $0x80] sm:$0x1] %v2205
    %v2207 = vld [vmem:[%s2124 + $0x84] sm:$0xf]
    %v2208 = vsel %vm2127, %v1997, %v2207
    %2209 = vst [vmem:[%s2124 + $0x84] sm:$0xf] %v2208
    %2210 = vst.msk [vmem:[%s2124 + $0x88] sm:$0xf] %vm22, %v2006
    %v2211 = vld [vmem:[%s2124 + $0x8c] sm:$0x1]
    %v2212 = vsel %vm2133, %v2007, %v2211
    %2213 = vst [vmem:[%s2124 + $0x8c] sm:$0x1] %v2212
    %v2214 = vld [vmem:[%s2124 + $0x90] sm:$0xf]
    %v2215 = vsel %vm2127, %v2014, %v2214
    %2216 = vst [vmem:[%s2124 + $0x90] sm:$0xf] %v2215
    %2217 = vst.msk [vmem:[%s2124 + $0x94] sm:$0xf] %vm22, %v2023
    %v2218 = vld [vmem:[%s2124 + $0x98] sm:$0x1]
    %v2219 = vsel %vm2133, %v2024, %v2218
    %2220 = vst [vmem:[%s2124 + $0x98] sm:$0x1] %v2219
    %v2221 = vld [vmem:[%s2124 + $0x9c] sm:$0xf]
    %v2222 = vsel %vm2127, %v2031, %v2221
    %2223 = vst [vmem:[%s2124 + $0x9c] sm:$0xf] %v2222
    %2224 = vst.msk [vmem:[%s2124 + $0xa0] sm:$0xf] %vm22, %v2040
    %v2225 = vld [vmem:[%s2124 + $0xa4] sm:$0x1]
    %v2226 = vsel %vm2133, %v2041, %v2225
    %2227 = vst [vmem:[%s2124 + $0xa4] sm:$0x1] %v2226
    %v2228 = vld [vmem:[%s2124 + $0xa8] sm:$0xf]
    %v2229 = vsel %vm2127, %v2048, %v2228
    %2230 = vst [vmem:[%s2124 + $0xa8] sm:$0xf] %v2229
    %2231 = vst.msk [vmem:[%s2124 + $0xac] sm:$0xf] %vm22, %v2057
    %v2232 = vld [vmem:[%s2124 + $0xb0] sm:$0x1]
    %v2233 = vsel %vm2133, %v2058, %v2232
    %2234 = vst [vmem:[%s2124 + $0xb0] sm:$0x1] %v2233
    %v2235 = vld [vmem:[%s2124 + $0xb4] sm:$0xf]
    %v2236 = vsel %vm2127, %v2065, %v2235
    %2237 = vst [vmem:[%s2124 + $0xb4] sm:$0xf] %v2236
    %2238 = vst.msk [vmem:[%s2124 + $0xb8] sm:$0xf] %vm22, %v2074
    %v2239 = vld [vmem:[%s2124 + $0xbc] sm:$0x1]
    %v2240 = vsel %vm2133, %v2075, %v2239
    %2241 = vst [vmem:[%s2124 + $0xbc] sm:$0x1] %v2240
    %v2242 = vld [vmem:[#allocation2] sm:$0xf]
    %v2243 = vld [vmem:[#allocation2 + $0x4] sm:$0xf]
    %v2244 = vld [vmem:[#allocation2 + $0x8] sm:$0x1]
    %v2245 = vld [vmem:[#allocation2 + $0xc] sm:$0xf]
    %v2246 = vld [vmem:[#allocation2 + $0x10] sm:$0xf]
    %v2247 = vld [vmem:[#allocation2 + $0x14] sm:$0x1]
    %v2248 = vld [vmem:[#allocation2 + $0x18] sm:$0xf]
    %v2249 = vld [vmem:[#allocation2 + $0x1c] sm:$0xf]
    %v2250 = vld [vmem:[#allocation2 + $0x20] sm:$0x1]
    %v2251 = vld [vmem:[#allocation2 + $0x24] sm:$0xf]
    %v2252 = vld [vmem:[#allocation2 + $0x28] sm:$0xf]
    %v2253 = vld [vmem:[#allocation2 + $0x2c] sm:$0x1]
    %v2254 = vld [vmem:[#allocation2 + $0x30] sm:$0xf]
    %v2255 = vld [vmem:[#allocation2 + $0x34] sm:$0xf]
    %v2256 = vld [vmem:[#allocation2 + $0x38] sm:$0x1]
    %v2257 = vld [vmem:[#allocation2 + $0x3c] sm:$0xf]
    %v2258 = vld [vmem:[#allocation2 + $0x40] sm:$0xf]
    %v2259 = vld [vmem:[#allocation2 + $0x44] sm:$0x1]
    %v2260 = vld [vmem:[#allocation2 + $0x48] sm:$0xf]
    %v2261 = vld [vmem:[#allocation2 + $0x4c] sm:$0xf]
    %v2262 = vld [vmem:[#allocation2 + $0x50] sm:$0x1]
    %v2263 = vld [vmem:[#allocation2 + $0x54] sm:$0xf]
    %v2264 = vld [vmem:[#allocation2 + $0x58] sm:$0xf]
    %v2265 = vld [vmem:[#allocation2 + $0x5c] sm:$0x1]
    %v2266 = vld [vmem:[#allocation2 + $0x60] sm:$0xf]
    %v2267 = vld [vmem:[#allocation2 + $0x64] sm:$0xf]
    %v2268 = vld [vmem:[#allocation2 + $0x68] sm:$0x1]
    %v2269 = vld [vmem:[#allocation2 + $0x6c] sm:$0xf]
    %v2270 = vld [vmem:[#allocation2 + $0x70] sm:$0xf]
    %v2271 = vld [vmem:[#allocation2 + $0x74] sm:$0x1]
    %v2272 = vld [vmem:[#allocation2 + $0x78] sm:$0xf]
    %v2273 = vld [vmem:[#allocation2 + $0x7c] sm:$0xf]
    %v2274 = vld [vmem:[#allocation2 + $0x80] sm:$0x1]
    %v2275 = vld [vmem:[#allocation2 + $0x84] sm:$0xf]
    %v2276 = vld [vmem:[#allocation2 + $0x88] sm:$0xf]
    %v2277 = vld [vmem:[#allocation2 + $0x8c] sm:$0x1]
    %v2278 = vld [vmem:[#allocation2 + $0x90] sm:$0xf]
    %v2279 = vld [vmem:[#allocation2 + $0x94] sm:$0xf]
    %v2280 = vld [vmem:[#allocation2 + $0x98] sm:$0x1]
    %v2281 = vld [vmem:[#allocation2 + $0x9c] sm:$0xf]
    %v2282 = vld [vmem:[#allocation2 + $0xa0] sm:$0xf]
    %v2283 = vld [vmem:[#allocation2 + $0xa4] sm:$0x1]
    %v2284 = vld [vmem:[#allocation2 + $0xa8] sm:$0xf]
    %v2285 = vld [vmem:[#allocation2 + $0xac] sm:$0xf]
    %v2286 = vld [vmem:[#allocation2 + $0xb0] sm:$0x1]
    %v2287 = vld [vmem:[#allocation2 + $0xb4] sm:$0xf]
    %v2288 = vld [vmem:[#allocation2 + $0xb8] sm:$0xf]
    %v2289 = vld [vmem:[#allocation2 + $0xbc] sm:$0x1]
    %v2290 = vld [vmem:[#allocation2 + $0xc0] sm:$0xf]
    %v2291 = vld [vmem:[#allocation2 + $0xc4] sm:$0xf]
    %v2292 = vld [vmem:[#allocation2 + $0xc8] sm:$0x1]
    %v2293 = vld [vmem:[#allocation2 + $0xcc] sm:$0xf]
    %v2294 = vld [vmem:[#allocation2 + $0xd0] sm:$0xf]
    %v2295 = vld [vmem:[#allocation2 + $0xd4] sm:$0x1]
    %v2297 = vshrl.u32 %v2242, 16
    %v2299 = vrot.slane %v2297, 4
    %v2300 = vshll.u32 %v2242, 16
    %v2302 = vrot.slane %v2300, 5
    %v2303 = vor.u32 %v2299, %v2302
    %v2304 = vrot.slane %v2303, 4
    %v2306 = vshll.u32 %v2243, 16
    %v2308 = vrot.slane %v2306, 5
    %v2309 = vsel %vm134, %v2304, %v2308
    %v2310 = vshrl.u32 %v2243, 16
    %v2312 = vrot.slane %v2310, 4
    %v2313 = vor.u32 %v2312, %v2308
    %v2314 = vrot.slane %v2313, 4
    %v2316 = vshll.u32 %v2244, 16
    %v2318 = vrot.slane %v2316, 5
    %v2319 = vsel %vm134, %v2314, %v2318
    %v2321 = vshrl.u32 %v2245, 16
    %v2323 = vrot.slane %v2321, 4
    %v2324 = vshll.u32 %v2245, 16
    %v2326 = vrot.slane %v2324, 5
    %v2327 = vor.u32 %v2323, %v2326
    %v2328 = vrot.slane %v2327, 4
    %v2330 = vshll.u32 %v2246, 16
    %v2332 = vrot.slane %v2330, 5
    %v2333 = vsel %vm134, %v2328, %v2332
    %v2334 = vshrl.u32 %v2246, 16
    %v2336 = vrot.slane %v2334, 4
    %v2337 = vor.u32 %v2336, %v2332
    %v2338 = vrot.slane %v2337, 4
    %v2340 = vshll.u32 %v2247, 16
    %v2342 = vrot.slane %v2340, 5
    %v2343 = vsel %vm134, %v2338, %v2342
    %v2345 = vshrl.u32 %v2248, 16
    %v2347 = vrot.slane %v2345, 4
    %v2348 = vshll.u32 %v2248, 16
    %v2350 = vrot.slane %v2348, 5
    %v2351 = vor.u32 %v2347, %v2350
    %v2352 = vrot.slane %v2351, 4
    %v2354 = vshll.u32 %v2249, 16
    %v2356 = vrot.slane %v2354, 5
    %v2357 = vsel %vm134, %v2352, %v2356
    %v2358 = vshrl.u32 %v2249, 16
    %v2360 = vrot.slane %v2358, 4
    %v2361 = vor.u32 %v2360, %v2356
    %v2362 = vrot.slane %v2361, 4
    %v2364 = vshll.u32 %v2250, 16
    %v2366 = vrot.slane %v2364, 5
    %v2367 = vsel %vm134, %v2362, %v2366
    %v2369 = vshrl.u32 %v2251, 16
    %v2371 = vrot.slane %v2369, 4
    %v2372 = vshll.u32 %v2251, 16
    %v2374 = vrot.slane %v2372, 5
    %v2375 = vor.u32 %v2371, %v2374
    %v2376 = vrot.slane %v2375, 4
    %v2378 = vshll.u32 %v2252, 16
    %v2380 = vrot.slane %v2378, 5
    %v2381 = vsel %vm134, %v2376, %v2380
    %v2382 = vshrl.u32 %v2252, 16
    %v2384 = vrot.slane %v2382, 4
    %v2385 = vor.u32 %v2384, %v2380
    %v2386 = vrot.slane %v2385, 4
    %v2388 = vshll.u32 %v2253, 16
    %v2390 = vrot.slane %v2388, 5
    %v2391 = vsel %vm134, %v2386, %v2390
    %v2393 = vshrl.u32 %v2254, 16
    %v2395 = vrot.slane %v2393, 4
    %v2396 = vshll.u32 %v2254, 16
    %v2398 = vrot.slane %v2396, 5
    %v2399 = vor.u32 %v2395, %v2398
    %v2400 = vrot.slane %v2399, 4
    %v2402 = vshll.u32 %v2255, 16
    %v2404 = vrot.slane %v2402, 5
    %v2405 = vsel %vm134, %v2400, %v2404
    %v2406 = vshrl.u32 %v2255, 16
    %v2408 = vrot.slane %v2406, 4
    %v2409 = vor.u32 %v2408, %v2404
    %v2410 = vrot.slane %v2409, 4
    %v2412 = vshll.u32 %v2256, 16
    %v2414 = vrot.slane %v2412, 5
    %v2415 = vsel %vm134, %v2410, %v2414
    %v2417 = vshrl.u32 %v2257, 16
    %v2419 = vrot.slane %v2417, 4
    %v2420 = vshll.u32 %v2257, 16
    %v2422 = vrot.slane %v2420, 5
    %v2423 = vor.u32 %v2419, %v2422
    %v2424 = vrot.slane %v2423, 4
    %v2426 = vshll.u32 %v2258, 16
    %v2428 = vrot.slane %v2426, 5
    %v2429 = vsel %vm134, %v2424, %v2428
    %v2430 = vshrl.u32 %v2258, 16
    %v2432 = vrot.slane %v2430, 4
    %v2433 = vor.u32 %v2432, %v2428
    %v2434 = vrot.slane %v2433, 4
    %v2436 = vshll.u32 %v2259, 16
    %v2438 = vrot.slane %v2436, 5
    %v2439 = vsel %vm134, %v2434, %v2438
    %v2441 = vshrl.u32 %v2260, 16
    %v2443 = vrot.slane %v2441, 4
    %v2444 = vshll.u32 %v2260, 16
    %v2446 = vrot.slane %v2444, 5
    %v2447 = vor.u32 %v2443, %v2446
    %v2448 = vrot.slane %v2447, 4
    %v2450 = vshll.u32 %v2261, 16
    %v2452 = vrot.slane %v2450, 5
    %v2453 = vsel %vm134, %v2448, %v2452
    %v2454 = vshrl.u32 %v2261, 16
    %v2456 = vrot.slane %v2454, 4
    %v2457 = vor.u32 %v2456, %v2452
    %v2458 = vrot.slane %v2457, 4
    %v2460 = vshll.u32 %v2262, 16
    %v2462 = vrot.slane %v2460, 5
    %v2463 = vsel %vm134, %v2458, %v2462
    %v2465 = vshrl.u32 %v2263, 16
    %v2467 = vrot.slane %v2465, 4
    %v2468 = vshll.u32 %v2263, 16
    %v2470 = vrot.slane %v2468, 5
    %v2471 = vor.u32 %v2467, %v2470
    %v2472 = vrot.slane %v2471, 4
    %v2474 = vshll.u32 %v2264, 16
    %v2476 = vrot.slane %v2474, 5
    %v2477 = vsel %vm134, %v2472, %v2476
    %v2478 = vshrl.u32 %v2264, 16
    %v2480 = vrot.slane %v2478, 4
    %v2481 = vor.u32 %v2480, %v2476
    %v2482 = vrot.slane %v2481, 4
    %v2484 = vshll.u32 %v2265, 16
    %v2486 = vrot.slane %v2484, 5
    %v2487 = vsel %vm134, %v2482, %v2486
    %v2489 = vshrl.u32 %v2266, 16
    %v2491 = vrot.slane %v2489, 4
    %v2492 = vshll.u32 %v2266, 16
    %v2494 = vrot.slane %v2492, 5
    %v2495 = vor.u32 %v2491, %v2494
    %v2496 = vrot.slane %v2495, 4
    %v2498 = vshll.u32 %v2267, 16
    %v2500 = vrot.slane %v2498, 5
    %v2501 = vsel %vm134, %v2496, %v2500
    %v2502 = vshrl.u32 %v2267, 16
    %v2504 = vrot.slane %v2502, 4
    %v2505 = vor.u32 %v2504, %v2500
    %v2506 = vrot.slane %v2505, 4
    %v2508 = vshll.u32 %v2268, 16
    %v2510 = vrot.slane %v2508, 5
    %v2511 = vsel %vm134, %v2506, %v2510
    %v2513 = vshrl.u32 %v2269, 16
    %v2515 = vrot.slane %v2513, 4
    %v2516 = vshll.u32 %v2269, 16
    %v2518 = vrot.slane %v2516, 5
    %v2519 = vor.u32 %v2515, %v2518
    %v2520 = vrot.slane %v2519, 4
    %v2522 = vshll.u32 %v2270, 16
    %v2524 = vrot.slane %v2522, 5
    %v2525 = vsel %vm134, %v2520, %v2524
    %v2526 = vshrl.u32 %v2270, 16
    %v2528 = vrot.slane %v2526, 4
    %v2529 = vor.u32 %v2528, %v2524
    %v2530 = vrot.slane %v2529, 4
    %v2532 = vshll.u32 %v2271, 16
    %v2534 = vrot.slane %v2532, 5
    %v2535 = vsel %vm134, %v2530, %v2534
    %v2537 = vshrl.u32 %v2272, 16
    %v2539 = vrot.slane %v2537, 4
    %v2540 = vshll.u32 %v2272, 16
    %v2542 = vrot.slane %v2540, 5
    %v2543 = vor.u32 %v2539, %v2542
    %v2544 = vrot.slane %v2543, 4
    %v2546 = vshll.u32 %v2273, 16
    %v2548 = vrot.slane %v2546, 5
    %v2549 = vsel %vm134, %v2544, %v2548
    %v2550 = vshrl.u32 %v2273, 16
    %v2552 = vrot.slane %v2550, 4
    %v2553 = vor.u32 %v2552, %v2548
    %v2554 = vrot.slane %v2553, 4
    %v2556 = vshll.u32 %v2274, 16
    %v2558 = vrot.slane %v2556, 5
    %v2559 = vsel %vm134, %v2554, %v2558
    %v2561 = vshrl.u32 %v2275, 16
    %v2563 = vrot.slane %v2561, 4
    %v2564 = vshll.u32 %v2275, 16
    %v2566 = vrot.slane %v2564, 5
    %v2567 = vor.u32 %v2563, %v2566
    %v2568 = vrot.slane %v2567, 4
    %v2570 = vshll.u32 %v2276, 16
    %v2572 = vrot.slane %v2570, 5
    %v2573 = vsel %vm134, %v2568, %v2572
    %v2574 = vshrl.u32 %v2276, 16
    %v2576 = vrot.slane %v2574, 4
    %v2577 = vor.u32 %v2576, %v2572
    %v2578 = vrot.slane %v2577, 4
    %v2580 = vshll.u32 %v2277, 16
    %v2582 = vrot.slane %v2580, 5
    %v2583 = vsel %vm134, %v2578, %v2582
    %v2585 = vshrl.u32 %v2278, 16
    %v2587 = vrot.slane %v2585, 4
    %v2588 = vshll.u32 %v2278, 16
    %v2590 = vrot.slane %v2588, 5
    %v2591 = vor.u32 %v2587, %v2590
    %v2592 = vrot.slane %v2591, 4
    %v2594 = vshll.u32 %v2279, 16
    %v2596 = vrot.slane %v2594, 5
    %v2597 = vsel %vm134, %v2592, %v2596
    %v2598 = vshrl.u32 %v2279, 16
    %v2600 = vrot.slane %v2598, 4
    %v2601 = vor.u32 %v2600, %v2596
    %v2602 = vrot.slane %v2601, 4
    %v2604 = vshll.u32 %v2280, 16
    %v2606 = vrot.slane %v2604, 5
    %v2607 = vsel %vm134, %v2602, %v2606
    %v2609 = vshrl.u32 %v2281, 16
    %v2611 = vrot.slane %v2609, 4
    %v2612 = vshll.u32 %v2281, 16
    %v2614 = vrot.slane %v2612, 5
    %v2615 = vor.u32 %v2611, %v2614
    %v2616 = vrot.slane %v2615, 4
    %v2618 = vshll.u32 %v2282, 16
    %v2620 = vrot.slane %v2618, 5
    %v2621 = vsel %vm134, %v2616, %v2620
    %v2622 = vshrl.u32 %v2282, 16
    %v2624 = vrot.slane %v2622, 4
    %v2625 = vor.u32 %v2624, %v2620
    %v2626 = vrot.slane %v2625, 4
    %v2628 = vshll.u32 %v2283, 16
    %v2630 = vrot.slane %v2628, 5
    %v2631 = vsel %vm134, %v2626, %v2630
    %v2633 = vshrl.u32 %v2284, 16
    %v2635 = vrot.slane %v2633, 4
    %v2636 = vshll.u32 %v2284, 16
    %v2638 = vrot.slane %v2636, 5
    %v2639 = vor.u32 %v2635, %v2638
    %v2640 = vrot.slane %v2639, 4
    %v2642 = vshll.u32 %v2285, 16
    %v2644 = vrot.slane %v2642, 5
    %v2645 = vsel %vm134, %v2640, %v2644
    %v2646 = vshrl.u32 %v2285, 16
    %v2648 = vrot.slane %v2646, 4
    %v2649 = vor.u32 %v2648, %v2644
    %v2650 = vrot.slane %v2649, 4
    %v2652 = vshll.u32 %v2286, 16
    %v2654 = vrot.slane %v2652, 5
    %v2655 = vsel %vm134, %v2650, %v2654
    %v2657 = vshrl.u32 %v2287, 16
    %v2659 = vrot.slane %v2657, 4
    %v2660 = vshll.u32 %v2287, 16
    %v2662 = vrot.slane %v2660, 5
    %v2663 = vor.u32 %v2659, %v2662
    %v2664 = vrot.slane %v2663, 4
    %v2666 = vshll.u32 %v2288, 16
    %v2668 = vrot.slane %v2666, 5
    %v2669 = vsel %vm134, %v2664, %v2668
    %v2670 = vshrl.u32 %v2288, 16
    %v2672 = vrot.slane %v2670, 4
    %v2673 = vor.u32 %v2672, %v2668
    %v2674 = vrot.slane %v2673, 4
    %v2676 = vshll.u32 %v2289, 16
    %v2678 = vrot.slane %v2676, 5
    %v2679 = vsel %vm134, %v2674, %v2678
    %v2728 = vrot.slane %v2242, 5
    %v2729 = vrot.slane %v2728, 4
    %v2730 = vrot.slane %v2243, 5
    %v2731 = vsel %vm569, %v2729, %v2730
    %v2732 = vrot.slane %v2730, 4
    %v2733 = vrot.slane %v2244, 5
    %v2734 = vsel %vm569, %v2732, %v2733
    %v2735 = vrot.slane %v2245, 5
    %v2736 = vrot.slane %v2735, 4
    %v2737 = vrot.slane %v2246, 5
    %v2738 = vsel %vm569, %v2736, %v2737
    %v2739 = vrot.slane %v2737, 4
    %v2740 = vrot.slane %v2247, 5
    %v2741 = vsel %vm569, %v2739, %v2740
    %v2742 = vrot.slane %v2248, 5
    %v2743 = vrot.slane %v2742, 4
    %v2744 = vrot.slane %v2249, 5
    %v2745 = vsel %vm569, %v2743, %v2744
    %v2746 = vrot.slane %v2744, 4
    %v2747 = vrot.slane %v2250, 5
    %v2748 = vsel %vm569, %v2746, %v2747
    %v2749 = vrot.slane %v2251, 5
    %v2750 = vrot.slane %v2749, 4
    %v2751 = vrot.slane %v2252, 5
    %v2752 = vsel %vm569, %v2750, %v2751
    %v2753 = vrot.slane %v2751, 4
    %v2754 = vrot.slane %v2253, 5
    %v2755 = vsel %vm569, %v2753, %v2754
    %v2756 = vrot.slane %v2254, 5
    %v2757 = vrot.slane %v2756, 4
    %v2758 = vrot.slane %v2255, 5
    %v2759 = vsel %vm569, %v2757, %v2758
    %v2760 = vrot.slane %v2758, 4
    %v2761 = vrot.slane %v2256, 5
    %v2762 = vsel %vm569, %v2760, %v2761
    %v2763 = vrot.slane %v2257, 5
    %v2764 = vrot.slane %v2763, 4
    %v2765 = vrot.slane %v2258, 5
    %v2766 = vsel %vm569, %v2764, %v2765
    %v2767 = vrot.slane %v2765, 4
    %v2768 = vrot.slane %v2259, 5
    %v2769 = vsel %vm569, %v2767, %v2768
    %v2770 = vrot.slane %v2260, 5
    %v2771 = vrot.slane %v2770, 4
    %v2772 = vrot.slane %v2261, 5
    %v2773 = vsel %vm569, %v2771, %v2772
    %v2774 = vrot.slane %v2772, 4
    %v2775 = vrot.slane %v2262, 5
    %v2776 = vsel %vm569, %v2774, %v2775
    %v2777 = vrot.slane %v2263, 5
    %v2778 = vrot.slane %v2777, 4
    %v2779 = vrot.slane %v2264, 5
    %v2780 = vsel %vm569, %v2778, %v2779
    %v2781 = vrot.slane %v2779, 4
    %v2782 = vrot.slane %v2265, 5
    %v2783 = vsel %vm569, %v2781, %v2782
    %v2784 = vrot.slane %v2266, 5
    %v2785 = vrot.slane %v2784, 4
    %v2786 = vrot.slane %v2267, 5
    %v2787 = vsel %vm569, %v2785, %v2786
    %v2788 = vrot.slane %v2786, 4
    %v2789 = vrot.slane %v2268, 5
    %v2790 = vsel %vm569, %v2788, %v2789
    %v2791 = vrot.slane %v2269, 5
    %v2792 = vrot.slane %v2791, 4
    %v2793 = vrot.slane %v2270, 5
    %v2794 = vsel %vm569, %v2792, %v2793
    %v2795 = vrot.slane %v2793, 4
    %v2796 = vrot.slane %v2271, 5
    %v2797 = vsel %vm569, %v2795, %v2796
    %v2798 = vrot.slane %v2272, 5
    %v2799 = vrot.slane %v2798, 4
    %v2800 = vrot.slane %v2273, 5
    %v2801 = vsel %vm569, %v2799, %v2800
    %v2802 = vrot.slane %v2800, 4
    %v2803 = vrot.slane %v2274, 5
    %v2804 = vsel %vm569, %v2802, %v2803
    %v2805 = vrot.slane %v2275, 5
    %v2806 = vrot.slane %v2805, 4
    %v2807 = vrot.slane %v2276, 5
    %v2808 = vsel %vm569, %v2806, %v2807
    %v2809 = vrot.slane %v2807, 4
    %v2810 = vrot.slane %v2277, 5
    %v2811 = vsel %vm569, %v2809, %v2810
    %v2812 = vrot.slane %v2278, 5
    %v2813 = vrot.slane %v2812, 4
    %v2814 = vrot.slane %v2279, 5
    %v2815 = vsel %vm569, %v2813, %v2814
    %v2816 = vrot.slane %v2814, 4
    %v2817 = vrot.slane %v2280, 5
    %v2818 = vsel %vm569, %v2816, %v2817
    %v2819 = vrot.slane %v2281, 5
    %v2820 = vrot.slane %v2819, 4
    %v2821 = vrot.slane %v2282, 5
    %v2822 = vsel %vm569, %v2820, %v2821
    %v2823 = vrot.slane %v2821, 4
    %v2824 = vrot.slane %v2283, 5
    %v2825 = vsel %vm569, %v2823, %v2824
    %v2826 = vrot.slane %v2284, 5
    %v2827 = vrot.slane %v2826, 4
    %v2828 = vrot.slane %v2285, 5
    %v2829 = vsel %vm569, %v2827, %v2828
    %v2830 = vrot.slane %v2828, 4
    %v2831 = vrot.slane %v2286, 5
    %v2832 = vsel %vm569, %v2830, %v2831
    %v2833 = vrot.slane %v2287, 5
    %v2834 = vrot.slane %v2833, 4
    %v2835 = vrot.slane %v2288, 5
    %v2836 = vsel %vm569, %v2834, %v2835
    %v2837 = vrot.slane %v2835, 4
    %v2838 = vrot.slane %v2289, 5
    %v2839 = vsel %vm569, %v2837, %v2838
    %v2841 = vshrl.u32 %v2290, 16
    %v2843 = vrot.slane %v2841, 4
    %v2844 = vshll.u32 %v2290, 16
    %v2846 = vrot.slane %v2844, 5
    %v2847 = vor.u32 %v2843, %v2846
    %v2848 = vrot.slane %v2847, 4
    %v2850 = vshll.u32 %v2291, 16
    %v2852 = vrot.slane %v2850, 5
    %v2853 = vsel %vm134, %v2848, %v2852
    %v2854 = vshrl.u32 %v2291, 16
    %v2856 = vrot.slane %v2854, 4
    %v2857 = vor.u32 %v2856, %v2852
    %v2858 = vrot.slane %v2857, 4
    %v2860 = vshll.u32 %v2292, 16
    %v2862 = vrot.slane %v2860, 5
    %v2863 = vsel %vm134, %v2858, %v2862
    %v2867 = vrot.slane %v2290, 5
    %v2868 = vrot.slane %v2867, 4
    %v2869 = vrot.slane %v2291, 5
    %v2870 = vsel %vm569, %v2868, %v2869
    %v2871 = vrot.slane %v2869, 4
    %v2872 = vrot.slane %v2292, 5
    %v2873 = vsel %vm569, %v2871, %v2872
    %v2875 = vshrl.u32 %v2293, 16
    %v2877 = vrot.slane %v2875, 4
    %v2878 = vshll.u32 %v2293, 16
    %v2880 = vrot.slane %v2878, 5
    %v2881 = vor.u32 %v2877, %v2880
    %v2882 = vrot.slane %v2881, 4
    %v2884 = vshll.u32 %v2294, 16
    %v2886 = vrot.slane %v2884, 5
    %v2887 = vsel %vm134, %v2882, %v2886
    %v2888 = vshrl.u32 %v2294, 16
    %v2890 = vrot.slane %v2888, 4
    %v2891 = vor.u32 %v2890, %v2886
    %v2892 = vrot.slane %v2891, 4
    %v2894 = vshll.u32 %v2295, 16
    %v2896 = vrot.slane %v2894, 5
    %v2897 = vsel %vm134, %v2892, %v2896
    %v2901 = vrot.slane %v2293, 5
    %v2902 = vrot.slane %v2901, 4
    %v2903 = vrot.slane %v2294, 5
    %v2904 = vsel %vm569, %v2902, %v2903
    %v2905 = vrot.slane %v2903, 4
    %v2906 = vrot.slane %v2295, 5
    %v2907 = vsel %vm569, %v2905, %v2906
    %v2908 = vunpack.c.l.b16 %v2242
    %v2909 = vunpack.c.l.b16 %v2243
    %v2910 = vunpack.c.l.b16 %v2245
    %v2911 = vunpack.c.l.b16 %v2246
    %v2912 = vunpack.c.l.b16 %v2248
    %v2913 = vunpack.c.l.b16 %v2249
    %v2914 = vunpack.c.l.b16 %v2251
    %v2915 = vunpack.c.l.b16 %v2252
    %v2916 = vunpack.c.l.b16 %v2254
    %v2917 = vunpack.c.l.b16 %v2255
    %v2918 = vunpack.c.l.b16 %v2257
    %v2919 = vunpack.c.l.b16 %v2258
    %v2920 = vunpack.c.l.b16 %v2260
    %v2921 = vunpack.c.l.b16 %v2261
    %v2922 = vunpack.c.l.b16 %v2263
    %v2923 = vunpack.c.l.b16 %v2264
    %v2924 = vunpack.c.l.b16 %v2266
    %v2925 = vunpack.c.l.b16 %v2267
    %v2926 = vunpack.c.l.b16 %v2269
    %v2927 = vunpack.c.l.b16 %v2270
    %v2928 = vunpack.c.l.b16 %v2272
    %v2929 = vunpack.c.l.b16 %v2273
    %v2930 = vunpack.c.l.b16 %v2275
    %v2931 = vunpack.c.l.b16 %v2276
    %v2932 = vunpack.c.l.b16 %v2278
    %v2933 = vunpack.c.l.b16 %v2279
    %v2934 = vunpack.c.l.b16 %v2281
    %v2935 = vunpack.c.l.b16 %v2282
    %v2936 = vunpack.c.l.b16 %v2284
    %v2937 = vunpack.c.l.b16 %v2285
    %v2938 = vunpack.c.l.b16 %v2287
    %v2939 = vunpack.c.l.b16 %v2288
    %v2940 = vpack.c.b16 %v2909, %v2908
    %v2941 = vpack.c.b16 %v2911, %v2910
    %v2942 = vpack.c.b16 %v2913, %v2912
    %v2943 = vpack.c.b16 %v2915, %v2914
    %v2944 = vpack.c.b16 %v2917, %v2916
    %v2945 = vpack.c.b16 %v2919, %v2918
    %v2946 = vpack.c.b16 %v2921, %v2920
    %v2947 = vpack.c.b16 %v2923, %v2922
    %v2948 = vpack.c.b16 %v2925, %v2924
    %v2949 = vpack.c.b16 %v2927, %v2926
    %v2950 = vpack.c.b16 %v2929, %v2928
    %v2951 = vpack.c.b16 %v2931, %v2930
    %v2952 = vpack.c.b16 %v2933, %v2932
    %v2953 = vpack.c.b16 %v2935, %v2934
    %v2954 = vpack.c.b16 %v2937, %v2936
    %v2955 = vpack.c.b16 %v2939, %v2938
    %v2956 = vunpack.c.l.b16 %v2309
    %v2957 = vunpack.c.l.b16 %v2319
    %v2958 = vunpack.c.l.b16 %v2333
    %v2959 = vunpack.c.l.b16 %v2343
    %v2960 = vunpack.c.l.b16 %v2357
    %v2961 = vunpack.c.l.b16 %v2367
    %v2962 = vunpack.c.l.b16 %v2381
    %v2963 = vunpack.c.l.b16 %v2391
    %v2964 = vunpack.c.l.b16 %v2405
    %v2965 = vunpack.c.l.b16 %v2415
    %v2966 = vunpack.c.l.b16 %v2429
    %v2967 = vunpack.c.l.b16 %v2439
    %v2968 = vunpack.c.l.b16 %v2453
    %v2969 = vunpack.c.l.b16 %v2463
    %v2970 = vunpack.c.l.b16 %v2477
    %v2971 = vunpack.c.l.b16 %v2487
    %v2972 = vunpack.c.l.b16 %v2501
    %v2973 = vunpack.c.l.b16 %v2511
    %v2974 = vunpack.c.l.b16 %v2525
    %v2975 = vunpack.c.l.b16 %v2535
    %v2976 = vunpack.c.l.b16 %v2549
    %v2977 = vunpack.c.l.b16 %v2559
    %v2978 = vunpack.c.l.b16 %v2573
    %v2979 = vunpack.c.l.b16 %v2583
    %v2980 = vunpack.c.l.b16 %v2597
    %v2981 = vunpack.c.l.b16 %v2607
    %v2982 = vunpack.c.l.b16 %v2621
    %v2983 = vunpack.c.l.b16 %v2631
    %v2984 = vunpack.c.l.b16 %v2645
    %v2985 = vunpack.c.l.b16 %v2655
    %v2986 = vunpack.c.l.b16 %v2669
    %v2987 = vunpack.c.l.b16 %v2679
    %v2988 = vpack.c.b16 %v2957, %v2956
    %v2989 = vpack.c.b16 %v2959, %v2958
    %v2990 = vpack.c.b16 %v2961, %v2960
    %v2991 = vpack.c.b16 %v2963, %v2962
    %v2992 = vpack.c.b16 %v2965, %v2964
    %v2993 = vpack.c.b16 %v2967, %v2966
    %v2994 = vpack.c.b16 %v2969, %v2968
    %v2995 = vpack.c.b16 %v2971, %v2970
    %v2996 = vpack.c.b16 %v2973, %v2972
    %v2997 = vpack.c.b16 %v2975, %v2974
    %v2998 = vpack.c.b16 %v2977, %v2976
    %v2999 = vpack.c.b16 %v2979, %v2978
    %v3000 = vpack.c.b16 %v2981, %v2980
    %v3001 = vpack.c.b16 %v2983, %v2982
    %v3002 = vpack.c.b16 %v2985, %v2984
    %v3003 = vpack.c.b16 %v2987, %v2986
    %3004 = vrot.lane.b32.xlu0 %v2988, 16
    %v3005 = vpop.permute.xlu0 %3004
    %3006 = vrot.lane.b32.xlu0 %v2989, 16
    %v3007 = vpop.permute.xlu0 %3006
    %3008 = vrot.lane.b32.xlu0 %v2990, 16
    %v3009 = vpop.permute.xlu0 %3008
    %3010 = vrot.lane.b32.xlu0 %v2991, 16
    %v3011 = vpop.permute.xlu0 %3010
    %3012 = vrot.lane.b32.xlu0 %v2992, 16
    %v3013 = vpop.permute.xlu0 %3012
    %3014 = vrot.lane.b32.xlu0 %v2993, 16
    %v3015 = vpop.permute.xlu0 %3014
    %3016 = vrot.lane.b32.xlu0 %v2994, 16
    %v3017 = vpop.permute.xlu0 %3016
    %3018 = vrot.lane.b32.xlu0 %v2995, 16
    %v3019 = vpop.permute.xlu0 %3018
    %3020 = vrot.lane.b32.xlu0 %v2996, 16
    %v3021 = vpop.permute.xlu0 %3020
    %3022 = vrot.lane.b32.xlu0 %v2997, 16
    %v3023 = vpop.permute.xlu0 %3022
    %3024 = vrot.lane.b32.xlu0 %v2998, 16
    %v3025 = vpop.permute.xlu0 %3024
    %3026 = vrot.lane.b32.xlu0 %v2999, 16
    %v3027 = vpop.permute.xlu0 %3026
    %3028 = vrot.lane.b32.xlu0 %v3000, 16
    %v3029 = vpop.permute.xlu0 %3028
    %3030 = vrot.lane.b32.xlu0 %v3001, 16
    %v3031 = vpop.permute.xlu0 %3030
    %3032 = vrot.lane.b32.xlu0 %v3002, 16
    %v3033 = vpop.permute.xlu0 %3032
    %3034 = vrot.lane.b32.xlu0 %v3003, 16
    %v3035 = vpop.permute.xlu0 %3034
    %v3036 = vunpack.c.l.b16 %v2731
    %v3037 = vunpack.c.l.b16 %v2734
    %v3038 = vunpack.c.l.b16 %v2738
    %v3039 = vunpack.c.l.b16 %v2741
    %v3040 = vunpack.c.l.b16 %v2745
    %v3041 = vunpack.c.l.b16 %v2748
    %v3042 = vunpack.c.l.b16 %v2752
    %v3043 = vunpack.c.l.b16 %v2755
    %v3044 = vunpack.c.l.b16 %v2759
    %v3045 = vunpack.c.l.b16 %v2762
    %v3046 = vunpack.c.l.b16 %v2766
    %v3047 = vunpack.c.l.b16 %v2769
    %v3048 = vunpack.c.l.b16 %v2773
    %v3049 = vunpack.c.l.b16 %v2776
    %v3050 = vunpack.c.l.b16 %v2780
    %v3051 = vunpack.c.l.b16 %v2783
    %v3052 = vunpack.c.l.b16 %v2787
    %v3053 = vunpack.c.l.b16 %v2790
    %v3054 = vunpack.c.l.b16 %v2794
    %v3055 = vunpack.c.l.b16 %v2797
    %v3056 = vunpack.c.l.b16 %v2801
    %v3057 = vunpack.c.l.b16 %v2804
    %v3058 = vunpack.c.l.b16 %v2808
    %v3059 = vunpack.c.l.b16 %v2811
    %v3060 = vunpack.c.l.b16 %v2815
    %v3061 = vunpack.c.l.b16 %v2818
    %v3062 = vunpack.c.l.b16 %v2822
    %v3063 = vunpack.c.l.b16 %v2825
    %v3064 = vunpack.c.l.b16 %v2829
    %v3065 = vunpack.c.l.b16 %v2832
    %v3066 = vunpack.c.l.b16 %v2836
    %v3067 = vunpack.c.l.b16 %v2839
    %v3068 = vpack.c.b16 %v3037, %v3036
    %v3069 = vpack.c.b16 %v3039, %v3038
    %v3070 = vpack.c.b16 %v3041, %v3040
    %v3071 = vpack.c.b16 %v3043, %v3042
    %v3072 = vpack.c.b16 %v3045, %v3044
    %v3073 = vpack.c.b16 %v3047, %v3046
    %v3074 = vpack.c.b16 %v3049, %v3048
    %v3075 = vpack.c.b16 %v3051, %v3050
    %v3076 = vpack.c.b16 %v3053, %v3052
    %v3077 = vpack.c.b16 %v3055, %v3054
    %v3078 = vpack.c.b16 %v3057, %v3056
    %v3079 = vpack.c.b16 %v3059, %v3058
    %v3080 = vpack.c.b16 %v3061, %v3060
    %v3081 = vpack.c.b16 %v3063, %v3062
    %v3082 = vpack.c.b16 %v3065, %v3064
    %v3083 = vpack.c.b16 %v3067, %v3066
    %3084 = vrot.lane.b32.xlu0 %v3068, 32
    %v3085 = vpop.permute.xlu0 %3084
    %3086 = vrot.lane.b32.xlu0 %v3069, 32
    %v3087 = vpop.permute.xlu0 %3086
    %3088 = vrot.lane.b32.xlu0 %v3070, 32
    %v3089 = vpop.permute.xlu0 %3088
    %3090 = vrot.lane.b32.xlu0 %v3071, 32
    %v3091 = vpop.permute.xlu0 %3090
    %3092 = vrot.lane.b32.xlu0 %v3072, 32
    %v3093 = vpop.permute.xlu0 %3092
    %3094 = vrot.lane.b32.xlu0 %v3073, 32
    %v3095 = vpop.permute.xlu0 %3094
    %3096 = vrot.lane.b32.xlu0 %v3074, 32
    %v3097 = vpop.permute.xlu0 %3096
    %3098 = vrot.lane.b32.xlu0 %v3075, 32
    %v3099 = vpop.permute.xlu0 %3098
    %3100 = vrot.lane.b32.xlu0 %v3076, 32
    %v3101 = vpop.permute.xlu0 %3100
    %3102 = vrot.lane.b32.xlu0 %v3077, 32
    %v3103 = vpop.permute.xlu0 %3102
    %3104 = vrot.lane.b32.xlu0 %v3078, 32
    %v3105 = vpop.permute.xlu0 %3104
    %3106 = vrot.lane.b32.xlu0 %v3079, 32
    %v3107 = vpop.permute.xlu0 %3106
    %3108 = vrot.lane.b32.xlu0 %v3080, 32
    %v3109 = vpop.permute.xlu0 %3108
    %3110 = vrot.lane.b32.xlu0 %v3081, 32
    %v3111 = vpop.permute.xlu0 %3110
    %3112 = vrot.lane.b32.xlu0 %v3082, 32
    %v3113 = vpop.permute.xlu0 %3112
    %3114 = vrot.lane.b32.xlu0 %v3083, 32
    %v3115 = vpop.permute.xlu0 %3114
    %v3116 = vunpack.c.l.b16 %v2290
    %v3117 = vunpack.c.l.b16 %v2291
    %v3118 = vpack.c.b16 %v3117, %v3116
    %3119 = vrot.lane.b32.xlu0 %v2941, 48
    %v3120 = vpop.permute.xlu0 %3119
    %3121 = vrot.lane.b32.xlu0 %v2942, 48
    %v3122 = vpop.permute.xlu0 %3121
    %3123 = vrot.lane.b32.xlu0 %v2943, 48
    %v3124 = vpop.permute.xlu0 %3123
    %3125 = vrot.lane.b32.xlu0 %v2944, 48
    %v3126 = vpop.permute.xlu0 %3125
    %3127 = vrot.lane.b32.xlu0 %v2945, 48
    %v3128 = vpop.permute.xlu0 %3127
    %3129 = vrot.lane.b32.xlu0 %v2946, 48
    %v3130 = vpop.permute.xlu0 %3129
    %3131 = vrot.lane.b32.xlu0 %v2947, 48
    %v3132 = vpop.permute.xlu0 %3131
    %3133 = vrot.lane.b32.xlu0 %v2948, 48
    %v3134 = vpop.permute.xlu0 %3133
    %3135 = vrot.lane.b32.xlu0 %v2949, 48
    %v3136 = vpop.permute.xlu0 %3135
    %3137 = vrot.lane.b32.xlu0 %v2950, 48
    %v3138 = vpop.permute.xlu0 %3137
    %3139 = vrot.lane.b32.xlu0 %v2951, 48
    %v3140 = vpop.permute.xlu0 %3139
    %3141 = vrot.lane.b32.xlu0 %v2952, 48
    %v3142 = vpop.permute.xlu0 %3141
    %3143 = vrot.lane.b32.xlu0 %v2953, 48
    %v3144 = vpop.permute.xlu0 %3143
    %3145 = vrot.lane.b32.xlu0 %v2954, 48
    %v3146 = vpop.permute.xlu0 %3145
    %3147 = vrot.lane.b32.xlu0 %v2955, 48
    %v3148 = vpop.permute.xlu0 %3147
    %3149 = vrot.lane.b32.xlu0 %v3118, 48
    %v3150 = vpop.permute.xlu0 %3149
    %v3151 = vunpack.c.l.b16 %v2853
    %v3152 = vunpack.c.l.b16 %v2863
    %v3153 = vpack.c.b16 %v3152, %v3151
    %3154 = vrot.lane.b32.xlu0 %v2989, 64
    %v3155 = vpop.permute.xlu0 %3154
    %3156 = vrot.lane.b32.xlu0 %v2990, 64
    %v3157 = vpop.permute.xlu0 %3156
    %3158 = vrot.lane.b32.xlu0 %v2991, 64
    %v3159 = vpop.permute.xlu0 %3158
    %3160 = vrot.lane.b32.xlu0 %v2992, 64
    %v3161 = vpop.permute.xlu0 %3160
    %3162 = vrot.lane.b32.xlu0 %v2993, 64
    %v3163 = vpop.permute.xlu0 %3162
    %3164 = vrot.lane.b32.xlu0 %v2994, 64
    %v3165 = vpop.permute.xlu0 %3164
    %3166 = vrot.lane.b32.xlu0 %v2995, 64
    %v3167 = vpop.permute.xlu0 %3166
    %3168 = vrot.lane.b32.xlu0 %v2996, 64
    %v3169 = vpop.permute.xlu0 %3168
    %3170 = vrot.lane.b32.xlu0 %v2997, 64
    %v3171 = vpop.permute.xlu0 %3170
    %3172 = vrot.lane.b32.xlu0 %v2998, 64
    %v3173 = vpop.permute.xlu0 %3172
    %3174 = vrot.lane.b32.xlu0 %v2999, 64
    %v3175 = vpop.permute.xlu0 %3174
    %3176 = vrot.lane.b32.xlu0 %v3000, 64
    %v3177 = vpop.permute.xlu0 %3176
    %3178 = vrot.lane.b32.xlu0 %v3001, 64
    %v3179 = vpop.permute.xlu0 %3178
    %3180 = vrot.lane.b32.xlu0 %v3002, 64
    %v3181 = vpop.permute.xlu0 %3180
    %3182 = vrot.lane.b32.xlu0 %v3003, 64
    %v3183 = vpop.permute.xlu0 %3182
    %3184 = vrot.lane.b32.xlu0 %v3153, 64
    %v3185 = vpop.permute.xlu0 %3184
    %v3186 = vunpack.c.l.b16 %v2870
    %v3187 = vunpack.c.l.b16 %v2873
    %v3188 = vpack.c.b16 %v3187, %v3186
    %3189 = vrot.lane.b32.xlu0 %v3069, 80
    %v3190 = vpop.permute.xlu0 %3189
    %3191 = vrot.lane.b32.xlu0 %v3070, 80
    %v3192 = vpop.permute.xlu0 %3191
    %3193 = vrot.lane.b32.xlu0 %v3071, 80
    %v3194 = vpop.permute.xlu0 %3193
    %3195 = vrot.lane.b32.xlu0 %v3072, 80
    %v3196 = vpop.permute.xlu0 %3195
    %3197 = vrot.lane.b32.xlu0 %v3073, 80
    %v3198 = vpop.permute.xlu0 %3197
    %3199 = vrot.lane.b32.xlu0 %v3074, 80
    %v3200 = vpop.permute.xlu0 %3199
    %3201 = vrot.lane.b32.xlu0 %v3075, 80
    %v3202 = vpop.permute.xlu0 %3201
    %3203 = vrot.lane.b32.xlu0 %v3076, 80
    %v3204 = vpop.permute.xlu0 %3203
    %3205 = vrot.lane.b32.xlu0 %v3077, 80
    %v3206 = vpop.permute.xlu0 %3205
    %3207 = vrot.lane.b32.xlu0 %v3078, 80
    %v3208 = vpop.permute.xlu0 %3207
    %3209 = vrot.lane.b32.xlu0 %v3079, 80
    %v3210 = vpop.permute.xlu0 %3209
    %3211 = vrot.lane.b32.xlu0 %v3080, 80
    %v3212 = vpop.permute.xlu0 %3211
    %3213 = vrot.lane.b32.xlu0 %v3081, 80
    %v3214 = vpop.permute.xlu0 %3213
    %3215 = vrot.lane.b32.xlu0 %v3082, 80
    %v3216 = vpop.permute.xlu0 %3215
    %3217 = vrot.lane.b32.xlu0 %v3083, 80
    %v3218 = vpop.permute.xlu0 %3217
    %3219 = vrot.lane.b32.xlu0 %v3188, 80
    %v3220 = vpop.permute.xlu0 %3219
    %v3221 = vunpack.c.l.b16 %v2293
    %v3222 = vunpack.c.l.b16 %v2294
    %v3223 = vpack.c.b16 %v3222, %v3221
    %3224 = vrot.lane.b32.xlu0 %v2942, 96
    %v3225 = vpop.permute.xlu0 %3224
    %3226 = vrot.lane.b32.xlu0 %v2943, 96
    %v3227 = vpop.permute.xlu0 %3226
    %3228 = vrot.lane.b32.xlu0 %v2944, 96
    %v3229 = vpop.permute.xlu0 %3228
    %3230 = vrot.lane.b32.xlu0 %v2945, 96
    %v3231 = vpop.permute.xlu0 %3230
    %3232 = vrot.lane.b32.xlu0 %v2946, 96
    %v3233 = vpop.permute.xlu0 %3232
    %3234 = vrot.lane.b32.xlu0 %v2947, 96
    %v3235 = vpop.permute.xlu0 %3234
    %3236 = vrot.lane.b32.xlu0 %v2948, 96
    %v3237 = vpop.permute.xlu0 %3236
    %3238 = vrot.lane.b32.xlu0 %v2949, 96
    %v3239 = vpop.permute.xlu0 %3238
    %3240 = vrot.lane.b32.xlu0 %v2950, 96
    %v3241 = vpop.permute.xlu0 %3240
    %3242 = vrot.lane.b32.xlu0 %v2951, 96
    %v3243 = vpop.permute.xlu0 %3242
    %3244 = vrot.lane.b32.xlu0 %v2952, 96
    %v3245 = vpop.permute.xlu0 %3244
    %3246 = vrot.lane.b32.xlu0 %v2953, 96
    %v3247 = vpop.permute.xlu0 %3246
    %3248 = vrot.lane.b32.xlu0 %v2954, 96
    %v3249 = vpop.permute.xlu0 %3248
    %3250 = vrot.lane.b32.xlu0 %v2955, 96
    %v3251 = vpop.permute.xlu0 %3250
    %3252 = vrot.lane.b32.xlu0 %v3118, 96
    %v3253 = vpop.permute.xlu0 %3252
    %3254 = vrot.lane.b32.xlu0 %v3223, 96
    %v3255 = vpop.permute.xlu0 %3254
    %v3256 = vunpack.c.l.b16 %v2887
    %v3257 = vunpack.c.l.b16 %v2897
    %v3258 = vpack.c.b16 %v3257, %v3256
    %3259 = vrot.lane.b32.xlu0 %v2990, 112
    %v3260 = vpop.permute.xlu0 %3259
    %3261 = vrot.lane.b32.xlu0 %v2991, 112
    %v3262 = vpop.permute.xlu0 %3261
    %3263 = vrot.lane.b32.xlu0 %v2992, 112
    %v3264 = vpop.permute.xlu0 %3263
    %3265 = vrot.lane.b32.xlu0 %v2993, 112
    %v3266 = vpop.permute.xlu0 %3265
    %3267 = vrot.lane.b32.xlu0 %v2994, 112
    %v3268 = vpop.permute.xlu0 %3267
    %3269 = vrot.lane.b32.xlu0 %v2995, 112
    %v3270 = vpop.permute.xlu0 %3269
    %3271 = vrot.lane.b32.xlu0 %v2996, 112
    %v3272 = vpop.permute.xlu0 %3271
    %3273 = vrot.lane.b32.xlu0 %v2997, 112
    %v3274 = vpop.permute.xlu0 %3273
    %3275 = vrot.lane.b32.xlu0 %v2998, 112
    %v3276 = vpop.permute.xlu0 %3275
    %3277 = vrot.lane.b32.xlu0 %v2999, 112
    %v3278 = vpop.permute.xlu0 %3277
    %3279 = vrot.lane.b32.xlu0 %v3000, 112
    %v3280 = vpop.permute.xlu0 %3279
    %3281 = vrot.lane.b32.xlu0 %v3001, 112
    %v3282 = vpop.permute.xlu0 %3281
    %3283 = vrot.lane.b32.xlu0 %v3002, 112
    %v3284 = vpop.permute.xlu0 %3283
    %3285 = vrot.lane.b32.xlu0 %v3003, 112
    %v3286 = vpop.permute.xlu0 %3285
    %3287 = vrot.lane.b32.xlu0 %v3153, 112
    %v3288 = vpop.permute.xlu0 %3287
    %3289 = vrot.lane.b32.xlu0 %v3258, 112
    %v3290 = vpop.permute.xlu0 %3289
    %v3291 = vunpack.c.l.b16 %v2904
    %v3292 = vunpack.c.l.b16 %v2907
    %v3293 = vpack.c.b16 %v3292, %v3291
    %v3296 = vsel %vm1283, %v2940, %v3005
    %v3299 = vsel %vm1283, %v2941, %v3007
    %v3302 = vsel %vm1283, %v2942, %v3009
    %v3305 = vsel %vm1283, %v2943, %v3011
    %v3308 = vsel %vm1283, %v2944, %v3013
    %v3311 = vsel %vm1283, %v2945, %v3015
    %v3314 = vsel %vm1283, %v2946, %v3017
    %v3317 = vsel %vm1283, %v2947, %v3019
    %v3320 = vsel %vm1283, %v2948, %v3021
    %v3323 = vsel %vm1283, %v2949, %v3023
    %v3326 = vsel %vm1283, %v2950, %v3025
    %v3329 = vsel %vm1283, %v2951, %v3027
    %v3332 = vsel %vm1283, %v2952, %v3029
    %v3335 = vsel %vm1283, %v2953, %v3031
    %v3338 = vsel %vm1283, %v2954, %v3033
    %v3341 = vsel %vm1283, %v2955, %v3035
    %v3343 = vsel %vm1415, %v3296, %v3085
    %v3345 = vsel %vm1415, %v3299, %v3087
    %v3347 = vsel %vm1415, %v3302, %v3089
    %v3349 = vsel %vm1415, %v3305, %v3091
    %v3351 = vsel %vm1415, %v3308, %v3093
    %v3353 = vsel %vm1415, %v3311, %v3095
    %v3355 = vsel %vm1415, %v3314, %v3097
    %v3357 = vsel %vm1415, %v3317, %v3099
    %v3359 = vsel %vm1415, %v3320, %v3101
    %v3361 = vsel %vm1415, %v3323, %v3103
    %v3363 = vsel %vm1415, %v3326, %v3105
    %v3365 = vsel %vm1415, %v3329, %v3107
    %v3367 = vsel %vm1415, %v3332, %v3109
    %v3369 = vsel %vm1415, %v3335, %v3111
    %v3371 = vsel %vm1415, %v3338, %v3113
    %v3373 = vsel %vm1415, %v3341, %v3115
    %vm3374 = vcmask 392192
    %v3376 = vsel %vm3374, %v3343, %v3120
    %v3378 = vsel %vm3374, %v3345, %v3122
    %v3380 = vsel %vm3374, %v3347, %v3124
    %v3382 = vsel %vm3374, %v3349, %v3126
    %v3384 = vsel %vm3374, %v3351, %v3128
    %v3386 = vsel %vm3374, %v3353, %v3130
    %v3388 = vsel %vm3374, %v3355, %v3132
    %v3390 = vsel %vm3374, %v3357, %v3134
    %v3392 = vsel %vm3374, %v3359, %v3136
    %v3394 = vsel %vm3374, %v3361, %v3138
    %v3396 = vsel %vm3374, %v3363, %v3140
    %v3398 = vsel %vm3374, %v3365, %v3142
    %v3400 = vsel %vm3374, %v3367, %v3144
    %v3402 = vsel %vm3374, %v3369, %v3146
    %v3404 = vsel %vm3374, %v3371, %v3148
    %v3406 = vsel %vm3374, %v3373, %v3150
    %vm3407 = vcmask 523264
    %v3409 = vsel %vm3407, %v3376, %v3155
    %v3411 = vsel %vm3407, %v3378, %v3157
    %v3413 = vsel %vm3407, %v3380, %v3159
    %v3415 = vsel %vm3407, %v3382, %v3161
    %v3417 = vsel %vm3407, %v3384, %v3163
    %v3419 = vsel %vm3407, %v3386, %v3165
    %v3421 = vsel %vm3407, %v3388, %v3167
    %v3423 = vsel %vm3407, %v3390, %v3169
    %v3425 = vsel %vm3407, %v3392, %v3171
    %v3427 = vsel %vm3407, %v3394, %v3173
    %v3429 = vsel %vm3407, %v3396, %v3175
    %v3431 = vsel %vm3407, %v3398, %v3177
    %v3433 = vsel %vm3407, %v3400, %v3179
    %v3435 = vsel %vm3407, %v3402, %v3181
    %v3437 = vsel %vm3407, %v3404, %v3183
    %v3439 = vsel %vm3407, %v3406, %v3185
    %vm3440 = vcmask 654336
    %v3442 = vsel %vm3440, %v3409, %v3190
    %v3444 = vsel %vm3440, %v3411, %v3192
    %v3446 = vsel %vm3440, %v3413, %v3194
    %v3448 = vsel %vm3440, %v3415, %v3196
    %v3450 = vsel %vm3440, %v3417, %v3198
    %v3452 = vsel %vm3440, %v3419, %v3200
    %v3454 = vsel %vm3440, %v3421, %v3202
    %v3456 = vsel %vm3440, %v3423, %v3204
    %v3458 = vsel %vm3440, %v3425, %v3206
    %v3460 = vsel %vm3440, %v3427, %v3208
    %v3462 = vsel %vm3440, %v3429, %v3210
    %v3464 = vsel %vm3440, %v3431, %v3212
    %v3466 = vsel %vm3440, %v3433, %v3214
    %v3468 = vsel %vm3440, %v3435, %v3216
    %v3470 = vsel %vm3440, %v3437, %v3218
    %v3472 = vsel %vm3440, %v3439, %v3220
    %vm3473 = vcmask 785408
    %v3475 = vsel %vm3473, %v3442, %v3225
    %v3477 = vsel %vm3473, %v3444, %v3227
    %v3479 = vsel %vm3473, %v3446, %v3229
    %v3481 = vsel %vm3473, %v3448, %v3231
    %v3483 = vsel %vm3473, %v3450, %v3233
    %v3485 = vsel %vm3473, %v3452, %v3235
    %v3487 = vsel %vm3473, %v3454, %v3237
    %v3489 = vsel %vm3473, %v3456, %v3239
    %v3491 = vsel %vm3473, %v3458, %v3241
    %v3493 = vsel %vm3473, %v3460, %v3243
    %v3495 = vsel %vm3473, %v3462, %v3245
    %v3497 = vsel %vm3473, %v3464, %v3247
    %v3499 = vsel %vm3473, %v3466, %v3249
    %v3501 = vsel %vm3473, %v3468, %v3251
    %v3503 = vsel %vm3473, %v3470, %v3253
    %v3505 = vsel %vm3473, %v3472, %v3255
    %vm3506 = vcmask 916480
    %v3508 = vsel %vm3506, %v3475, %v3260
    %v3511 = vsel %vm3506, %v3477, %v3262
    %v3514 = vsel %vm3506, %v3479, %v3264
    %v3517 = vsel %vm3506, %v3481, %v3266
    %v3520 = vsel %vm3506, %v3483, %v3268
    %v3523 = vsel %vm3506, %v3485, %v3270
    %v3526 = vsel %vm3506, %v3487, %v3272
    %v3529 = vsel %vm3506, %v3489, %v3274
    %v3532 = vsel %vm3506, %v3491, %v3276
    %v3535 = vsel %vm3506, %v3493, %v3278
    %v3538 = vsel %vm3506, %v3495, %v3280
    %v3541 = vsel %vm3506, %v3497, %v3282
    %v3544 = vsel %vm3506, %v3499, %v3284
    %v3547 = vsel %vm3506, %v3501, %v3286
    %v3550 = vsel %vm3506, %v3503, %v3288
    %v3553 = vsel %vm3506, %v3505, %v3290
    %v3555 = vld [vmem:[%s3] sm:$0xf]
    %v3556 = vld [vmem:[%s3 + $0x4] sm:$0xf]
    %v3557 = vld [vmem:[%s3 + $0x8] sm:$0xf]
    %v3558 = vld [vmem:[%s3 + $0xc] sm:$0xf]
    %v3559 = vld [vmem:[%s3 + $0x10] sm:$0xf]
    %v3560 = vld [vmem:[%s3 + $0x14] sm:$0xf]
    %v3561 = vld [vmem:[%s3 + $0x18] sm:$0xf]
    %v3562 = vld [vmem:[%s3 + $0x1c] sm:$0xf]
    %v3563 = vld [vmem:[%s3 + $0x20] sm:$0xf]
    %v3564 = vld [vmem:[%s3 + $0x24] sm:$0xf]
    %v3565 = vld [vmem:[%s3 + $0x28] sm:$0xf]
    %v3566 = vld [vmem:[%s3 + $0x2c] sm:$0xf]
    %v3567 = vld [vmem:[%s3 + $0x30] sm:$0xf]
    %v3568 = vld [vmem:[%s3 + $0x34] sm:$0xf]
    %v3569 = vld [vmem:[%s3 + $0x38] sm:$0xf]
    %v3570 = vld [vmem:[%s3 + $0x3c] sm:$0xf]
    %v3571 = vld [vmem:[%s3 + $0x40] sm:$0xf]
    %v3572 = vld [vmem:[%s3 + $0x44] sm:$0xf]
    %v3573 = vld [vmem:[%s4] sm:$0x1]
    %v3575 = vlaneseq
    %v3576 = vshrl.u32 %v3575, 7
    %v3577 = vsub.s32 0, %v3576
    %v3578 = vrot.slane %v3573, %v3577
    %v3598 = vunpack.c.l.b16 %v3555
    %v3599 = vunpack.c.l.b16 %v3556
    %v3600 = vunpack.c.l.b16 %v3557
    %v3601 = vunpack.c.l.b16 %v3558
    %v3602 = vunpack.c.l.b16 %v3559
    %v3603 = vunpack.c.l.b16 %v3560
    %v3604 = vunpack.c.l.b16 %v3561
    %v3605 = vunpack.c.l.b16 %v3562
    %v3606 = vunpack.c.l.b16 %v3563
    %v3607 = vunpack.c.l.b16 %v3564
    %v3608 = vunpack.c.l.b16 %v3565
    %v3609 = vunpack.c.l.b16 %v3566
    %v3610 = vunpack.c.l.b16 %v3567
    %v3611 = vunpack.c.l.b16 %v3568
    %v3612 = vunpack.c.l.b16 %v3569
    %v3613 = vunpack.c.l.b16 %v3570
    %v3614 = vunpack.c.l.b16 %v3571
    %v3615 = vunpack.c.l.b16 %v3572
    %v3616 = vpack.c.b16 %v3599, %v3598
    %v3617 = vpack.c.b16 %v3601, %v3600
    %v3618 = vpack.c.b16 %v3603, %v3602
    %v3619 = vpack.c.b16 %v3605, %v3604
    %v3620 = vpack.c.b16 %v3607, %v3606
    %v3621 = vpack.c.b16 %v3609, %v3608
    %v3622 = vpack.c.b16 %v3611, %v3610
    %v3623 = vpack.c.b16 %v3613, %v3612
    %v3624 = vpack.c.b16 %v3615, %v3614
    %v3635 = vsel %vm1283, %v3070, 0
    %v3638 = vsel %vm1283, %v3071, 0
    %v3641 = vsel %vm1283, %v3072, 0
    %v3644 = vsel %vm1283, %v3073, 0
    %v3647 = vsel %vm1283, %v3074, 0
    %v3650 = vsel %vm1283, %v3075, 0
    %v3653 = vsel %vm1283, %v3076, 0
    %v3656 = vsel %vm1283, %v3077, 0
    %v3659 = vsel %vm1283, %v3078, 0
    %v3662 = vsel %vm1283, %v3079, 0
    %v3665 = vsel %vm1283, %v3080, 0
    %v3668 = vsel %vm1283, %v3081, 0
    %v3671 = vsel %vm1283, %v3082, 0
    %v3674 = vsel %vm1283, %v3083, 0
    %v3677 = vsel %vm1283, %v3188, 0
    %v3680 = vsel %vm1283, %v3293, 0
    %3682 = vmatprep.subr.bf16.mxu0 0
    %3683 = vmatpush1.bf16.msra.mxu0 %v3623
    %3684 = vmatprep.subr.bf16.mxu0 0
    %3685 = vmatpush1.bf16.msra.mxu0 %v3622
    %3686 = vmatprep.subr.bf16.mxu0 0
    %3687 = vmatpush1.bf16.msra.mxu0 %v3621
    %3688 = vmatprep.subr.bf16.mxu0 0
    %3689 = vmatpush1.bf16.msra.mxu0 %v3620
    %3690 = vmatprep.subr.bf16.mxu0 0
    %3691 = vmatpush1.bf16.msra.mxu0 %v3619
    %3692 = vmatprep.subr.bf16.mxu0 0
    %3693 = vmatpush1.bf16.msra.mxu0 %v3618
    %3694 = vmatprep.subr.bf16.mxu0 0
    %3695 = vmatpush1.bf16.msra.mxu0 %v3617
    %3696 = vmatprep.subr.bf16.mxu0 0
    %3697 = vmatpush1.bf16.msra.mxu0 %v3616
    %3698 = vmatprep.subr.bf16.mxu0 0
    %3699 = vmatpush2.bf16.msra.mxu0 0
    %3700 = vmatprep.subr.bf16.mxu0 0
    %3701 = vmatpush2.bf16.msra.mxu0 0
    %3702 = vmatprep.subr.bf16.mxu0 0
    %3703 = vmatpush2.bf16.msra.mxu0 0
    %3704 = vmatprep.subr.bf16.mxu0 0
    %3705 = vmatpush2.bf16.msra.mxu0 0
    %3706 = vmatprep.subr.bf16.mxu0 0
    %3707 = vmatpush2.bf16.msra.mxu0 0
    %3708 = vmatprep.subr.bf16.mxu0 0
    %3709 = vmatpush2.bf16.msra.mxu0 0
    %3710 = vmatprep.subr.bf16.mxu0 0
    %3711 = vmatpush2.bf16.msra.mxu0 0
    %3712 = vmatprep.subr.bf16.mxu0 0
    %3713 = vmatpush2.bf16.msra.mxu0 %v3624
    %3714 = vmatprep.mubr.bf16.mxu0 %v3635
    %3715 = vmatmul.mubr.bf16.gmra.mxu0 %v3508
    %v3716 = vpop.f32.mrf.mxu0
    %v3717 = vadd.f32 %v3578, %v3716
    %v3718 = vpop.f32.mrf.mxu0
    %v3719 = vpop.f32.mrf.mxu0
    %v3720 = vadd.f32 %v3578, %v3719
    %v3721 = vpop.f32.mrf.mxu0
    %3722 = vmatprep.mubr.bf16.mxu0 %v3638
    %3723 = vmatmul.mubr.bf16.gmra.mxu0 %v3511
    %v3724 = vpop.f32.mrf.mxu0
    %v3725 = vadd.f32 %v3578, %v3724
    %v3726 = vpop.f32.mrf.mxu0
    %v3727 = vpop.f32.mrf.mxu0
    %v3728 = vadd.f32 %v3578, %v3727
    %v3729 = vpop.f32.mrf.mxu0
    %3730 = vmatprep.mubr.bf16.mxu0 %v3641
    %3731 = vmatmul.mubr.bf16.gmra.mxu0 %v3514
    %v3732 = vpop.f32.mrf.mxu0
    %v3733 = vadd.f32 %v3578, %v3732
    %v3734 = vpop.f32.mrf.mxu0
    %v3735 = vpop.f32.mrf.mxu0
    %v3736 = vadd.f32 %v3578, %v3735
    %v3737 = vpop.f32.mrf.mxu0
    %3738 = vmatprep.mubr.bf16.mxu0 %v3644
    %3739 = vmatmul.mubr.bf16.gmra.mxu0 %v3517
    %v3740 = vpop.f32.mrf.mxu0
    %v3741 = vadd.f32 %v3578, %v3740
    %v3742 = vpop.f32.mrf.mxu0
    %v3743 = vpop.f32.mrf.mxu0
    %v3744 = vadd.f32 %v3578, %v3743
    %v3745 = vpop.f32.mrf.mxu0
    %3746 = vmatprep.mubr.bf16.mxu0 %v3647
    %3747 = vmatmul.mubr.bf16.gmra.mxu0 %v3520
    %v3748 = vpop.f32.mrf.mxu0
    %v3749 = vadd.f32 %v3578, %v3748
    %v3750 = vpop.f32.mrf.mxu0
    %v3751 = vpop.f32.mrf.mxu0
    %v3752 = vadd.f32 %v3578, %v3751
    %v3753 = vpop.f32.mrf.mxu0
    %3754 = vmatprep.mubr.bf16.mxu0 %v3650
    %3755 = vmatmul.mubr.bf16.gmra.mxu0 %v3523
    %v3756 = vpop.f32.mrf.mxu0
    %v3757 = vadd.f32 %v3578, %v3756
    %v3758 = vpop.f32.mrf.mxu0
    %v3759 = vpop.f32.mrf.mxu0
    %v3760 = vadd.f32 %v3578, %v3759
    %v3761 = vpop.f32.mrf.mxu0
    %3762 = vmatprep.mubr.bf16.mxu0 %v3653
    %3763 = vmatmul.mubr.bf16.gmra.mxu0 %v3526
    %v3764 = vpop.f32.mrf.mxu0
    %v3765 = vadd.f32 %v3578, %v3764
    %v3766 = vpop.f32.mrf.mxu0
    %v3767 = vpop.f32.mrf.mxu0
    %v3768 = vadd.f32 %v3578, %v3767
    %v3769 = vpop.f32.mrf.mxu0
    %3770 = vmatprep.mubr.bf16.mxu0 %v3656
    %3771 = vmatmul.mubr.bf16.gmra.mxu0 %v3529
    %v3772 = vpop.f32.mrf.mxu0
    %v3773 = vadd.f32 %v3578, %v3772
    %v3774 = vpop.f32.mrf.mxu0
    %v3775 = vpop.f32.mrf.mxu0
    %v3776 = vadd.f32 %v3578, %v3775
    %v3777 = vpop.f32.mrf.mxu0
    %3778 = vmatprep.mubr.bf16.mxu0 %v3659
    %3779 = vmatmul.mubr.bf16.gmra.mxu0 %v3532
    %v3780 = vpop.f32.mrf.mxu0
    %v3781 = vadd.f32 %v3578, %v3780
    %v3782 = vpop.f32.mrf.mxu0
    %v3783 = vpop.f32.mrf.mxu0
    %v3784 = vadd.f32 %v3578, %v3783
    %v3785 = vpop.f32.mrf.mxu0
    %3786 = vmatprep.mubr.bf16.mxu0 %v3662
    %3787 = vmatmul.mubr.bf16.gmra.mxu0 %v3535
    %v3788 = vpop.f32.mrf.mxu0
    %v3789 = vadd.f32 %v3578, %v3788
    %v3790 = vpop.f32.mrf.mxu0
    %v3791 = vpop.f32.mrf.mxu0
    %v3792 = vadd.f32 %v3578, %v3791
    %v3793 = vpop.f32.mrf.mxu0
    %3794 = vmatprep.mubr.bf16.mxu0 %v3665
    %3795 = vmatmul.mubr.bf16.gmra.mxu0 %v3538
    %v3796 = vpop.f32.mrf.mxu0
    %v3797 = vadd.f32 %v3578, %v3796
    %v3798 = vpop.f32.mrf.mxu0
    %v3799 = vpop.f32.mrf.mxu0
    %v3800 = vadd.f32 %v3578, %v3799
    %v3801 = vpop.f32.mrf.mxu0
    %3802 = vmatprep.mubr.bf16.mxu0 %v3668
    %3803 = vmatmul.mubr.bf16.gmra.mxu0 %v3541
    %v3804 = vpop.f32.mrf.mxu0
    %v3805 = vadd.f32 %v3578, %v3804
    %v3806 = vpop.f32.mrf.mxu0
    %v3807 = vpop.f32.mrf.mxu0
    %v3808 = vadd.f32 %v3578, %v3807
    %v3809 = vpop.f32.mrf.mxu0
    %3810 = vmatprep.mubr.bf16.mxu0 %v3671
    %3811 = vmatmul.mubr.bf16.gmra.mxu0 %v3544
    %v3812 = vpop.f32.mrf.mxu0
    %v3813 = vadd.f32 %v3578, %v3812
    %v3814 = vpop.f32.mrf.mxu0
    %v3815 = vpop.f32.mrf.mxu0
    %v3816 = vadd.f32 %v3578, %v3815
    %v3817 = vpop.f32.mrf.mxu0
    %3818 = vmatprep.mubr.bf16.mxu0 %v3674
    %3819 = vmatmul.mubr.bf16.gmra.mxu0 %v3547
    %v3820 = vpop.f32.mrf.mxu0
    %v3821 = vadd.f32 %v3578, %v3820
    %v3822 = vpop.f32.mrf.mxu0
    %v3823 = vpop.f32.mrf.mxu0
    %v3824 = vadd.f32 %v3578, %v3823
    %v3825 = vpop.f32.mrf.mxu0
    %3826 = vmatprep.mubr.bf16.mxu0 %v3677
    %3827 = vmatmul.mubr.bf16.gmra.mxu0 %v3550
    %v3828 = vpop.f32.mrf.mxu0
    %v3829 = vadd.f32 %v3578, %v3828
    %v3830 = vpop.f32.mrf.mxu0
    %v3831 = vpop.f32.mrf.mxu0
    %v3832 = vadd.f32 %v3578, %v3831
    %v3833 = vpop.f32.mrf.mxu0
    %3834 = vmatprep.mubr.bf16.mxu0 %v3680
    %3835 = vmatmul.mubr.bf16.gmra.mxu0 %v3553
    %v3836 = vpop.f32.mrf.mxu0
    %v3837 = vadd.f32 %v3578, %v3836
    %v3838 = vpop.f32.mrf.mxu0
    %v3839 = vpop.f32.mrf.mxu0
    %v3840 = vadd.f32 %v3578, %v3839
    %v3841 = vpop.f32.mrf.mxu0
    %3842 = vdwg.mxu0
    %v3843 = vmax.f32 %v3717, 0.0
    %v3844 = vmax.f32 %v3720, 0.0
    %v3845 = vmax.f32 %v3725, 0.0
    %v3846 = vmax.f32 %v3728, 0.0
    %v3847 = vmax.f32 %v3733, 0.0
    %v3848 = vmax.f32 %v3736, 0.0
    %v3849 = vmax.f32 %v3741, 0.0
    %v3850 = vmax.f32 %v3744, 0.0
    %v3851 = vmax.f32 %v3749, 0.0
    %v3852 = vmax.f32 %v3752, 0.0
    %v3853 = vmax.f32 %v3757, 0.0
    %v3854 = vmax.f32 %v3760, 0.0
    %v3855 = vmax.f32 %v3765, 0.0
    %v3856 = vmax.f32 %v3768, 0.0
    %v3857 = vmax.f32 %v3773, 0.0
    %v3858 = vmax.f32 %v3776, 0.0
    %v3859 = vmax.f32 %v3781, 0.0
    %v3860 = vmax.f32 %v3784, 0.0
    %v3861 = vmax.f32 %v3789, 0.0
    %v3862 = vmax.f32 %v3792, 0.0
    %v3863 = vmax.f32 %v3797, 0.0
    %v3864 = vmax.f32 %v3800, 0.0
    %v3865 = vmax.f32 %v3805, 0.0
    %v3866 = vmax.f32 %v3808, 0.0
    %v3867 = vmax.f32 %v3813, 0.0
    %v3868 = vmax.f32 %v3816, 0.0
    %v3869 = vmax.f32 %v3821, 0.0
    %v3870 = vmax.f32 %v3824, 0.0
    %v3871 = vmax.f32 %v3829, 0.0
    %v3872 = vmax.f32 %v3832, 0.0
    %v3873 = vmax.f32 %v3837, 0.0
    %v3874 = vmax.f32 %v3840, 0.0
    %v3875 = vadd.f32 %v3843, %v3844
    %v3876 = vadd.f32 %v3875, %v3845
    %v3877 = vadd.f32 %v3876, %v3846
    %v3878 = vadd.f32 %v3877, %v3847
    %v3879 = vadd.f32 %v3878, %v3848
    %v3880 = vadd.f32 %v3879, %v3849
    %v3881 = vadd.f32 %v3880, %v3850
    %v3882 = vadd.f32 %v3881, %v3851
    %v3883 = vadd.f32 %v3882, %v3852
    %v3884 = vadd.f32 %v3883, %v3853
    %v3885 = vadd.f32 %v3884, %v3854
    %v3886 = vadd.f32 %v3885, %v3855
    %v3887 = vadd.f32 %v3886, %v3856
    %v3888 = vadd.f32 %v3887, %v3857
    %v3889 = vadd.f32 %v3888, %v3858
    %v3890 = vadd.f32 %v3889, %v3859
    %v3891 = vadd.f32 %v3890, %v3860
    %v3892 = vadd.f32 %v3891, %v3861
    %v3893 = vadd.f32 %v3892, %v3862
    %v3894 = vadd.f32 %v3893, %v3863
    %v3895 = vadd.f32 %v3894, %v3864
    %v3896 = vadd.f32 %v3895, %v3865
    %v3897 = vadd.f32 %v3896, %v3866
    %v3898 = vadd.f32 %v3897, %v3867
    %v3899 = vadd.f32 %v3898, %v3868
    %v3900 = vadd.f32 %v3899, %v3869
    %v3901 = vadd.f32 %v3900, %v3870
    %v3902 = vadd.f32 %v3901, %v3871
    %v3903 = vadd.f32 %v3902, %v3872
    %v3904 = vadd.f32 %v3903, %v3873
    %v3905 = vadd.f32 %v3904, %v3874
    %v3906 = vrot.slane %v3905, 4
    %v3907 = vadd.f32 %v3905, %v3906
    %v3908 = vrot.slane %v3907, 2
    %v3909 = vadd.f32 %v3907, %v3908
    %v3910 = vrot.slane %v3909, 1
    %v3911 = vadd.f32 %v3909, %v3910
    %v3912 = vmul.f32 %v3911, 0.00390625
    %v3913 = vmul.f32 %v3912, %v3912
    %3914 = vadd.xlane.f32.xlu0 %v3913
    %v3915 = vpop.xlane.xlu0 %3914
    %v3916 = vmax.f32 %v3915, 1e-24
    %v3917 = vrsqrt.pop %v3916
    %v3918 = vmul.f32 %v3912, %v3917
    %s3919 = scalar_lea.vmem %s0, 216
    %v3920 = vld [vmem:[%s3919] sm:$0xf]
    %v3921 = vld [vmem:[%s3919 + $0x4] sm:$0xf]
    %v3922 = vld [vmem:[%s3919 + $0x8] sm:$0x1]
    %v3923 = vld [vmem:[%s3919 + $0xc] sm:$0xf]
    %v3924 = vld [vmem:[%s3919 + $0x10] sm:$0xf]
    %v3925 = vld [vmem:[%s3919 + $0x14] sm:$0x1]
    %v3926 = vld [vmem:[%s3919 + $0x18] sm:$0xf]
    %v3927 = vld [vmem:[%s3919 + $0x1c] sm:$0xf]
    %v3928 = vld [vmem:[%s3919 + $0x20] sm:$0x1]
    %v3929 = vld [vmem:[%s3919 + $0x24] sm:$0xf]
    %v3930 = vld [vmem:[%s3919 + $0x28] sm:$0xf]
    %v3931 = vld [vmem:[%s3919 + $0x2c] sm:$0x1]
    %v3932 = vld [vmem:[%s3919 + $0x30] sm:$0xf]
    %v3933 = vld [vmem:[%s3919 + $0x34] sm:$0xf]
    %v3934 = vld [vmem:[%s3919 + $0x38] sm:$0x1]
    %v3935 = vld [vmem:[%s3919 + $0x3c] sm:$0xf]
    %v3936 = vld [vmem:[%s3919 + $0x40] sm:$0xf]
    %v3937 = vld [vmem:[%s3919 + $0x44] sm:$0x1]
    %v3938 = vld [vmem:[%s3919 + $0x48] sm:$0xf]
    %v3939 = vld [vmem:[%s3919 + $0x4c] sm:$0xf]
    %v3940 = vld [vmem:[%s3919 + $0x50] sm:$0x1]
    %v3941 = vld [vmem:[%s3919 + $0x54] sm:$0xf]
    %v3942 = vld [vmem:[%s3919 + $0x58] sm:$0xf]
    %v3943 = vld [vmem:[%s3919 + $0x5c] sm:$0x1]
    %v3944 = vld [vmem:[%s3919 + $0x60] sm:$0xf]
    %v3945 = vld [vmem:[%s3919 + $0x64] sm:$0xf]
    %v3946 = vld [vmem:[%s3919 + $0x68] sm:$0x1]
    %v3947 = vld [vmem:[%s3919 + $0x6c] sm:$0xf]
    %v3948 = vld [vmem:[%s3919 + $0x70] sm:$0xf]
    %v3949 = vld [vmem:[%s3919 + $0x74] sm:$0x1]
    %v3950 = vld [vmem:[%s3919 + $0x78] sm:$0xf]
    %v3951 = vld [vmem:[%s3919 + $0x7c] sm:$0xf]
    %v3952 = vld [vmem:[%s3919 + $0x80] sm:$0x1]
    %v3953 = vld [vmem:[%s3919 + $0x84] sm:$0xf]
    %v3954 = vld [vmem:[%s3919 + $0x88] sm:$0xf]
    %v3955 = vld [vmem:[%s3919 + $0x8c] sm:$0x1]
    %v3956 = vld [vmem:[%s3919 + $0x90] sm:$0xf]
    %v3957 = vld [vmem:[%s3919 + $0x94] sm:$0xf]
    %v3958 = vld [vmem:[%s3919 + $0x98] sm:$0x1]
    %v3959 = vld [vmem:[%s3919 + $0x9c] sm:$0xf]
    %v3960 = vld [vmem:[%s3919 + $0xa0] sm:$0xf]
    %v3961 = vld [vmem:[%s3919 + $0xa4] sm:$0x1]
    %v3962 = vld [vmem:[%s3919 + $0xa8] sm:$0xf]
    %v3963 = vld [vmem:[%s3919 + $0xac] sm:$0xf]
    %v3964 = vld [vmem:[%s3919 + $0xb0] sm:$0x1]
    %v3965 = vld [vmem:[%s3919 + $0xb4] sm:$0xf]
    %v3966 = vld [vmem:[%s3919 + $0xb8] sm:$0xf]
    %v3967 = vld [vmem:[%s3919 + $0xbc] sm:$0x1]
    %v3968 = vld [vmem:[%s3919 + $0xc0] sm:$0xf]
    %v3969 = vld [vmem:[%s3919 + $0xc4] sm:$0xf]
    %v3970 = vld [vmem:[%s3919 + $0xc8] sm:$0x1]
    %v3971 = vld [vmem:[%s3919 + $0xcc] sm:$0xf]
    %v3972 = vld [vmem:[%s3919 + $0xd0] sm:$0xf]
    %v3973 = vld [vmem:[%s3919 + $0xd4] sm:$0x1]
    %v3975 = vshrl.u32 %v3920, 16
    %v3977 = vrot.slane %v3975, 4
    %v3978 = vshll.u32 %v3920, 16
    %v3980 = vrot.slane %v3978, 5
    %v3981 = vor.u32 %v3977, %v3980
    %v3982 = vrot.slane %v3981, 4
    %v3984 = vshll.u32 %v3921, 16
    %v3986 = vrot.slane %v3984, 5
    %v3987 = vsel %vm134, %v3982, %v3986
    %v3988 = vshrl.u32 %v3921, 16
    %v3990 = vrot.slane %v3988, 4
    %v3991 = vor.u32 %v3990, %v3986
    %v3992 = vrot.slane %v3991, 4
    %v3994 = vshll.u32 %v3922, 16
    %v3996 = vrot.slane %v3994, 5
    %v3997 = vsel %vm134, %v3992, %v3996
    %v3999 = vshrl.u32 %v3923, 16
    %v4001 = vrot.slane %v3999, 4
    %v4002 = vshll.u32 %v3923, 16
    %v4004 = vrot.slane %v4002, 5
    %v4005 = vor.u32 %v4001, %v4004
    %v4006 = vrot.slane %v4005, 4
    %v4008 = vshll.u32 %v3924, 16
    %v4010 = vrot.slane %v4008, 5
    %v4011 = vsel %vm134, %v4006, %v4010
    %v4012 = vshrl.u32 %v3924, 16
    %v4014 = vrot.slane %v4012, 4
    %v4015 = vor.u32 %v4014, %v4010
    %v4016 = vrot.slane %v4015, 4
    %v4018 = vshll.u32 %v3925, 16
    %v4020 = vrot.slane %v4018, 5
    %v4021 = vsel %vm134, %v4016, %v4020
    %v4023 = vshrl.u32 %v3926, 16
    %v4025 = vrot.slane %v4023, 4
    %v4026 = vshll.u32 %v3926, 16
    %v4028 = vrot.slane %v4026, 5
    %v4029 = vor.u32 %v4025, %v4028
    %v4030 = vrot.slane %v4029, 4
    %v4032 = vshll.u32 %v3927, 16
    %v4034 = vrot.slane %v4032, 5
    %v4035 = vsel %vm134, %v4030, %v4034
    %v4036 = vshrl.u32 %v3927, 16
    %v4038 = vrot.slane %v4036, 4
    %v4039 = vor.u32 %v4038, %v4034
    %v4040 = vrot.slane %v4039, 4
    %v4042 = vshll.u32 %v3928, 16
    %v4044 = vrot.slane %v4042, 5
    %v4045 = vsel %vm134, %v4040, %v4044
    %v4047 = vshrl.u32 %v3929, 16
    %v4049 = vrot.slane %v4047, 4
    %v4050 = vshll.u32 %v3929, 16
    %v4052 = vrot.slane %v4050, 5
    %v4053 = vor.u32 %v4049, %v4052
    %v4054 = vrot.slane %v4053, 4
    %v4056 = vshll.u32 %v3930, 16
    %v4058 = vrot.slane %v4056, 5
    %v4059 = vsel %vm134, %v4054, %v4058
    %v4060 = vshrl.u32 %v3930, 16
    %v4062 = vrot.slane %v4060, 4
    %v4063 = vor.u32 %v4062, %v4058
    %v4064 = vrot.slane %v4063, 4
    %v4066 = vshll.u32 %v3931, 16
    %v4068 = vrot.slane %v4066, 5
    %v4069 = vsel %vm134, %v4064, %v4068
    %v4071 = vshrl.u32 %v3932, 16
    %v4073 = vrot.slane %v4071, 4
    %v4074 = vshll.u32 %v3932, 16
    %v4076 = vrot.slane %v4074, 5
    %v4077 = vor.u32 %v4073, %v4076
    %v4078 = vrot.slane %v4077, 4
    %v4080 = vshll.u32 %v3933, 16
    %v4082 = vrot.slane %v4080, 5
    %v4083 = vsel %vm134, %v4078, %v4082
    %v4084 = vshrl.u32 %v3933, 16
    %v4086 = vrot.slane %v4084, 4
    %v4087 = vor.u32 %v4086, %v4082
    %v4088 = vrot.slane %v4087, 4
    %v4090 = vshll.u32 %v3934, 16
    %v4092 = vrot.slane %v4090, 5
    %v4093 = vsel %vm134, %v4088, %v4092
    %v4095 = vshrl.u32 %v3935, 16
    %v4097 = vrot.slane %v4095, 4
    %v4098 = vshll.u32 %v3935, 16
    %v4100 = vrot.slane %v4098, 5
    %v4101 = vor.u32 %v4097, %v4100
    %v4102 = vrot.slane %v4101, 4
    %v4104 = vshll.u32 %v3936, 16
    %v4106 = vrot.slane %v4104, 5
    %v4107 = vsel %vm134, %v4102, %v4106
    %v4108 = vshrl.u32 %v3936, 16
    %v4110 = vrot.slane %v4108, 4
    %v4111 = vor.u32 %v4110, %v4106
    %v4112 = vrot.slane %v4111, 4
    %v4114 = vshll.u32 %v3937, 16
    %v4116 = vrot.slane %v4114, 5
    %v4117 = vsel %vm134, %v4112, %v4116
    %v4119 = vshrl.u32 %v3938, 16
    %v4121 = vrot.slane %v4119, 4
    %v4122 = vshll.u32 %v3938, 16
    %v4124 = vrot.slane %v4122, 5
    %v4125 = vor.u32 %v4121, %v4124
    %v4126 = vrot.slane %v4125, 4
    %v4128 = vshll.u32 %v3939, 16
    %v4130 = vrot.slane %v4128, 5
    %v4131 = vsel %vm134, %v4126, %v4130
    %v4132 = vshrl.u32 %v3939, 16
    %v4134 = vrot.slane %v4132, 4
    %v4135 = vor.u32 %v4134, %v4130
    %v4136 = vrot.slane %v4135, 4
    %v4138 = vshll.u32 %v3940, 16
    %v4140 = vrot.slane %v4138, 5
    %v4141 = vsel %vm134, %v4136, %v4140
    %v4143 = vshrl.u32 %v3941, 16
    %v4145 = vrot.slane %v4143, 4
    %v4146 = vshll.u32 %v3941, 16
    %v4148 = vrot.slane %v4146, 5
    %v4149 = vor.u32 %v4145, %v4148
    %v4150 = vrot.slane %v4149, 4
    %v4152 = vshll.u32 %v3942, 16
    %v4154 = vrot.slane %v4152, 5
    %v4155 = vsel %vm134, %v4150, %v4154
    %v4156 = vshrl.u32 %v3942, 16
    %v4158 = vrot.slane %v4156, 4
    %v4159 = vor.u32 %v4158, %v4154
    %v4160 = vrot.slane %v4159, 4
    %v4162 = vshll.u32 %v3943, 16
    %v4164 = vrot.slane %v4162, 5
    %v4165 = vsel %vm134, %v4160, %v4164
    %v4167 = vshrl.u32 %v3944, 16
    %v4169 = vrot.slane %v4167, 4
    %v4170 = vshll.u32 %v3944, 16
    %v4172 = vrot.slane %v4170, 5
    %v4173 = vor.u32 %v4169, %v4172
    %v4174 = vrot.slane %v4173, 4
    %v4176 = vshll.u32 %v3945, 16
    %v4178 = vrot.slane %v4176, 5
    %v4179 = vsel %vm134, %v4174, %v4178
    %v4180 = vshrl.u32 %v3945, 16
    %v4182 = vrot.slane %v4180, 4
    %v4183 = vor.u32 %v4182, %v4178
    %v4184 = vrot.slane %v4183, 4
    %v4186 = vshll.u32 %v3946, 16
    %v4188 = vrot.slane %v4186, 5
    %v4189 = vsel %vm134, %v4184, %v4188
    %v4191 = vshrl.u32 %v3947, 16
    %v4193 = vrot.slane %v4191, 4
    %v4194 = vshll.u32 %v3947, 16
    %v4196 = vrot.slane %v4194, 5
    %v4197 = vor.u32 %v4193, %v4196
    %v4198 = vrot.slane %v4197, 4
    %v4200 = vshll.u32 %v3948, 16
    %v4202 = vrot.slane %v4200, 5
    %v4203 = vsel %vm134, %v4198, %v4202
    %v4204 = vshrl.u32 %v3948, 16
    %v4206 = vrot.slane %v4204, 4
    %v4207 = vor.u32 %v4206, %v4202
    %v4208 = vrot.slane %v4207, 4
    %v4210 = vshll.u32 %v3949, 16
    %v4212 = vrot.slane %v4210, 5
    %v4213 = vsel %vm134, %v4208, %v4212
    %v4215 = vshrl.u32 %v3950, 16
    %v4217 = vrot.slane %v4215, 4
    %v4218 = vshll.u32 %v3950, 16
    %v4220 = vrot.slane %v4218, 5
    %v4221 = vor.u32 %v4217, %v4220
    %v4222 = vrot.slane %v4221, 4
    %v4224 = vshll.u32 %v3951, 16
    %v4226 = vrot.slane %v4224, 5
    %v4227 = vsel %vm134, %v4222, %v4226
    %v4228 = vshrl.u32 %v3951, 16
    %v4230 = vrot.slane %v4228, 4
    %v4231 = vor.u32 %v4230, %v4226
    %v4232 = vrot.slane %v4231, 4
    %v4234 = vshll.u32 %v3952, 16
    %v4236 = vrot.slane %v4234, 5
    %v4237 = vsel %vm134, %v4232, %v4236
    %v4239 = vshrl.u32 %v3953, 16
    %v4241 = vrot.slane %v4239, 4
    %v4242 = vshll.u32 %v3953, 16
    %v4244 = vrot.slane %v4242, 5
    %v4245 = vor.u32 %v4241, %v4244
    %v4246 = vrot.slane %v4245, 4
    %v4248 = vshll.u32 %v3954, 16
    %v4250 = vrot.slane %v4248, 5
    %v4251 = vsel %vm134, %v4246, %v4250
    %v4252 = vshrl.u32 %v3954, 16
    %v4254 = vrot.slane %v4252, 4
    %v4255 = vor.u32 %v4254, %v4250
    %v4256 = vrot.slane %v4255, 4
    %v4258 = vshll.u32 %v3955, 16
    %v4260 = vrot.slane %v4258, 5
    %v4261 = vsel %vm134, %v4256, %v4260
    %v4263 = vshrl.u32 %v3956, 16
    %v4265 = vrot.slane %v4263, 4
    %v4266 = vshll.u32 %v3956, 16
    %v4268 = vrot.slane %v4266, 5
    %v4269 = vor.u32 %v4265, %v4268
    %v4270 = vrot.slane %v4269, 4
    %v4272 = vshll.u32 %v3957, 16
    %v4274 = vrot.slane %v4272, 5
    %v4275 = vsel %vm134, %v4270, %v4274
    %v4276 = vshrl.u32 %v3957, 16
    %v4278 = vrot.slane %v4276, 4
    %v4279 = vor.u32 %v4278, %v4274
    %v4280 = vrot.slane %v4279, 4
    %v4282 = vshll.u32 %v3958, 16
    %v4284 = vrot.slane %v4282, 5
    %v4285 = vsel %vm134, %v4280, %v4284
    %v4287 = vshrl.u32 %v3959, 16
    %v4289 = vrot.slane %v4287, 4
    %v4290 = vshll.u32 %v3959, 16
    %v4292 = vrot.slane %v4290, 5
    %v4293 = vor.u32 %v4289, %v4292
    %v4294 = vrot.slane %v4293, 4
    %v4296 = vshll.u32 %v3960, 16
    %v4298 = vrot.slane %v4296, 5
    %v4299 = vsel %vm134, %v4294, %v4298
    %v4300 = vshrl.u32 %v3960, 16
    %v4302 = vrot.slane %v4300, 4
    %v4303 = vor.u32 %v4302, %v4298
    %v4304 = vrot.slane %v4303, 4
    %v4306 = vshll.u32 %v3961, 16
    %v4308 = vrot.slane %v4306, 5
    %v4309 = vsel %vm134, %v4304, %v4308
    %v4311 = vshrl.u32 %v3962, 16
    %v4313 = vrot.slane %v4311, 4
    %v4314 = vshll.u32 %v3962, 16
    %v4316 = vrot.slane %v4314, 5
    %v4317 = vor.u32 %v4313, %v4316
    %v4318 = vrot.slane %v4317, 4
    %v4320 = vshll.u32 %v3963, 16
    %v4322 = vrot.slane %v4320, 5
    %v4323 = vsel %vm134, %v4318, %v4322
    %v4324 = vshrl.u32 %v3963, 16
    %v4326 = vrot.slane %v4324, 4
    %v4327 = vor.u32 %v4326, %v4322
    %v4328 = vrot.slane %v4327, 4
    %v4330 = vshll.u32 %v3964, 16
    %v4332 = vrot.slane %v4330, 5
    %v4333 = vsel %vm134, %v4328, %v4332
    %v4335 = vshrl.u32 %v3965, 16
    %v4337 = vrot.slane %v4335, 4
    %v4338 = vshll.u32 %v3965, 16
    %v4340 = vrot.slane %v4338, 5
    %v4341 = vor.u32 %v4337, %v4340
    %v4342 = vrot.slane %v4341, 4
    %v4344 = vshll.u32 %v3966, 16
    %v4346 = vrot.slane %v4344, 5
    %v4347 = vsel %vm134, %v4342, %v4346
    %v4348 = vshrl.u32 %v3966, 16
    %v4350 = vrot.slane %v4348, 4
    %v4351 = vor.u32 %v4350, %v4346
    %v4352 = vrot.slane %v4351, 4
    %v4354 = vshll.u32 %v3967, 16
    %v4356 = vrot.slane %v4354, 5
    %v4357 = vsel %vm134, %v4352, %v4356
    %v4406 = vrot.slane %v3920, 5
    %v4407 = vrot.slane %v4406, 4
    %v4408 = vrot.slane %v3921, 5
    %v4409 = vsel %vm569, %v4407, %v4408
    %v4410 = vrot.slane %v4408, 4
    %v4411 = vrot.slane %v3922, 5
    %v4412 = vsel %vm569, %v4410, %v4411
    %v4413 = vrot.slane %v3923, 5
    %v4414 = vrot.slane %v4413, 4
    %v4415 = vrot.slane %v3924, 5
    %v4416 = vsel %vm569, %v4414, %v4415
    %v4417 = vrot.slane %v4415, 4
    %v4418 = vrot.slane %v3925, 5
    %v4419 = vsel %vm569, %v4417, %v4418
    %v4420 = vrot.slane %v3926, 5
    %v4421 = vrot.slane %v4420, 4
    %v4422 = vrot.slane %v3927, 5
    %v4423 = vsel %vm569, %v4421, %v4422
    %v4424 = vrot.slane %v4422, 4
    %v4425 = vrot.slane %v3928, 5
    %v4426 = vsel %vm569, %v4424, %v4425
    %v4427 = vrot.slane %v3929, 5
    %v4428 = vrot.slane %v4427, 4
    %v4429 = vrot.slane %v3930, 5
    %v4430 = vsel %vm569, %v4428, %v4429
    %v4431 = vrot.slane %v4429, 4
    %v4432 = vrot.slane %v3931, 5
    %v4433 = vsel %vm569, %v4431, %v4432
    %v4434 = vrot.slane %v3932, 5
    %v4435 = vrot.slane %v4434, 4
    %v4436 = vrot.slane %v3933, 5
    %v4437 = vsel %vm569, %v4435, %v4436
    %v4438 = vrot.slane %v4436, 4
    %v4439 = vrot.slane %v3934, 5
    %v4440 = vsel %vm569, %v4438, %v4439
    %v4441 = vrot.slane %v3935, 5
    %v4442 = vrot.slane %v4441, 4
    %v4443 = vrot.slane %v3936, 5
    %v4444 = vsel %vm569, %v4442, %v4443
    %v4445 = vrot.slane %v4443, 4
    %v4446 = vrot.slane %v3937, 5
    %v4447 = vsel %vm569, %v4445, %v4446
    %v4448 = vrot.slane %v3938, 5
    %v4449 = vrot.slane %v4448, 4
    %v4450 = vrot.slane %v3939, 5
    %v4451 = vsel %vm569, %v4449, %v4450
    %v4452 = vrot.slane %v4450, 4
    %v4453 = vrot.slane %v3940, 5
    %v4454 = vsel %vm569, %v4452, %v4453
    %v4455 = vrot.slane %v3941, 5
    %v4456 = vrot.slane %v4455, 4
    %v4457 = vrot.slane %v3942, 5
    %v4458 = vsel %vm569, %v4456, %v4457
    %v4459 = vrot.slane %v4457, 4
    %v4460 = vrot.slane %v3943, 5
    %v4461 = vsel %vm569, %v4459, %v4460
    %v4462 = vrot.slane %v3944, 5
    %v4463 = vrot.slane %v4462, 4
    %v4464 = vrot.slane %v3945, 5
    %v4465 = vsel %vm569, %v4463, %v4464
    %v4466 = vrot.slane %v4464, 4
    %v4467 = vrot.slane %v3946, 5
    %v4468 = vsel %vm569, %v4466, %v4467
    %v4469 = vrot.slane %v3947, 5
    %v4470 = vrot.slane %v4469, 4
    %v4471 = vrot.slane %v3948, 5
    %v4472 = vsel %vm569, %v4470, %v4471
    %v4473 = vrot.slane %v4471, 4
    %v4474 = vrot.slane %v3949, 5
    %v4475 = vsel %vm569, %v4473, %v4474
    %v4476 = vrot.slane %v3950, 5
    %v4477 = vrot.slane %v4476, 4
    %v4478 = vrot.slane %v3951, 5
    %v4479 = vsel %vm569, %v4477, %v4478
    %v4480 = vrot.slane %v4478, 4
    %v4481 = vrot.slane %v3952, 5
    %v4482 = vsel %vm569, %v4480, %v4481
    %v4483 = vrot.slane %v3953, 5
    %v4484 = vrot.slane %v4483, 4
    %v4485 = vrot.slane %v3954, 5
    %v4486 = vsel %vm569, %v4484, %v4485
    %v4487 = vrot.slane %v4485, 4
    %v4488 = vrot.slane %v3955, 5
    %v4489 = vsel %vm569, %v4487, %v4488
    %v4490 = vrot.slane %v3956, 5
    %v4491 = vrot.slane %v4490, 4
    %v4492 = vrot.slane %v3957, 5
    %v4493 = vsel %vm569, %v4491, %v4492
    %v4494 = vrot.slane %v4492, 4
    %v4495 = vrot.slane %v3958, 5
    %v4496 = vsel %vm569, %v4494, %v4495
    %v4497 = vrot.slane %v3959, 5
    %v4498 = vrot.slane %v4497, 4
    %v4499 = vrot.slane %v3960, 5
    %v4500 = vsel %vm569, %v4498, %v4499
    %v4501 = vrot.slane %v4499, 4
    %v4502 = vrot.slane %v3961, 5
    %v4503 = vsel %vm569, %v4501, %v4502
    %v4504 = vrot.slane %v3962, 5
    %v4505 = vrot.slane %v4504, 4
    %v4506 = vrot.slane %v3963, 5
    %v4507 = vsel %vm569, %v4505, %v4506
    %v4508 = vrot.slane %v4506, 4
    %v4509 = vrot.slane %v3964, 5
    %v4510 = vsel %vm569, %v4508, %v4509
    %v4511 = vrot.slane %v3965, 5
    %v4512 = vrot.slane %v4511, 4
    %v4513 = vrot.slane %v3966, 5
    %v4514 = vsel %vm569, %v4512, %v4513
    %v4515 = vrot.slane %v4513, 4
    %v4516 = vrot.slane %v3967, 5
    %v4517 = vsel %vm569, %v4515, %v4516
    %v4519 = vshrl.u32 %v3968, 16
    %v4521 = vrot.slane %v4519, 4
    %v4522 = vshll.u32 %v3968, 16
    %v4524 = vrot.slane %v4522, 5
    %v4525 = vor.u32 %v4521, %v4524
    %v4526 = vrot.slane %v4525, 4
    %v4528 = vshll.u32 %v3969, 16
    %v4530 = vrot.slane %v4528, 5
    %v4531 = vsel %vm134, %v4526, %v4530
    %v4532 = vshrl.u32 %v3969, 16
    %v4534 = vrot.slane %v4532, 4
    %v4535 = vor.u32 %v4534, %v4530
    %v4536 = vrot.slane %v4535, 4
    %v4538 = vshll.u32 %v3970, 16
    %v4540 = vrot.slane %v4538, 5
    %v4541 = vsel %vm134, %v4536, %v4540
    %v4545 = vrot.slane %v3968, 5
    %v4546 = vrot.slane %v4545, 4
    %v4547 = vrot.slane %v3969, 5
    %v4548 = vsel %vm569, %v4546, %v4547
    %v4549 = vrot.slane %v4547, 4
    %v4550 = vrot.slane %v3970, 5
    %v4551 = vsel %vm569, %v4549, %v4550
    %v4553 = vshrl.u32 %v3971, 16
    %v4555 = vrot.slane %v4553, 4
    %v4556 = vshll.u32 %v3971, 16
    %v4558 = vrot.slane %v4556, 5
    %v4559 = vor.u32 %v4555, %v4558
    %v4560 = vrot.slane %v4559, 4
    %v4562 = vshll.u32 %v3972, 16
    %v4564 = vrot.slane %v4562, 5
    %v4565 = vsel %vm134, %v4560, %v4564
    %v4566 = vshrl.u32 %v3972, 16
    %v4568 = vrot.slane %v4566, 4
    %v4569 = vor.u32 %v4568, %v4564
    %v4570 = vrot.slane %v4569, 4
    %v4572 = vshll.u32 %v3973, 16
    %v4574 = vrot.slane %v4572, 5
    %v4575 = vsel %vm134, %v4570, %v4574
    %v4579 = vrot.slane %v3971, 5
    %v4580 = vrot.slane %v4579, 4
    %v4581 = vrot.slane %v3972, 5
    %v4582 = vsel %vm569, %v4580, %v4581
    %v4583 = vrot.slane %v4581, 4
    %v4584 = vrot.slane %v3973, 5
    %v4585 = vsel %vm569, %v4583, %v4584
    %v4586 = vunpack.c.l.b16 %v3920
    %v4587 = vunpack.c.l.b16 %v3921
    %v4588 = vunpack.c.l.b16 %v3923
    %v4589 = vunpack.c.l.b16 %v3924
    %v4590 = vunpack.c.l.b16 %v3926
    %v4591 = vunpack.c.l.b16 %v3927
    %v4592 = vunpack.c.l.b16 %v3929
    %v4593 = vunpack.c.l.b16 %v3930
    %v4594 = vunpack.c.l.b16 %v3932
    %v4595 = vunpack.c.l.b16 %v3933
    %v4596 = vunpack.c.l.b16 %v3935
    %v4597 = vunpack.c.l.b16 %v3936
    %v4598 = vunpack.c.l.b16 %v3938
    %v4599 = vunpack.c.l.b16 %v3939
    %v4600 = vunpack.c.l.b16 %v3941
    %v4601 = vunpack.c.l.b16 %v3942
    %v4602 = vunpack.c.l.b16 %v3944
    %v4603 = vunpack.c.l.b16 %v3945
    %v4604 = vunpack.c.l.b16 %v3947
    %v4605 = vunpack.c.l.b16 %v3948
    %v4606 = vunpack.c.l.b16 %v3950
    %v4607 = vunpack.c.l.b16 %v3951
    %v4608 = vunpack.c.l.b16 %v3953
    %v4609 = vunpack.c.l.b16 %v3954
    %v4610 = vunpack.c.l.b16 %v3956
    %v4611 = vunpack.c.l.b16 %v3957
    %v4612 = vunpack.c.l.b16 %v3959
    %v4613 = vunpack.c.l.b16 %v3960
    %v4614 = vunpack.c.l.b16 %v3962
    %v4615 = vunpack.c.l.b16 %v3963
    %v4616 = vunpack.c.l.b16 %v3965
    %v4617 = vunpack.c.l.b16 %v3966
    %v4618 = vpack.c.b16 %v4587, %v4586
    %v4619 = vpack.c.b16 %v4589, %v4588
    %v4620 = vpack.c.b16 %v4591, %v4590
    %v4621 = vpack.c.b16 %v4593, %v4592
    %v4622 = vpack.c.b16 %v4595, %v4594
    %v4623 = vpack.c.b16 %v4597, %v4596
    %v4624 = vpack.c.b16 %v4599, %v4598
    %v4625 = vpack.c.b16 %v4601, %v4600
    %v4626 = vpack.c.b16 %v4603, %v4602
    %v4627 = vpack.c.b16 %v4605, %v4604
    %v4628 = vpack.c.b16 %v4607, %v4606
    %v4629 = vpack.c.b16 %v4609, %v4608
    %v4630 = vpack.c.b16 %v4611, %v4610
    %v4631 = vpack.c.b16 %v4613, %v4612
    %v4632 = vpack.c.b16 %v4615, %v4614
    %v4633 = vpack.c.b16 %v4617, %v4616
    %v4634 = vunpack.c.l.b16 %v3987
    %v4635 = vunpack.c.l.b16 %v3997
    %v4636 = vunpack.c.l.b16 %v4011
    %v4637 = vunpack.c.l.b16 %v4021
    %v4638 = vunpack.c.l.b16 %v4035
    %v4639 = vunpack.c.l.b16 %v4045
    %v4640 = vunpack.c.l.b16 %v4059
    %v4641 = vunpack.c.l.b16 %v4069
    %v4642 = vunpack.c.l.b16 %v4083
    %v4643 = vunpack.c.l.b16 %v4093
    %v4644 = vunpack.c.l.b16 %v4107
    %v4645 = vunpack.c.l.b16 %v4117
    %v4646 = vunpack.c.l.b16 %v4131
    %v4647 = vunpack.c.l.b16 %v4141
    %v4648 = vunpack.c.l.b16 %v4155
    %v4649 = vunpack.c.l.b16 %v4165
    %v4650 = vunpack.c.l.b16 %v4179
    %v4651 = vunpack.c.l.b16 %v4189
    %v4652 = vunpack.c.l.b16 %v4203
    %v4653 = vunpack.c.l.b16 %v4213
    %v4654 = vunpack.c.l.b16 %v4227
    %v4655 = vunpack.c.l.b16 %v4237
    %v4656 = vunpack.c.l.b16 %v4251
    %v4657 = vunpack.c.l.b16 %v4261
    %v4658 = vunpack.c.l.b16 %v4275
    %v4659 = vunpack.c.l.b16 %v4285
    %v4660 = vunpack.c.l.b16 %v4299
    %v4661 = vunpack.c.l.b16 %v4309
    %v4662 = vunpack.c.l.b16 %v4323
    %v4663 = vunpack.c.l.b16 %v4333
    %v4664 = vunpack.c.l.b16 %v4347
    %v4665 = vunpack.c.l.b16 %v4357
    %v4666 = vpack.c.b16 %v4635, %v4634
    %v4667 = vpack.c.b16 %v4637, %v4636
    %v4668 = vpack.c.b16 %v4639, %v4638
    %v4669 = vpack.c.b16 %v4641, %v4640
    %v4670 = vpack.c.b16 %v4643, %v4642
    %v4671 = vpack.c.b16 %v4645, %v4644
    %v4672 = vpack.c.b16 %v4647, %v4646
    %v4673 = vpack.c.b16 %v4649, %v4648
    %v4674 = vpack.c.b16 %v4651, %v4650
    %v4675 = vpack.c.b16 %v4653, %v4652
    %v4676 = vpack.c.b16 %v4655, %v4654
    %v4677 = vpack.c.b16 %v4657, %v4656
    %v4678 = vpack.c.b16 %v4659, %v4658
    %v4679 = vpack.c.b16 %v4661, %v4660
    %v4680 = vpack.c.b16 %v4663, %v4662
    %v4681 = vpack.c.b16 %v4665, %v4664
    %4682 = vrot.lane.b32.xlu0 %v4666, 4
    %v4683 = vpop.permute.xlu0 %4682
    %4684 = vrot.lane.b32.xlu0 %v4667, 4
    %v4685 = vpop.permute.xlu0 %4684
    %4686 = vrot.lane.b32.xlu0 %v4668, 4
    %v4687 = vpop.permute.xlu0 %4686
    %4688 = vrot.lane.b32.xlu0 %v4669, 4
    %v4689 = vpop.permute.xlu0 %4688
    %4690 = vrot.lane.b32.xlu0 %v4670, 4
    %v4691 = vpop.permute.xlu0 %4690
    %4692 = vrot.lane.b32.xlu0 %v4671, 4
    %v4693 = vpop.permute.xlu0 %4692
    %4694 = vrot.lane.b32.xlu0 %v4672, 4
    %v4695 = vpop.permute.xlu0 %4694
    %4696 = vrot.lane.b32.xlu0 %v4673, 4
    %v4697 = vpop.permute.xlu0 %4696
    %4698 = vrot.lane.b32.xlu0 %v4674, 4
    %v4699 = vpop.permute.xlu0 %4698
    %4700 = vrot.lane.b32.xlu0 %v4675, 4
    %v4701 = vpop.permute.xlu0 %4700
    %4702 = vrot.lane.b32.xlu0 %v4676, 4
    %v4703 = vpop.permute.xlu0 %4702
    %4704 = vrot.lane.b32.xlu0 %v4677, 4
    %v4705 = vpop.permute.xlu0 %4704
    %4706 = vrot.lane.b32.xlu0 %v4678, 4
    %v4707 = vpop.permute.xlu0 %4706
    %4708 = vrot.lane.b32.xlu0 %v4679, 4
    %v4709 = vpop.permute.xlu0 %4708
    %4710 = vrot.lane.b32.xlu0 %v4680, 4
    %v4711 = vpop.permute.xlu0 %4710
    %4712 = vrot.lane.b32.xlu0 %v4681, 4
    %v4713 = vpop.permute.xlu0 %4712
    %v4714 = vunpack.c.l.b16 %v4409
    %v4715 = vunpack.c.l.b16 %v4412
    %v4716 = vunpack.c.l.b16 %v4416
    %v4717 = vunpack.c.l.b16 %v4419
    %v4718 = vunpack.c.l.b16 %v4423
    %v4719 = vunpack.c.l.b16 %v4426
    %v4720 = vunpack.c.l.b16 %v4430
    %v4721 = vunpack.c.l.b16 %v4433
    %v4722 = vunpack.c.l.b16 %v4437
    %v4723 = vunpack.c.l.b16 %v4440
    %v4724 = vunpack.c.l.b16 %v4444
    %v4725 = vunpack.c.l.b16 %v4447
    %v4726 = vunpack.c.l.b16 %v4451
    %v4727 = vunpack.c.l.b16 %v4454
    %v4728 = vunpack.c.l.b16 %v4458
    %v4729 = vunpack.c.l.b16 %v4461
    %v4730 = vunpack.c.l.b16 %v4465
    %v4731 = vunpack.c.l.b16 %v4468
    %v4732 = vunpack.c.l.b16 %v4472
    %v4733 = vunpack.c.l.b16 %v4475
    %v4734 = vunpack.c.l.b16 %v4479
    %v4735 = vunpack.c.l.b16 %v4482
    %v4736 = vunpack.c.l.b16 %v4486
    %v4737 = vunpack.c.l.b16 %v4489
    %v4738 = vunpack.c.l.b16 %v4493
    %v4739 = vunpack.c.l.b16 %v4496
    %v4740 = vunpack.c.l.b16 %v4500
    %v4741 = vunpack.c.l.b16 %v4503
    %v4742 = vunpack.c.l.b16 %v4507
    %v4743 = vunpack.c.l.b16 %v4510
    %v4744 = vunpack.c.l.b16 %v4514
    %v4745 = vunpack.c.l.b16 %v4517
    %v4746 = vpack.c.b16 %v4715, %v4714
    %v4747 = vpack.c.b16 %v4717, %v4716
    %v4748 = vpack.c.b16 %v4719, %v4718
    %v4749 = vpack.c.b16 %v4721, %v4720
    %v4750 = vpack.c.b16 %v4723, %v4722
    %v4751 = vpack.c.b16 %v4725, %v4724
    %v4752 = vpack.c.b16 %v4727, %v4726
    %v4753 = vpack.c.b16 %v4729, %v4728
    %v4754 = vpack.c.b16 %v4731, %v4730
    %v4755 = vpack.c.b16 %v4733, %v4732
    %v4756 = vpack.c.b16 %v4735, %v4734
    %v4757 = vpack.c.b16 %v4737, %v4736
    %v4758 = vpack.c.b16 %v4739, %v4738
    %v4759 = vpack.c.b16 %v4741, %v4740
    %v4760 = vpack.c.b16 %v4743, %v4742
    %v4761 = vpack.c.b16 %v4745, %v4744
    %4762 = vrot.lane.b32.xlu0 %v4746, 8
    %v4763 = vpop.permute.xlu0 %4762
    %4764 = vrot.lane.b32.xlu0 %v4747, 8
    %v4765 = vpop.permute.xlu0 %4764
    %4766 = vrot.lane.b32.xlu0 %v4748, 8
    %v4767 = vpop.permute.xlu0 %4766
    %4768 = vrot.lane.b32.xlu0 %v4749, 8
    %v4769 = vpop.permute.xlu0 %4768
    %4770 = vrot.lane.b32.xlu0 %v4750, 8
    %v4771 = vpop.permute.xlu0 %4770
    %4772 = vrot.lane.b32.xlu0 %v4751, 8
    %v4773 = vpop.permute.xlu0 %4772
    %4774 = vrot.lane.b32.xlu0 %v4752, 8
    %v4775 = vpop.permute.xlu0 %4774
    %4776 = vrot.lane.b32.xlu0 %v4753, 8
    %v4777 = vpop.permute.xlu0 %4776
    %4778 = vrot.lane.b32.xlu0 %v4754, 8
    %v4779 = vpop.permute.xlu0 %4778
    %4780 = vrot.lane.b32.xlu0 %v4755, 8
    %v4781 = vpop.permute.xlu0 %4780
    %4782 = vrot.lane.b32.xlu0 %v4756, 8
    %v4783 = vpop.permute.xlu0 %4782
    %4784 = vrot.lane.b32.xlu0 %v4757, 8
    %v4785 = vpop.permute.xlu0 %4784
    %4786 = vrot.lane.b32.xlu0 %v4758, 8
    %v4787 = vpop.permute.xlu0 %4786
    %4788 = vrot.lane.b32.xlu0 %v4759, 8
    %v4789 = vpop.permute.xlu0 %4788
    %4790 = vrot.lane.b32.xlu0 %v4760, 8
    %v4791 = vpop.permute.xlu0 %4790
    %4792 = vrot.lane.b32.xlu0 %v4761, 8
    %v4793 = vpop.permute.xlu0 %4792
    %v4794 = vunpack.c.l.b16 %v3968
    %v4795 = vunpack.c.l.b16 %v3969
    %v4796 = vpack.c.b16 %v4795, %v4794
    %4797 = vrot.lane.b32.xlu0 %v4619, 12
    %v4798 = vpop.permute.xlu0 %4797
    %4799 = vrot.lane.b32.xlu0 %v4620, 12
    %v4800 = vpop.permute.xlu0 %4799
    %4801 = vrot.lane.b32.xlu0 %v4621, 12
    %v4802 = vpop.permute.xlu0 %4801
    %4803 = vrot.lane.b32.xlu0 %v4622, 12
    %v4804 = vpop.permute.xlu0 %4803
    %4805 = vrot.lane.b32.xlu0 %v4623, 12
    %v4806 = vpop.permute.xlu0 %4805
    %4807 = vrot.lane.b32.xlu0 %v4624, 12
    %v4808 = vpop.permute.xlu0 %4807
    %4809 = vrot.lane.b32.xlu0 %v4625, 12
    %v4810 = vpop.permute.xlu0 %4809
    %4811 = vrot.lane.b32.xlu0 %v4626, 12
    %v4812 = vpop.permute.xlu0 %4811
    %4813 = vrot.lane.b32.xlu0 %v4627, 12
    %v4814 = vpop.permute.xlu0 %4813
    %4815 = vrot.lane.b32.xlu0 %v4628, 12
    %v4816 = vpop.permute.xlu0 %4815
    %4817 = vrot.lane.b32.xlu0 %v4629, 12
    %v4818 = vpop.permute.xlu0 %4817
    %4819 = vrot.lane.b32.xlu0 %v4630, 12
    %v4820 = vpop.permute.xlu0 %4819
    %4821 = vrot.lane.b32.xlu0 %v4631, 12
    %v4822 = vpop.permute.xlu0 %4821
    %4823 = vrot.lane.b32.xlu0 %v4632, 12
    %v4824 = vpop.permute.xlu0 %4823
    %4825 = vrot.lane.b32.xlu0 %v4633, 12
    %v4826 = vpop.permute.xlu0 %4825
    %4827 = vrot.lane.b32.xlu0 %v4796, 12
    %v4828 = vpop.permute.xlu0 %4827
    %v4829 = vunpack.c.l.b16 %v4531
    %v4830 = vunpack.c.l.b16 %v4541
    %v4831 = vpack.c.b16 %v4830, %v4829
    %4832 = vrot.lane.b32.xlu0 %v4667, 16
    %v4833 = vpop.permute.xlu0 %4832
    %4834 = vrot.lane.b32.xlu0 %v4668, 16
    %v4835 = vpop.permute.xlu0 %4834
    %4836 = vrot.lane.b32.xlu0 %v4669, 16
    %v4837 = vpop.permute.xlu0 %4836
    %4838 = vrot.lane.b32.xlu0 %v4670, 16
    %v4839 = vpop.permute.xlu0 %4838
    %4840 = vrot.lane.b32.xlu0 %v4671, 16
    %v4841 = vpop.permute.xlu0 %4840
    %4842 = vrot.lane.b32.xlu0 %v4672, 16
    %v4843 = vpop.permute.xlu0 %4842
    %4844 = vrot.lane.b32.xlu0 %v4673, 16
    %v4845 = vpop.permute.xlu0 %4844
    %4846 = vrot.lane.b32.xlu0 %v4674, 16
    %v4847 = vpop.permute.xlu0 %4846
    %4848 = vrot.lane.b32.xlu0 %v4675, 16
    %v4849 = vpop.permute.xlu0 %4848
    %4850 = vrot.lane.b32.xlu0 %v4676, 16
    %v4851 = vpop.permute.xlu0 %4850
    %4852 = vrot.lane.b32.xlu0 %v4677, 16
    %v4853 = vpop.permute.xlu0 %4852
    %4854 = vrot.lane.b32.xlu0 %v4678, 16
    %v4855 = vpop.permute.xlu0 %4854
    %4856 = vrot.lane.b32.xlu0 %v4679, 16
    %v4857 = vpop.permute.xlu0 %4856
    %4858 = vrot.lane.b32.xlu0 %v4680, 16
    %v4859 = vpop.permute.xlu0 %4858
    %4860 = vrot.lane.b32.xlu0 %v4681, 16
    %v4861 = vpop.permute.xlu0 %4860
    %4862 = vrot.lane.b32.xlu0 %v4831, 16
    %v4863 = vpop.permute.xlu0 %4862
    %v4864 = vunpack.c.l.b16 %v4548
    %v4865 = vunpack.c.l.b16 %v4551
    %v4866 = vpack.c.b16 %v4865, %v4864
    %4867 = vrot.lane.b32.xlu0 %v4747, 20
    %v4868 = vpop.permute.xlu0 %4867
    %4869 = vrot.lane.b32.xlu0 %v4748, 20
    %v4870 = vpop.permute.xlu0 %4869
    %4871 = vrot.lane.b32.xlu0 %v4749, 20
    %v4872 = vpop.permute.xlu0 %4871
    %4873 = vrot.lane.b32.xlu0 %v4750, 20
    %v4874 = vpop.permute.xlu0 %4873
    %4875 = vrot.lane.b32.xlu0 %v4751, 20
    %v4876 = vpop.permute.xlu0 %4875
    %4877 = vrot.lane.b32.xlu0 %v4752, 20
    %v4878 = vpop.permute.xlu0 %4877
    %4879 = vrot.lane.b32.xlu0 %v4753, 20
    %v4880 = vpop.permute.xlu0 %4879
    %4881 = vrot.lane.b32.xlu0 %v4754, 20
    %v4882 = vpop.permute.xlu0 %4881
    %4883 = vrot.lane.b32.xlu0 %v4755, 20
    %v4884 = vpop.permute.xlu0 %4883
    %4885 = vrot.lane.b32.xlu0 %v4756, 20
    %v4886 = vpop.permute.xlu0 %4885
    %4887 = vrot.lane.b32.xlu0 %v4757, 20
    %v4888 = vpop.permute.xlu0 %4887
    %4889 = vrot.lane.b32.xlu0 %v4758, 20
    %v4890 = vpop.permute.xlu0 %4889
    %4891 = vrot.lane.b32.xlu0 %v4759, 20
    %v4892 = vpop.permute.xlu0 %4891
    %4893 = vrot.lane.b32.xlu0 %v4760, 20
    %v4894 = vpop.permute.xlu0 %4893
    %4895 = vrot.lane.b32.xlu0 %v4761, 20
    %v4896 = vpop.permute.xlu0 %4895
    %4897 = vrot.lane.b32.xlu0 %v4866, 20
    %v4898 = vpop.permute.xlu0 %4897
    %v4899 = vunpack.c.l.b16 %v3971
    %v4900 = vunpack.c.l.b16 %v3972
    %v4901 = vpack.c.b16 %v4900, %v4899
    %4902 = vrot.lane.b32.xlu0 %v4620, 24
    %v4903 = vpop.permute.xlu0 %4902
    %4904 = vrot.lane.b32.xlu0 %v4621, 24
    %v4905 = vpop.permute.xlu0 %4904
    %4906 = vrot.lane.b32.xlu0 %v4622, 24
    %v4907 = vpop.permute.xlu0 %4906
    %4908 = vrot.lane.b32.xlu0 %v4623, 24
    %v4909 = vpop.permute.xlu0 %4908
    %4910 = vrot.lane.b32.xlu0 %v4624, 24
    %v4911 = vpop.permute.xlu0 %4910
    %4912 = vrot.lane.b32.xlu0 %v4625, 24
    %v4913 = vpop.permute.xlu0 %4912
    %4914 = vrot.lane.b32.xlu0 %v4626, 24
    %v4915 = vpop.permute.xlu0 %4914
    %4916 = vrot.lane.b32.xlu0 %v4627, 24
    %v4917 = vpop.permute.xlu0 %4916
    %4918 = vrot.lane.b32.xlu0 %v4628, 24
    %v4919 = vpop.permute.xlu0 %4918
    %4920 = vrot.lane.b32.xlu0 %v4629, 24
    %v4921 = vpop.permute.xlu0 %4920
    %4922 = vrot.lane.b32.xlu0 %v4630, 24
    %v4923 = vpop.permute.xlu0 %4922
    %4924 = vrot.lane.b32.xlu0 %v4631, 24
    %v4925 = vpop.permute.xlu0 %4924
    %4926 = vrot.lane.b32.xlu0 %v4632, 24
    %v4927 = vpop.permute.xlu0 %4926
    %4928 = vrot.lane.b32.xlu0 %v4633, 24
    %v4929 = vpop.permute.xlu0 %4928
    %4930 = vrot.lane.b32.xlu0 %v4796, 24
    %v4931 = vpop.permute.xlu0 %4930
    %4932 = vrot.lane.b32.xlu0 %v4901, 24
    %v4933 = vpop.permute.xlu0 %4932
    %v4934 = vunpack.c.l.b16 %v4565
    %v4935 = vunpack.c.l.b16 %v4575
    %v4936 = vpack.c.b16 %v4935, %v4934
    %4937 = vrot.lane.b32.xlu0 %v4668, 28
    %v4938 = vpop.permute.xlu0 %4937
    %4939 = vrot.lane.b32.xlu0 %v4669, 28
    %v4940 = vpop.permute.xlu0 %4939
    %4941 = vrot.lane.b32.xlu0 %v4670, 28
    %v4942 = vpop.permute.xlu0 %4941
    %4943 = vrot.lane.b32.xlu0 %v4671, 28
    %v4944 = vpop.permute.xlu0 %4943
    %4945 = vrot.lane.b32.xlu0 %v4672, 28
    %v4946 = vpop.permute.xlu0 %4945
    %4947 = vrot.lane.b32.xlu0 %v4673, 28
    %v4948 = vpop.permute.xlu0 %4947
    %4949 = vrot.lane.b32.xlu0 %v4674, 28
    %v4950 = vpop.permute.xlu0 %4949
    %4951 = vrot.lane.b32.xlu0 %v4675, 28
    %v4952 = vpop.permute.xlu0 %4951
    %4953 = vrot.lane.b32.xlu0 %v4676, 28
    %v4954 = vpop.permute.xlu0 %4953
    %4955 = vrot.lane.b32.xlu0 %v4677, 28
    %v4956 = vpop.permute.xlu0 %4955
    %4957 = vrot.lane.b32.xlu0 %v4678, 28
    %v4958 = vpop.permute.xlu0 %4957
    %4959 = vrot.lane.b32.xlu0 %v4679, 28
    %v4960 = vpop.permute.xlu0 %4959
    %4961 = vrot.lane.b32.xlu0 %v4680, 28
    %v4962 = vpop.permute.xlu0 %4961
    %4963 = vrot.lane.b32.xlu0 %v4681, 28
    %v4964 = vpop.permute.xlu0 %4963
    %4965 = vrot.lane.b32.xlu0 %v4831, 28
    %v4966 = vpop.permute.xlu0 %4965
    %4967 = vrot.lane.b32.xlu0 %v4936, 28
    %v4968 = vpop.permute.xlu0 %4967
    %v4969 = vunpack.c.l.b16 %v4582
    %v4970 = vunpack.c.l.b16 %v4585
    %v4971 = vpack.c.b16 %v4970, %v4969
    %4972 = vrot.lane.b32.xlu0 %v4748, 32
    %v4973 = vpop.permute.xlu0 %4972
    %4974 = vrot.lane.b32.xlu0 %v4749, 32
    %v4975 = vpop.permute.xlu0 %4974
    %4976 = vrot.lane.b32.xlu0 %v4750, 32
    %v4977 = vpop.permute.xlu0 %4976
    %4978 = vrot.lane.b32.xlu0 %v4751, 32
    %v4979 = vpop.permute.xlu0 %4978
    %4980 = vrot.lane.b32.xlu0 %v4752, 32
    %v4981 = vpop.permute.xlu0 %4980
    %4982 = vrot.lane.b32.xlu0 %v4753, 32
    %v4983 = vpop.permute.xlu0 %4982
    %4984 = vrot.lane.b32.xlu0 %v4754, 32
    %v4985 = vpop.permute.xlu0 %4984
    %4986 = vrot.lane.b32.xlu0 %v4755, 32
    %v4987 = vpop.permute.xlu0 %4986
    %4988 = vrot.lane.b32.xlu0 %v4756, 32
    %v4989 = vpop.permute.xlu0 %4988
    %4990 = vrot.lane.b32.xlu0 %v4757, 32
    %v4991 = vpop.permute.xlu0 %4990
    %4992 = vrot.lane.b32.xlu0 %v4758, 32
    %v4993 = vpop.permute.xlu0 %4992
    %4994 = vrot.lane.b32.xlu0 %v4759, 32
    %v4995 = vpop.permute.xlu0 %4994
    %4996 = vrot.lane.b32.xlu0 %v4760, 32
    %v4997 = vpop.permute.xlu0 %4996
    %4998 = vrot.lane.b32.xlu0 %v4761, 32
    %v4999 = vpop.permute.xlu0 %4998
    %5000 = vrot.lane.b32.xlu0 %v4866, 32
    %v5001 = vpop.permute.xlu0 %5000
    %5002 = vrot.lane.b32.xlu0 %v4971, 32
    %v5003 = vpop.permute.xlu0 %5002
    %v5006 = vsel %vm1168, %v4618, %v4683
    %v5009 = vsel %vm1168, %v4619, %v4685
    %v5012 = vsel %vm1168, %v4620, %v4687
    %v5015 = vsel %vm1168, %v4621, %v4689
    %v5018 = vsel %vm1168, %v4622, %v4691
    %v5021 = vsel %vm1168, %v4623, %v4693
    %v5024 = vsel %vm1168, %v4624, %v4695
    %v5027 = vsel %vm1168, %v4625, %v4697
    %v5030 = vsel %vm1168, %v4626, %v4699
    %v5033 = vsel %vm1168, %v4627, %v4701
    %v5036 = vsel %vm1168, %v4628, %v4703
    %v5039 = vsel %vm1168, %v4629, %v4705
    %v5042 = vsel %vm1168, %v4630, %v4707
    %v5045 = vsel %vm1168, %v4631, %v4709
    %v5048 = vsel %vm1168, %v4632, %v4711
    %v5051 = vsel %vm1168, %v4633, %v4713
    %v5053 = vsel %vm1217, %v5006, %v4763
    %v5055 = vsel %vm1217, %v5009, %v4765
    %v5057 = vsel %vm1217, %v5012, %v4767
    %v5059 = vsel %vm1217, %v5015, %v4769
    %v5061 = vsel %vm1217, %v5018, %v4771
    %v5063 = vsel %vm1217, %v5021, %v4773
    %v5065 = vsel %vm1217, %v5024, %v4775
    %v5067 = vsel %vm1217, %v5027, %v4777
    %v5069 = vsel %vm1217, %v5030, %v4779
    %v5071 = vsel %vm1217, %v5033, %v4781
    %v5073 = vsel %vm1217, %v5036, %v4783
    %v5075 = vsel %vm1217, %v5039, %v4785
    %v5077 = vsel %vm1217, %v5042, %v4787
    %v5079 = vsel %vm1217, %v5045, %v4789
    %v5081 = vsel %vm1217, %v5048, %v4791
    %v5083 = vsel %vm1217, %v5051, %v4793
    %v5085 = vsel %vm1250, %v5053, %v4798
    %v5087 = vsel %vm1250, %v5055, %v4800
    %v5089 = vsel %vm1250, %v5057, %v4802
    %v5091 = vsel %vm1250, %v5059, %v4804
    %v5093 = vsel %vm1250, %v5061, %v4806
    %v5095 = vsel %vm1250, %v5063, %v4808
    %v5097 = vsel %vm1250, %v5065, %v4810
    %v5099 = vsel %vm1250, %v5067, %v4812
    %v5101 = vsel %vm1250, %v5069, %v4814
    %v5103 = vsel %vm1250, %v5071, %v4816
    %v5105 = vsel %vm1250, %v5073, %v4818
    %v5107 = vsel %vm1250, %v5075, %v4820
    %v5109 = vsel %vm1250, %v5077, %v4822
    %v5111 = vsel %vm1250, %v5079, %v4824
    %v5113 = vsel %vm1250, %v5081, %v4826
    %v5115 = vsel %vm1250, %v5083, %v4828
    %v5117 = vsel %vm1283, %v5085, %v4833
    %v5119 = vsel %vm1283, %v5087, %v4835
    %v5121 = vsel %vm1283, %v5089, %v4837
    %v5123 = vsel %vm1283, %v5091, %v4839
    %v5125 = vsel %vm1283, %v5093, %v4841
    %v5127 = vsel %vm1283, %v5095, %v4843
    %v5129 = vsel %vm1283, %v5097, %v4845
    %v5131 = vsel %vm1283, %v5099, %v4847
    %v5133 = vsel %vm1283, %v5101, %v4849
    %v5135 = vsel %vm1283, %v5103, %v4851
    %v5137 = vsel %vm1283, %v5105, %v4853
    %v5139 = vsel %vm1283, %v5107, %v4855
    %v5141 = vsel %vm1283, %v5109, %v4857
    %v5143 = vsel %vm1283, %v5111, %v4859
    %v5145 = vsel %vm1283, %v5113, %v4861
    %v5147 = vsel %vm1283, %v5115, %v4863
    %v5149 = vsel %vm1316, %v5117, %v4868
    %v5151 = vsel %vm1316, %v5119, %v4870
    %v5153 = vsel %vm1316, %v5121, %v4872
    %v5155 = vsel %vm1316, %v5123, %v4874
    %v5157 = vsel %vm1316, %v5125, %v4876
    %v5159 = vsel %vm1316, %v5127, %v4878
    %v5161 = vsel %vm1316, %v5129, %v4880
    %v5163 = vsel %vm1316, %v5131, %v4882
    %v5165 = vsel %vm1316, %v5133, %v4884
    %v5167 = vsel %vm1316, %v5135, %v4886
    %v5169 = vsel %vm1316, %v5137, %v4888
    %v5171 = vsel %vm1316, %v5139, %v4890
    %v5173 = vsel %vm1316, %v5141, %v4892
    %v5175 = vsel %vm1316, %v5143, %v4894
    %v5177 = vsel %vm1316, %v5145, %v4896
    %v5179 = vsel %vm1316, %v5147, %v4898
    %v5181 = vsel %vm1349, %v5149, %v4903
    %v5183 = vsel %vm1349, %v5151, %v4905
    %v5185 = vsel %vm1349, %v5153, %v4907
    %v5187 = vsel %vm1349, %v5155, %v4909
    %v5189 = vsel %vm1349, %v5157, %v4911
    %v5191 = vsel %vm1349, %v5159, %v4913
    %v5193 = vsel %vm1349, %v5161, %v4915
    %v5195 = vsel %vm1349, %v5163, %v4917
    %v5197 = vsel %vm1349, %v5165, %v4919
    %v5199 = vsel %vm1349, %v5167, %v4921
    %v5201 = vsel %vm1349, %v5169, %v4923
    %v5203 = vsel %vm1349, %v5171, %v4925
    %v5205 = vsel %vm1349, %v5173, %v4927
    %v5207 = vsel %vm1349, %v5175, %v4929
    %v5209 = vsel %vm1349, %v5177, %v4931
    %v5211 = vsel %vm1349, %v5179, %v4933
    %v5213 = vsel %vm1382, %v5181, %v4938
    %v5215 = vsel %vm1382, %v5183, %v4940
    %v5217 = vsel %vm1382, %v5185, %v4942
    %v5219 = vsel %vm1382, %v5187, %v4944
    %v5221 = vsel %vm1382, %v5189, %v4946
    %v5223 = vsel %vm1382, %v5191, %v4948
    %v5225 = vsel %vm1382, %v5193, %v4950
    %v5227 = vsel %vm1382, %v5195, %v4952
    %v5229 = vsel %vm1382, %v5197, %v4954
    %v5231 = vsel %vm1382, %v5199, %v4956
    %v5233 = vsel %vm1382, %v5201, %v4958
    %v5235 = vsel %vm1382, %v5203, %v4960
    %v5237 = vsel %vm1382, %v5205, %v4962
    %v5239 = vsel %vm1382, %v5207, %v4964
    %v5241 = vsel %vm1382, %v5209, %v4966
    %v5243 = vsel %vm1382, %v5211, %v4968
    %v5245 = vsel %vm1415, %v5213, %v4973
    %v5247 = vsel %vm1415, %v5215, %v4975
    %v5249 = vsel %vm1415, %v5217, %v4977
    %v5251 = vsel %vm1415, %v5219, %v4979
    %v5253 = vsel %vm1415, %v5221, %v4981
    %v5255 = vsel %vm1415, %v5223, %v4983
    %v5257 = vsel %vm1415, %v5225, %v4985
    %v5259 = vsel %vm1415, %v5227, %v4987
    %v5261 = vsel %vm1415, %v5229, %v4989
    %v5263 = vsel %vm1415, %v5231, %v4991
    %v5265 = vsel %vm1415, %v5233, %v4993
    %v5267 = vsel %vm1415, %v5235, %v4995
    %v5269 = vsel %vm1415, %v5237, %v4997
    %v5271 = vsel %vm1415, %v5239, %v4999
    %v5273 = vsel %vm1415, %v5241, %v5001
    %v5275 = vsel %vm1415, %v5243, %v5003
    %v5276 = vld [vmem:[%s1] sm:$0xf]
    %v5277 = vld [vmem:[%s1 + $0x4] sm:$0xf]
    %v5278 = vld [vmem:[%s1 + $0x8] sm:$0xf]
    %v5279 = vld [vmem:[%s1 + $0xc] sm:$0xf]
    %v5280 = vld [vmem:[%s1 + $0x10] sm:$0x3]
    %v5281 = vld [vmem:[%s2] sm:$0x1]
    %v5283 = vlaneseq
    %v5284 = vshrl.u32 %v5283, 7
    %v5285 = vsub.s32 0, %v5284
    %v5286 = vrot.slane %v5281, %v5285
    %v5293 = vunpack.c.l.b16 %v5276
    %v5294 = vunpack.c.l.b16 %v5277
    %v5295 = vunpack.c.l.b16 %v5278
    %v5296 = vunpack.c.l.b16 %v5279
    %v5297 = vunpack.c.l.b16 %v5280
    %v5298 = vpack.c.b16 %v5294, %v5293
    %v5299 = vpack.c.b16 %v5296, %v5295
    %v5300 = vpack.c.b16 %v5297, %v5297
    %v5303 = vsel %vm1475, %v5245, 0
    %v5305 = vsel %vm1475, %v5247, 0
    %v5307 = vsel %vm1475, %v5249, 0
    %v5309 = vsel %vm1475, %v5251, 0
    %v5311 = vsel %vm1475, %v5253, 0
    %v5313 = vsel %vm1475, %v5255, 0
    %v5315 = vsel %vm1475, %v5257, 0
    %v5317 = vsel %vm1475, %v5259, 0
    %v5319 = vsel %vm1475, %v5261, 0
    %v5321 = vsel %vm1475, %v5263, 0
    %v5323 = vsel %vm1475, %v5265, 0
    %v5325 = vsel %vm1475, %v5267, 0
    %v5327 = vsel %vm1475, %v5269, 0
    %v5329 = vsel %vm1475, %v5271, 0
    %v5331 = vsel %vm1475, %v5273, 0
    %v5333 = vsel %vm1475, %v5275, 0
    %v5336 = vsel %vm1508, %v5300, 0
    %5338 = vmatprep.subr.bf16.mxu0 0
    %5339 = vmatpush1.bf16.msra.mxu0 0
    %5340 = vmatprep.subr.bf16.mxu0 0
    %5341 = vmatpush1.bf16.msra.mxu0 0
    %5342 = vmatprep.subr.bf16.mxu0 0
    %5343 = vmatpush1.bf16.msra.mxu0 0
    %5344 = vmatprep.subr.bf16.mxu0 0
    %5345 = vmatpush1.bf16.msra.mxu0 0
    %5346 = vmatprep.subr.bf16.mxu0 0
    %5347 = vmatpush1.bf16.msra.mxu0 0
    %5348 = vmatprep.subr.bf16.mxu0 0
    %5349 = vmatpush1.bf16.msra.mxu0 %v5336
    %5350 = vmatprep.subr.bf16.mxu0 0
    %5351 = vmatpush1.bf16.msra.mxu0 %v5299
    %5352 = vmatprep.subr.bf16.mxu0 0
    %5353 = vmatpush1.bf16.msra.mxu0 %v5298
    %5354 = vmatprep.subr.bf16.mxu0 0
    %5355 = vmatpush2.bf16.msra.mxu0 0
    %5356 = vmatprep.subr.bf16.mxu0 0
    %5357 = vmatpush2.bf16.msra.mxu0 0
    %5358 = vmatprep.subr.bf16.mxu0 0
    %5359 = vmatpush2.bf16.msra.mxu0 0
    %5360 = vmatprep.subr.bf16.mxu0 0
    %5361 = vmatpush2.bf16.msra.mxu0 0
    %5362 = vmatprep.subr.bf16.mxu0 0
    %5363 = vmatpush2.bf16.msra.mxu0 0
    %5364 = vmatprep.subr.bf16.mxu0 0
    %5365 = vmatpush2.bf16.msra.mxu0 0
    %5366 = vmatprep.subr.bf16.mxu0 0
    %5367 = vmatpush2.bf16.msra.mxu0 0
    %5368 = vmatprep.subr.bf16.mxu0 0
    %5369 = vmatpush2.bf16.msra.mxu0 0
    %5370 = vmatprep.mubr.bf16.mxu0 0
    %5371 = vmatmul.mubr.bf16.gmra.mxu0 %v5303
    %v5372 = vpop.f32.mrf.mxu0
    %v5373 = vadd.f32 %v5286, %v5372
    %v5374 = vpop.f32.mrf.mxu0
    %v5375 = vpop.f32.mrf.mxu0
    %v5376 = vadd.f32 %v5286, %v5375
    %v5377 = vpop.f32.mrf.mxu0
    %5378 = vmatprep.mubr.bf16.mxu0 0
    %5379 = vmatmul.mubr.bf16.gmra.mxu0 %v5305
    %v5380 = vpop.f32.mrf.mxu0
    %v5381 = vadd.f32 %v5286, %v5380
    %v5382 = vpop.f32.mrf.mxu0
    %v5383 = vpop.f32.mrf.mxu0
    %v5384 = vadd.f32 %v5286, %v5383
    %v5385 = vpop.f32.mrf.mxu0
    %5386 = vmatprep.mubr.bf16.mxu0 0
    %5387 = vmatmul.mubr.bf16.gmra.mxu0 %v5307
    %v5388 = vpop.f32.mrf.mxu0
    %v5389 = vadd.f32 %v5286, %v5388
    %v5390 = vpop.f32.mrf.mxu0
    %v5391 = vpop.f32.mrf.mxu0
    %v5392 = vadd.f32 %v5286, %v5391
    %v5393 = vpop.f32.mrf.mxu0
    %5394 = vmatprep.mubr.bf16.mxu0 0
    %5395 = vmatmul.mubr.bf16.gmra.mxu0 %v5309
    %v5396 = vpop.f32.mrf.mxu0
    %v5397 = vadd.f32 %v5286, %v5396
    %v5398 = vpop.f32.mrf.mxu0
    %v5399 = vpop.f32.mrf.mxu0
    %v5400 = vadd.f32 %v5286, %v5399
    %v5401 = vpop.f32.mrf.mxu0
    %5402 = vmatprep.mubr.bf16.mxu0 0
    %5403 = vmatmul.mubr.bf16.gmra.mxu0 %v5311
    %v5404 = vpop.f32.mrf.mxu0
    %v5405 = vadd.f32 %v5286, %v5404
    %v5406 = vpop.f32.mrf.mxu0
    %v5407 = vpop.f32.mrf.mxu0
    %v5408 = vadd.f32 %v5286, %v5407
    %v5409 = vpop.f32.mrf.mxu0
    %5410 = vmatprep.mubr.bf16.mxu0 0
    %5411 = vmatmul.mubr.bf16.gmra.mxu0 %v5313
    %v5412 = vpop.f32.mrf.mxu0
    %v5413 = vadd.f32 %v5286, %v5412
    %v5414 = vpop.f32.mrf.mxu0
    %v5415 = vpop.f32.mrf.mxu0
    %v5416 = vadd.f32 %v5286, %v5415
    %v5417 = vpop.f32.mrf.mxu0
    %5418 = vmatprep.mubr.bf16.mxu0 0
    %5419 = vmatmul.mubr.bf16.gmra.mxu0 %v5315
    %v5420 = vpop.f32.mrf.mxu0
    %v5421 = vadd.f32 %v5286, %v5420
    %v5422 = vpop.f32.mrf.mxu0
    %v5423 = vpop.f32.mrf.mxu0
    %v5424 = vadd.f32 %v5286, %v5423
    %v5425 = vpop.f32.mrf.mxu0
    %5426 = vmatprep.mubr.bf16.mxu0 0
    %5427 = vmatmul.mubr.bf16.gmra.mxu0 %v5317
    %v5428 = vpop.f32.mrf.mxu0
    %v5429 = vadd.f32 %v5286, %v5428
    %v5430 = vpop.f32.mrf.mxu0
    %v5431 = vpop.f32.mrf.mxu0
    %v5432 = vadd.f32 %v5286, %v5431
    %v5433 = vpop.f32.mrf.mxu0
    %5434 = vmatprep.mubr.bf16.mxu0 0
    %5435 = vmatmul.mubr.bf16.gmra.mxu0 %v5319
    %v5436 = vpop.f32.mrf.mxu0
    %v5437 = vadd.f32 %v5286, %v5436
    %v5438 = vpop.f32.mrf.mxu0
    %v5439 = vpop.f32.mrf.mxu0
    %v5440 = vadd.f32 %v5286, %v5439
    %v5441 = vpop.f32.mrf.mxu0
    %5442 = vmatprep.mubr.bf16.mxu0 0
    %5443 = vmatmul.mubr.bf16.gmra.mxu0 %v5321
    %v5444 = vpop.f32.mrf.mxu0
    %v5445 = vadd.f32 %v5286, %v5444
    %v5446 = vpop.f32.mrf.mxu0
    %v5447 = vpop.f32.mrf.mxu0
    %v5448 = vadd.f32 %v5286, %v5447
    %v5449 = vpop.f32.mrf.mxu0
    %5450 = vmatprep.mubr.bf16.mxu0 0
    %5451 = vmatmul.mubr.bf16.gmra.mxu0 %v5323
    %v5452 = vpop.f32.mrf.mxu0
    %v5453 = vadd.f32 %v5286, %v5452
    %v5454 = vpop.f32.mrf.mxu0
    %v5455 = vpop.f32.mrf.mxu0
    %v5456 = vadd.f32 %v5286, %v5455
    %v5457 = vpop.f32.mrf.mxu0
    %5458 = vmatprep.mubr.bf16.mxu0 0
    %5459 = vmatmul.mubr.bf16.gmra.mxu0 %v5325
    %v5460 = vpop.f32.mrf.mxu0
    %v5461 = vadd.f32 %v5286, %v5460
    %v5462 = vpop.f32.mrf.mxu0
    %v5463 = vpop.f32.mrf.mxu0
    %v5464 = vadd.f32 %v5286, %v5463
    %v5465 = vpop.f32.mrf.mxu0
    %5466 = vmatprep.mubr.bf16.mxu0 0
    %5467 = vmatmul.mubr.bf16.gmra.mxu0 %v5327
    %v5468 = vpop.f32.mrf.mxu0
    %v5469 = vadd.f32 %v5286, %v5468
    %v5470 = vpop.f32.mrf.mxu0
    %v5471 = vpop.f32.mrf.mxu0
    %v5472 = vadd.f32 %v5286, %v5471
    %v5473 = vpop.f32.mrf.mxu0
    %5474 = vmatprep.mubr.bf16.mxu0 0
    %5475 = vmatmul.mubr.bf16.gmra.mxu0 %v5329
    %v5476 = vpop.f32.mrf.mxu0
    %v5477 = vadd.f32 %v5286, %v5476
    %v5478 = vpop.f32.mrf.mxu0
    %v5479 = vpop.f32.mrf.mxu0
    %v5480 = vadd.f32 %v5286, %v5479
    %v5481 = vpop.f32.mrf.mxu0
    %5482 = vmatprep.mubr.bf16.mxu0 0
    %5483 = vmatmul.mubr.bf16.gmra.mxu0 %v5331
    %v5484 = vpop.f32.mrf.mxu0
    %v5485 = vadd.f32 %v5286, %v5484
    %v5486 = vpop.f32.mrf.mxu0
    %v5487 = vpop.f32.mrf.mxu0
    %v5488 = vadd.f32 %v5286, %v5487
    %v5489 = vpop.f32.mrf.mxu0
    %5490 = vmatprep.mubr.bf16.mxu0 0
    %5491 = vmatmul.mubr.bf16.gmra.mxu0 %v5333
    %v5492 = vpop.f32.mrf.mxu0
    %v5493 = vadd.f32 %v5286, %v5492
    %v5494 = vpop.f32.mrf.mxu0
    %v5495 = vpop.f32.mrf.mxu0
    %v5496 = vadd.f32 %v5286, %v5495
    %v5497 = vpop.f32.mrf.mxu0
    %5498 = vdwg.mxu0
    %v5499 = vmax.f32 %v5373, 0.0
    %v5500 = vmax.f32 %v5376, 0.0
    %v5501 = vmax.f32 %v5381, 0.0
    %v5502 = vmax.f32 %v5384, 0.0
    %v5503 = vmax.f32 %v5389, 0.0
    %v5504 = vmax.f32 %v5392, 0.0
    %v5505 = vmax.f32 %v5397, 0.0
    %v5506 = vmax.f32 %v5400, 0.0
    %v5507 = vmax.f32 %v5405, 0.0
    %v5508 = vmax.f32 %v5408, 0.0
    %v5509 = vmax.f32 %v5413, 0.0
    %v5510 = vmax.f32 %v5416, 0.0
    %v5511 = vmax.f32 %v5421, 0.0
    %v5512 = vmax.f32 %v5424, 0.0
    %v5513 = vmax.f32 %v5429, 0.0
    %v5514 = vmax.f32 %v5432, 0.0
    %v5515 = vmax.f32 %v5437, 0.0
    %v5516 = vmax.f32 %v5440, 0.0
    %v5517 = vmax.f32 %v5445, 0.0
    %v5518 = vmax.f32 %v5448, 0.0
    %v5519 = vmax.f32 %v5453, 0.0
    %v5520 = vmax.f32 %v5456, 0.0
    %v5521 = vmax.f32 %v5461, 0.0
    %v5522 = vmax.f32 %v5464, 0.0
    %v5523 = vmax.f32 %v5469, 0.0
    %v5524 = vmax.f32 %v5472, 0.0
    %v5525 = vmax.f32 %v5477, 0.0
    %v5526 = vmax.f32 %v5480, 0.0
    %v5527 = vmax.f32 %v5485, 0.0
    %v5528 = vmax.f32 %v5488, 0.0
    %v5529 = vmax.f32 %v5493, 0.0
    %v5530 = vmax.f32 %v5496, 0.0
    %v5531 = vpack.c.bf16 %v5500, %v5499
    %v5532 = vpack.c.bf16 %v5502, %v5501
    %v5533 = vpack.c.bf16 %v5504, %v5503
    %v5534 = vpack.c.bf16 %v5506, %v5505
    %v5535 = vpack.c.bf16 %v5508, %v5507
    %v5536 = vpack.c.bf16 %v5510, %v5509
    %v5537 = vpack.c.bf16 %v5512, %v5511
    %v5538 = vpack.c.bf16 %v5514, %v5513
    %v5539 = vpack.c.bf16 %v5516, %v5515
    %v5540 = vpack.c.bf16 %v5518, %v5517
    %v5541 = vpack.c.bf16 %v5520, %v5519
    %v5542 = vpack.c.bf16 %v5522, %v5521
    %v5543 = vpack.c.bf16 %v5524, %v5523
    %v5544 = vpack.c.bf16 %v5526, %v5525
    %v5545 = vpack.c.bf16 %v5528, %v5527
    %v5546 = vpack.c.bf16 %v5530, %v5529
    %v5563 = vunpack.c.l.b16 %v5531
    %v5564 = vunpack.c.h.b16 %v5531
    %v5565 = vunpack.c.l.b16 %v5532
    %v5566 = vunpack.c.h.b16 %v5532
    %v5567 = vunpack.c.l.b16 %v5533
    %v5568 = vunpack.c.h.b16 %v5533
    %v5569 = vunpack.c.l.b16 %v5534
    %v5570 = vunpack.c.h.b16 %v5534
    %v5571 = vunpack.c.l.b16 %v5535
    %v5572 = vunpack.c.h.b16 %v5535
    %v5573 = vunpack.c.l.b16 %v5536
    %v5574 = vunpack.c.h.b16 %v5536
    %v5575 = vunpack.c.l.b16 %v5537
    %v5576 = vunpack.c.h.b16 %v5537
    %v5577 = vunpack.c.l.b16 %v5538
    %v5578 = vunpack.c.h.b16 %v5538
    %v5579 = vunpack.c.l.b16 %v5539
    %v5580 = vunpack.c.h.b16 %v5539
    %v5581 = vunpack.c.l.b16 %v5540
    %v5582 = vunpack.c.h.b16 %v5540
    %v5583 = vunpack.c.l.b16 %v5541
    %v5584 = vunpack.c.h.b16 %v5541
    %v5585 = vunpack.c.l.b16 %v5542
    %v5586 = vunpack.c.h.b16 %v5542
    %v5587 = vunpack.c.l.b16 %v5543
    %v5588 = vunpack.c.h.b16 %v5543
    %v5589 = vunpack.c.l.b16 %v5544
    %v5590 = vunpack.c.h.b16 %v5544
    %v5591 = vunpack.c.l.b16 %v5545
    %v5592 = vunpack.c.h.b16 %v5545
    %v5593 = vunpack.c.l.b16 %v5546
    %v5594 = vunpack.c.h.b16 %v5546
    %v5595 = vpack.c.b16 %v5563, %v5563
    %v5596 = vpack.c.b16 %v5564, %v5564
    %v5597 = vpack.c.b16 %v5565, %v5565
    %v5598 = vpack.c.b16 %v5566, %v5566
    %v5599 = vpack.c.b16 %v5567, %v5567
    %v5600 = vpack.c.b16 %v5568, %v5568
    %v5601 = vpack.c.b16 %v5569, %v5569
    %v5602 = vpack.c.b16 %v5570, %v5570
    %v5603 = vpack.c.b16 %v5571, %v5571
    %v5604 = vpack.c.b16 %v5572, %v5572
    %v5605 = vpack.c.b16 %v5573, %v5573
    %v5606 = vpack.c.b16 %v5574, %v5574
    %v5607 = vpack.c.b16 %v5575, %v5575
    %v5608 = vpack.c.b16 %v5576, %v5576
    %v5609 = vpack.c.b16 %v5577, %v5577
    %v5610 = vpack.c.b16 %v5578, %v5578
    %v5611 = vpack.c.b16 %v5579, %v5579
    %v5612 = vpack.c.b16 %v5580, %v5580
    %v5613 = vpack.c.b16 %v5581, %v5581
    %v5614 = vpack.c.b16 %v5582, %v5582
    %v5615 = vpack.c.b16 %v5583, %v5583
    %v5616 = vpack.c.b16 %v5584, %v5584
    %v5617 = vpack.c.b16 %v5585, %v5585
    %v5618 = vpack.c.b16 %v5586, %v5586
    %v5619 = vpack.c.b16 %v5587, %v5587
    %v5620 = vpack.c.b16 %v5588, %v5588
    %v5621 = vpack.c.b16 %v5589, %v5589
    %v5622 = vpack.c.b16 %v5590, %v5590
    %v5623 = vpack.c.b16 %v5591, %v5591
    %v5624 = vpack.c.b16 %v5592, %v5592
    %v5625 = vpack.c.b16 %v5593, %v5593
    %v5626 = vpack.c.b16 %v5594, %v5594
    %v5628 = vshrl.u32 %v5595, 16
    %v5630 = vrot.slane %v5628, 7
    %v5631 = vshll.u32 %v5595, 16
    %v5633 = vor.u32 %v5630, %v5631
    %v5634 = vrot.slane %v5630, 4
    %v5636 = vshrl.u32 %v5596, 16
    %v5638 = vrot.slane %v5636, 7
    %v5639 = vshll.u32 %v5596, 16
    %v5641 = vor.u32 %v5638, %v5639
    %v5642 = vsel %vm1803, %v5634, %v5641
    %v5643 = vrot.slane %v5638, 4
    %v5645 = vshrl.u32 %v5597, 16
    %v5647 = vrot.slane %v5645, 7
    %v5648 = vshll.u32 %v5597, 16
    %v5650 = vor.u32 %v5647, %v5648
    %v5651 = vrot.slane %v5647, 4
    %v5653 = vshrl.u32 %v5598, 16
    %v5655 = vrot.slane %v5653, 7
    %v5656 = vshll.u32 %v5598, 16
    %v5658 = vor.u32 %v5655, %v5656
    %v5659 = vsel %vm1803, %v5651, %v5658
    %v5660 = vrot.slane %v5655, 4
    %v5662 = vshrl.u32 %v5599, 16
    %v5664 = vrot.slane %v5662, 7
    %v5665 = vshll.u32 %v5599, 16
    %v5667 = vor.u32 %v5664, %v5665
    %v5668 = vrot.slane %v5664, 4
    %v5670 = vshrl.u32 %v5600, 16
    %v5672 = vrot.slane %v5670, 7
    %v5673 = vshll.u32 %v5600, 16
    %v5675 = vor.u32 %v5672, %v5673
    %v5676 = vsel %vm1803, %v5668, %v5675
    %v5677 = vrot.slane %v5672, 4
    %v5679 = vshrl.u32 %v5601, 16
    %v5681 = vrot.slane %v5679, 7
    %v5682 = vshll.u32 %v5601, 16
    %v5684 = vor.u32 %v5681, %v5682
    %v5685 = vrot.slane %v5681, 4
    %v5687 = vshrl.u32 %v5602, 16
    %v5689 = vrot.slane %v5687, 7
    %v5690 = vshll.u32 %v5602, 16
    %v5692 = vor.u32 %v5689, %v5690
    %v5693 = vsel %vm1803, %v5685, %v5692
    %v5694 = vrot.slane %v5689, 4
    %v5696 = vshrl.u32 %v5603, 16
    %v5698 = vrot.slane %v5696, 7
    %v5699 = vshll.u32 %v5603, 16
    %v5701 = vor.u32 %v5698, %v5699
    %v5702 = vrot.slane %v5698, 4
    %v5704 = vshrl.u32 %v5604, 16
    %v5706 = vrot.slane %v5704, 7
    %v5707 = vshll.u32 %v5604, 16
    %v5709 = vor.u32 %v5706, %v5707
    %v5710 = vsel %vm1803, %v5702, %v5709
    %v5711 = vrot.slane %v5706, 4
    %v5713 = vshrl.u32 %v5605, 16
    %v5715 = vrot.slane %v5713, 7
    %v5716 = vshll.u32 %v5605, 16
    %v5718 = vor.u32 %v5715, %v5716
    %v5719 = vrot.slane %v5715, 4
    %v5721 = vshrl.u32 %v5606, 16
    %v5723 = vrot.slane %v5721, 7
    %v5724 = vshll.u32 %v5606, 16
    %v5726 = vor.u32 %v5723, %v5724
    %v5727 = vsel %vm1803, %v5719, %v5726
    %v5728 = vrot.slane %v5723, 4
    %v5730 = vshrl.u32 %v5607, 16
    %v5732 = vrot.slane %v5730, 7
    %v5733 = vshll.u32 %v5607, 16
    %v5735 = vor.u32 %v5732, %v5733
    %v5736 = vrot.slane %v5732, 4
    %v5738 = vshrl.u32 %v5608, 16
    %v5740 = vrot.slane %v5738, 7
    %v5741 = vshll.u32 %v5608, 16
    %v5743 = vor.u32 %v5740, %v5741
    %v5744 = vsel %vm1803, %v5736, %v5743
    %v5745 = vrot.slane %v5740, 4
    %v5747 = vshrl.u32 %v5609, 16
    %v5749 = vrot.slane %v5747, 7
    %v5750 = vshll.u32 %v5609, 16
    %v5752 = vor.u32 %v5749, %v5750
    %v5753 = vrot.slane %v5749, 4
    %v5755 = vshrl.u32 %v5610, 16
    %v5757 = vrot.slane %v5755, 7
    %v5758 = vshll.u32 %v5610, 16
    %v5760 = vor.u32 %v5757, %v5758
    %v5761 = vsel %vm1803, %v5753, %v5760
    %v5762 = vrot.slane %v5757, 4
    %v5764 = vshrl.u32 %v5611, 16
    %v5766 = vrot.slane %v5764, 7
    %v5767 = vshll.u32 %v5611, 16
    %v5769 = vor.u32 %v5766, %v5767
    %v5770 = vrot.slane %v5766, 4
    %v5772 = vshrl.u32 %v5612, 16
    %v5774 = vrot.slane %v5772, 7
    %v5775 = vshll.u32 %v5612, 16
    %v5777 = vor.u32 %v5774, %v5775
    %v5778 = vsel %vm1803, %v5770, %v5777
    %v5779 = vrot.slane %v5774, 4
    %v5781 = vshrl.u32 %v5613, 16
    %v5783 = vrot.slane %v5781, 7
    %v5784 = vshll.u32 %v5613, 16
    %v5786 = vor.u32 %v5783, %v5784
    %v5787 = vrot.slane %v5783, 4
    %v5789 = vshrl.u32 %v5614, 16
    %v5791 = vrot.slane %v5789, 7
    %v5792 = vshll.u32 %v5614, 16
    %v5794 = vor.u32 %v5791, %v5792
    %v5795 = vsel %vm1803, %v5787, %v5794
    %v5796 = vrot.slane %v5791, 4
    %v5798 = vshrl.u32 %v5615, 16
    %v5800 = vrot.slane %v5798, 7
    %v5801 = vshll.u32 %v5615, 16
    %v5803 = vor.u32 %v5800, %v5801
    %v5804 = vrot.slane %v5800, 4
    %v5806 = vshrl.u32 %v5616, 16
    %v5808 = vrot.slane %v5806, 7
    %v5809 = vshll.u32 %v5616, 16
    %v5811 = vor.u32 %v5808, %v5809
    %v5812 = vsel %vm1803, %v5804, %v5811
    %v5813 = vrot.slane %v5808, 4
    %v5815 = vshrl.u32 %v5617, 16
    %v5817 = vrot.slane %v5815, 7
    %v5818 = vshll.u32 %v5617, 16
    %v5820 = vor.u32 %v5817, %v5818
    %v5821 = vrot.slane %v5817, 4
    %v5823 = vshrl.u32 %v5618, 16
    %v5825 = vrot.slane %v5823, 7
    %v5826 = vshll.u32 %v5618, 16
    %v5828 = vor.u32 %v5825, %v5826
    %v5829 = vsel %vm1803, %v5821, %v5828
    %v5830 = vrot.slane %v5825, 4
    %v5832 = vshrl.u32 %v5619, 16
    %v5834 = vrot.slane %v5832, 7
    %v5835 = vshll.u32 %v5619, 16
    %v5837 = vor.u32 %v5834, %v5835
    %v5838 = vrot.slane %v5834, 4
    %v5840 = vshrl.u32 %v5620, 16
    %v5842 = vrot.slane %v5840, 7
    %v5843 = vshll.u32 %v5620, 16
    %v5845 = vor.u32 %v5842, %v5843
    %v5846 = vsel %vm1803, %v5838, %v5845
    %v5847 = vrot.slane %v5842, 4
    %v5849 = vshrl.u32 %v5621, 16
    %v5851 = vrot.slane %v5849, 7
    %v5852 = vshll.u32 %v5621, 16
    %v5854 = vor.u32 %v5851, %v5852
    %v5855 = vrot.slane %v5851, 4
    %v5857 = vshrl.u32 %v5622, 16
    %v5859 = vrot.slane %v5857, 7
    %v5860 = vshll.u32 %v5622, 16
    %v5862 = vor.u32 %v5859, %v5860
    %v5863 = vsel %vm1803, %v5855, %v5862
    %v5864 = vrot.slane %v5859, 4
    %v5866 = vshrl.u32 %v5623, 16
    %v5868 = vrot.slane %v5866, 7
    %v5869 = vshll.u32 %v5623, 16
    %v5871 = vor.u32 %v5868, %v5869
    %v5872 = vrot.slane %v5868, 4
    %v5874 = vshrl.u32 %v5624, 16
    %v5876 = vrot.slane %v5874, 7
    %v5877 = vshll.u32 %v5624, 16
    %v5879 = vor.u32 %v5876, %v5877
    %v5880 = vsel %vm1803, %v5872, %v5879
    %v5881 = vrot.slane %v5876, 4
    %v5883 = vshrl.u32 %v5625, 16
    %v5885 = vrot.slane %v5883, 7
    %v5886 = vshll.u32 %v5625, 16
    %v5888 = vor.u32 %v5885, %v5886
    %v5889 = vrot.slane %v5885, 4
    %v5891 = vshrl.u32 %v5626, 16
    %v5893 = vrot.slane %v5891, 7
    %v5894 = vshll.u32 %v5626, 16
    %v5896 = vor.u32 %v5893, %v5894
    %v5897 = vsel %vm1803, %v5889, %v5896
    %v5898 = vrot.slane %v5893, 4
    %v5947 = vld [vmem:[%s2124] sm:$0xf]
    %v5948 = vsel %vm2127, %v5633, %v5947
    %5949 = vst [vmem:[%s2124] sm:$0xf] %v5948
    %5950 = vst.msk [vmem:[%s2124 + $0x4] sm:$0xf] %vm22, %v5642
    %v5951 = vld [vmem:[%s2124 + $0x8] sm:$0x1]
    %v5952 = vsel %vm2133, %v5643, %v5951
    %5953 = vst [vmem:[%s2124 + $0x8] sm:$0x1] %v5952
    %v5954 = vld [vmem:[%s2124 + $0xc] sm:$0xf]
    %v5955 = vsel %vm2127, %v5650, %v5954
    %5956 = vst [vmem:[%s2124 + $0xc] sm:$0xf] %v5955
    %5957 = vst.msk [vmem:[%s2124 + $0x10] sm:$0xf] %vm22, %v5659
    %v5958 = vld [vmem:[%s2124 + $0x14] sm:$0x1]
    %v5959 = vsel %vm2133, %v5660, %v5958
    %5960 = vst [vmem:[%s2124 + $0x14] sm:$0x1] %v5959
    %v5961 = vld [vmem:[%s2124 + $0x18] sm:$0xf]
    %v5962 = vsel %vm2127, %v5667, %v5961
    %5963 = vst [vmem:[%s2124 + $0x18] sm:$0xf] %v5962
    %5964 = vst.msk [vmem:[%s2124 + $0x1c] sm:$0xf] %vm22, %v5676
    %v5965 = vld [vmem:[%s2124 + $0x20] sm:$0x1]
    %v5966 = vsel %vm2133, %v5677, %v5965
    %5967 = vst [vmem:[%s2124 + $0x20] sm:$0x1] %v5966
    %v5968 = vld [vmem:[%s2124 + $0x24] sm:$0xf]
    %v5969 = vsel %vm2127, %v5684, %v5968
    %5970 = vst [vmem:[%s2124 + $0x24] sm:$0xf] %v5969
    %5971 = vst.msk [vmem:[%s2124 + $0x28] sm:$0xf] %vm22, %v5693
    %v5972 = vld [vmem:[%s2124 + $0x2c] sm:$0x1]
    %v5973 = vsel %vm2133, %v5694, %v5972
    %5974 = vst [vmem:[%s2124 + $0x2c] sm:$0x1] %v5973
    %v5975 = vld [vmem:[%s2124 + $0x30] sm:$0xf]
    %v5976 = vsel %vm2127, %v5701, %v5975
    %5977 = vst [vmem:[%s2124 + $0x30] sm:$0xf] %v5976
    %5978 = vst.msk [vmem:[%s2124 + $0x34] sm:$0xf] %vm22, %v5710
    %v5979 = vld [vmem:[%s2124 + $0x38] sm:$0x1]
    %v5980 = vsel %vm2133, %v5711, %v5979
    %5981 = vst [vmem:[%s2124 + $0x38] sm:$0x1] %v5980
    %v5982 = vld [vmem:[%s2124 + $0x3c] sm:$0xf]
    %v5983 = vsel %vm2127, %v5718, %v5982
    %5984 = vst [vmem:[%s2124 + $0x3c] sm:$0xf] %v5983
    %5985 = vst.msk [vmem:[%s2124 + $0x40] sm:$0xf] %vm22, %v5727
    %v5986 = vld [vmem:[%s2124 + $0x44] sm:$0x1]
    %v5987 = vsel %vm2133, %v5728, %v5986
    %5988 = vst [vmem:[%s2124 + $0x44] sm:$0x1] %v5987
    %v5989 = vld [vmem:[%s2124 + $0x48] sm:$0xf]
    %v5990 = vsel %vm2127, %v5735, %v5989
    %5991 = vst [vmem:[%s2124 + $0x48] sm:$0xf] %v5990
    %5992 = vst.msk [vmem:[%s2124 + $0x4c] sm:$0xf] %vm22, %v5744
    %v5993 = vld [vmem:[%s2124 + $0x50] sm:$0x1]
    %v5994 = vsel %vm2133, %v5745, %v5993
    %5995 = vst [vmem:[%s2124 + $0x50] sm:$0x1] %v5994
    %v5996 = vld [vmem:[%s2124 + $0x54] sm:$0xf]
    %v5997 = vsel %vm2127, %v5752, %v5996
    %5998 = vst [vmem:[%s2124 + $0x54] sm:$0xf] %v5997
    %5999 = vst.msk [vmem:[%s2124 + $0x58] sm:$0xf] %vm22, %v5761
    %v6000 = vld [vmem:[%s2124 + $0x5c] sm:$0x1]
    %v6001 = vsel %vm2133, %v5762, %v6000
    %6002 = vst [vmem:[%s2124 + $0x5c] sm:$0x1] %v6001
    %v6003 = vld [vmem:[%s2124 + $0x60] sm:$0xf]
    %v6004 = vsel %vm2127, %v5769, %v6003
    %6005 = vst [vmem:[%s2124 + $0x60] sm:$0xf] %v6004
    %6006 = vst.msk [vmem:[%s2124 + $0x64] sm:$0xf] %vm22, %v5778
    %v6007 = vld [vmem:[%s2124 + $0x68] sm:$0x1]
    %v6008 = vsel %vm2133, %v5779, %v6007
    %6009 = vst [vmem:[%s2124 + $0x68] sm:$0x1] %v6008
    %v6010 = vld [vmem:[%s2124 + $0x6c] sm:$0xf]
    %v6011 = vsel %vm2127, %v5786, %v6010
    %6012 = vst [vmem:[%s2124 + $0x6c] sm:$0xf] %v6011
    %6013 = vst.msk [vmem:[%s2124 + $0x70] sm:$0xf] %vm22, %v5795
    %v6014 = vld [vmem:[%s2124 + $0x74] sm:$0x1]
    %v6015 = vsel %vm2133, %v5796, %v6014
    %6016 = vst [vmem:[%s2124 + $0x74] sm:$0x1] %v6015
    %v6017 = vld [vmem:[%s2124 + $0x78] sm:$0xf]
    %v6018 = vsel %vm2127, %v5803, %v6017
    %6019 = vst [vmem:[%s2124 + $0x78] sm:$0xf] %v6018
    %6020 = vst.msk [vmem:[%s2124 + $0x7c] sm:$0xf] %vm22, %v5812
    %v6021 = vld [vmem:[%s2124 + $0x80] sm:$0x1]
    %v6022 = vsel %vm2133, %v5813, %v6021
    %6023 = vst [vmem:[%s2124 + $0x80] sm:$0x1] %v6022
    %v6024 = vld [vmem:[%s2124 + $0x84] sm:$0xf]
    %v6025 = vsel %vm2127, %v5820, %v6024
    %6026 = vst [vmem:[%s2124 + $0x84] sm:$0xf] %v6025
    %6027 = vst.msk [vmem:[%s2124 + $0x88] sm:$0xf] %vm22, %v5829
    %v6028 = vld [vmem:[%s2124 + $0x8c] sm:$0x1]
    %v6029 = vsel %vm2133, %v5830, %v6028
    %6030 = vst [vmem:[%s2124 + $0x8c] sm:$0x1] %v6029
    %v6031 = vld [vmem:[%s2124 + $0x90] sm:$0xf]
    %v6032 = vsel %vm2127, %v5837, %v6031
    %6033 = vst [vmem:[%s2124 + $0x90] sm:$0xf] %v6032
    %6034 = vst.msk [vmem:[%s2124 + $0x94] sm:$0xf] %vm22, %v5846
    %v6035 = vld [vmem:[%s2124 + $0x98] sm:$0x1]
    %v6036 = vsel %vm2133, %v5847, %v6035
    %6037 = vst [vmem:[%s2124 + $0x98] sm:$0x1] %v6036
    %v6038 = vld [vmem:[%s2124 + $0x9c] sm:$0xf]
    %v6039 = vsel %vm2127, %v5854, %v6038
    %6040 = vst [vmem:[%s2124 + $0x9c] sm:$0xf] %v6039
    %6041 = vst.msk [vmem:[%s2124 + $0xa0] sm:$0xf] %vm22, %v5863
    %v6042 = vld [vmem:[%s2124 + $0xa4] sm:$0x1]
    %v6043 = vsel %vm2133, %v5864, %v6042
    %6044 = vst [vmem:[%s2124 + $0xa4] sm:$0x1] %v6043
    %v6045 = vld [vmem:[%s2124 + $0xa8] sm:$0xf]
    %v6046 = vsel %vm2127, %v5871, %v6045
    %6047 = vst [vmem:[%s2124 + $0xa8] sm:$0xf] %v6046
    %6048 = vst.msk [vmem:[%s2124 + $0xac] sm:$0xf] %vm22, %v5880
    %v6049 = vld [vmem:[%s2124 + $0xb0] sm:$0x1]
    %v6050 = vsel %vm2133, %v5881, %v6049
    %6051 = vst [vmem:[%s2124 + $0xb0] sm:$0x1] %v6050
    %v6052 = vld [vmem:[%s2124 + $0xb4] sm:$0xf]
    %v6053 = vsel %vm2127, %v5888, %v6052
    %6054 = vst [vmem:[%s2124 + $0xb4] sm:$0xf] %v6053
    %6055 = vst.msk [vmem:[%s2124 + $0xb8] sm:$0xf] %vm22, %v5897
    %v6056 = vld [vmem:[%s2124 + $0xbc] sm:$0x1]
    %v6057 = vsel %vm2133, %v5898, %v6056
    %6058 = vst [vmem:[%s2124 + $0xbc] sm:$0x1] %v6057
    %v6059 = vld [vmem:[#allocation2] sm:$0xf]
    %v6060 = vld [vmem:[#allocation2 + $0x4] sm:$0xf]
    %v6061 = vld [vmem:[#allocation2 + $0x8] sm:$0x1]
    %v6062 = vld [vmem:[#allocation2 + $0xc] sm:$0xf]
    %v6063 = vld [vmem:[#allocation2 + $0x10] sm:$0xf]
    %v6064 = vld [vmem:[#allocation2 + $0x14] sm:$0x1]
    %v6065 = vld [vmem:[#allocation2 + $0x18] sm:$0xf]
    %v6066 = vld [vmem:[#allocation2 + $0x1c] sm:$0xf]
    %v6067 = vld [vmem:[#allocation2 + $0x20] sm:$0x1]
    %v6068 = vld [vmem:[#allocation2 + $0x24] sm:$0xf]
    %v6069 = vld [vmem:[#allocation2 + $0x28] sm:$0xf]
    %v6070 = vld [vmem:[#allocation2 + $0x2c] sm:$0x1]
    %v6071 = vld [vmem:[#allocation2 + $0x30] sm:$0xf]
    %v6072 = vld [vmem:[#allocation2 + $0x34] sm:$0xf]
    %v6073 = vld [vmem:[#allocation2 + $0x38] sm:$0x1]
    %v6074 = vld [vmem:[#allocation2 + $0x3c] sm:$0xf]
    %v6075 = vld [vmem:[#allocation2 + $0x40] sm:$0xf]
    %v6076 = vld [vmem:[#allocation2 + $0x44] sm:$0x1]
    %v6077 = vld [vmem:[#allocation2 + $0x48] sm:$0xf]
    %v6078 = vld [vmem:[#allocation2 + $0x4c] sm:$0xf]
    %v6079 = vld [vmem:[#allocation2 + $0x50] sm:$0x1]
    %v6080 = vld [vmem:[#allocation2 + $0x54] sm:$0xf]
    %v6081 = vld [vmem:[#allocation2 + $0x58] sm:$0xf]
    %v6082 = vld [vmem:[#allocation2 + $0x5c] sm:$0x1]
    %v6083 = vld [vmem:[#allocation2 + $0x60] sm:$0xf]
    %v6084 = vld [vmem:[#allocation2 + $0x64] sm:$0xf]
    %v6085 = vld [vmem:[#allocation2 + $0x68] sm:$0x1]
    %v6086 = vld [vmem:[#allocation2 + $0x6c] sm:$0xf]
    %v6087 = vld [vmem:[#allocation2 + $0x70] sm:$0xf]
    %v6088 = vld [vmem:[#allocation2 + $0x74] sm:$0x1]
    %v6089 = vld [vmem:[#allocation2 + $0x78] sm:$0xf]
    %v6090 = vld [vmem:[#allocation2 + $0x7c] sm:$0xf]
    %v6091 = vld [vmem:[#allocation2 + $0x80] sm:$0x1]
    %v6092 = vld [vmem:[#allocation2 + $0x84] sm:$0xf]
    %v6093 = vld [vmem:[#allocation2 + $0x88] sm:$0xf]
    %v6094 = vld [vmem:[#allocation2 + $0x8c] sm:$0x1]
    %v6095 = vld [vmem:[#allocation2 + $0x90] sm:$0xf]
    %v6096 = vld [vmem:[#allocation2 + $0x94] sm:$0xf]
    %v6097 = vld [vmem:[#allocation2 + $0x98] sm:$0x1]
    %v6098 = vld [vmem:[#allocation2 + $0x9c] sm:$0xf]
    %v6099 = vld [vmem:[#allocation2 + $0xa0] sm:$0xf]
    %v6100 = vld [vmem:[#allocation2 + $0xa4] sm:$0x1]
    %v6101 = vld [vmem:[#allocation2 + $0xa8] sm:$0xf]
    %v6102 = vld [vmem:[#allocation2 + $0xac] sm:$0xf]
    %v6103 = vld [vmem:[#allocation2 + $0xb0] sm:$0x1]
    %v6104 = vld [vmem:[#allocation2 + $0xb4] sm:$0xf]
    %v6105 = vld [vmem:[#allocation2 + $0xb8] sm:$0xf]
    %v6106 = vld [vmem:[#allocation2 + $0xbc] sm:$0x1]
    %v6107 = vld [vmem:[#allocation2 + $0xc0] sm:$0xf]
    %v6108 = vld [vmem:[#allocation2 + $0xc4] sm:$0xf]
    %v6109 = vld [vmem:[#allocation2 + $0xc8] sm:$0x1]
    %v6110 = vld [vmem:[#allocation2 + $0xcc] sm:$0xf]
    %v6111 = vld [vmem:[#allocation2 + $0xd0] sm:$0xf]
    %v6112 = vld [vmem:[#allocation2 + $0xd4] sm:$0x1]
    %v6114 = vshrl.u32 %v6059, 16
    %v6116 = vrot.slane %v6114, 4
    %v6117 = vshll.u32 %v6059, 16
    %v6119 = vrot.slane %v6117, 5
    %v6120 = vor.u32 %v6116, %v6119
    %v6121 = vrot.slane %v6120, 4
    %v6123 = vshll.u32 %v6060, 16
    %v6125 = vrot.slane %v6123, 5
    %v6126 = vsel %vm134, %v6121, %v6125
    %v6127 = vshrl.u32 %v6060, 16
    %v6129 = vrot.slane %v6127, 4
    %v6130 = vor.u32 %v6129, %v6125
    %v6131 = vrot.slane %v6130, 4
    %v6133 = vshll.u32 %v6061, 16
    %v6135 = vrot.slane %v6133, 5
    %v6136 = vsel %vm134, %v6131, %v6135
    %v6138 = vshrl.u32 %v6062, 16
    %v6140 = vrot.slane %v6138, 4
    %v6141 = vshll.u32 %v6062, 16
    %v6143 = vrot.slane %v6141, 5
    %v6144 = vor.u32 %v6140, %v6143
    %v6145 = vrot.slane %v6144, 4
    %v6147 = vshll.u32 %v6063, 16
    %v6149 = vrot.slane %v6147, 5
    %v6150 = vsel %vm134, %v6145, %v6149
    %v6151 = vshrl.u32 %v6063, 16
    %v6153 = vrot.slane %v6151, 4
    %v6154 = vor.u32 %v6153, %v6149
    %v6155 = vrot.slane %v6154, 4
    %v6157 = vshll.u32 %v6064, 16
    %v6159 = vrot.slane %v6157, 5
    %v6160 = vsel %vm134, %v6155, %v6159
    %v6162 = vshrl.u32 %v6065, 16
    %v6164 = vrot.slane %v6162, 4
    %v6165 = vshll.u32 %v6065, 16
    %v6167 = vrot.slane %v6165, 5
    %v6168 = vor.u32 %v6164, %v6167
    %v6169 = vrot.slane %v6168, 4
    %v6171 = vshll.u32 %v6066, 16
    %v6173 = vrot.slane %v6171, 5
    %v6174 = vsel %vm134, %v6169, %v6173
    %v6175 = vshrl.u32 %v6066, 16
    %v6177 = vrot.slane %v6175, 4
    %v6178 = vor.u32 %v6177, %v6173
    %v6179 = vrot.slane %v6178, 4
    %v6181 = vshll.u32 %v6067, 16
    %v6183 = vrot.slane %v6181, 5
    %v6184 = vsel %vm134, %v6179, %v6183
    %v6186 = vshrl.u32 %v6068, 16
    %v6188 = vrot.slane %v6186, 4
    %v6189 = vshll.u32 %v6068, 16
    %v6191 = vrot.slane %v6189, 5
    %v6192 = vor.u32 %v6188, %v6191
    %v6193 = vrot.slane %v6192, 4
    %v6195 = vshll.u32 %v6069, 16
    %v6197 = vrot.slane %v6195, 5
    %v6198 = vsel %vm134, %v6193, %v6197
    %v6199 = vshrl.u32 %v6069, 16
    %v6201 = vrot.slane %v6199, 4
    %v6202 = vor.u32 %v6201, %v6197
    %v6203 = vrot.slane %v6202, 4
    %v6205 = vshll.u32 %v6070, 16
    %v6207 = vrot.slane %v6205, 5
    %v6208 = vsel %vm134, %v6203, %v6207
    %v6210 = vshrl.u32 %v6071, 16
    %v6212 = vrot.slane %v6210, 4
    %v6213 = vshll.u32 %v6071, 16
    %v6215 = vrot.slane %v6213, 5
    %v6216 = vor.u32 %v6212, %v6215
    %v6217 = vrot.slane %v6216, 4
    %v6219 = vshll.u32 %v6072, 16
    %v6221 = vrot.slane %v6219, 5
    %v6222 = vsel %vm134, %v6217, %v6221
    %v6223 = vshrl.u32 %v6072, 16
    %v6225 = vrot.slane %v6223, 4
    %v6226 = vor.u32 %v6225, %v6221
    %v6227 = vrot.slane %v6226, 4
    %v6229 = vshll.u32 %v6073, 16
    %v6231 = vrot.slane %v6229, 5
    %v6232 = vsel %vm134, %v6227, %v6231
    %v6234 = vshrl.u32 %v6074, 16
    %v6236 = vrot.slane %v6234, 4
    %v6237 = vshll.u32 %v6074, 16
    %v6239 = vrot.slane %v6237, 5
    %v6240 = vor.u32 %v6236, %v6239
    %v6241 = vrot.slane %v6240, 4
    %v6243 = vshll.u32 %v6075, 16
    %v6245 = vrot.slane %v6243, 5
    %v6246 = vsel %vm134, %v6241, %v6245
    %v6247 = vshrl.u32 %v6075, 16
    %v6249 = vrot.slane %v6247, 4
    %v6250 = vor.u32 %v6249, %v6245
    %v6251 = vrot.slane %v6250, 4
    %v6253 = vshll.u32 %v6076, 16
    %v6255 = vrot.slane %v6253, 5
    %v6256 = vsel %vm134, %v6251, %v6255
    %v6258 = vshrl.u32 %v6077, 16
    %v6260 = vrot.slane %v6258, 4
    %v6261 = vshll.u32 %v6077, 16
    %v6263 = vrot.slane %v6261, 5
    %v6264 = vor.u32 %v6260, %v6263
    %v6265 = vrot.slane %v6264, 4
    %v6267 = vshll.u32 %v6078, 16
    %v6269 = vrot.slane %v6267, 5
    %v6270 = vsel %vm134, %v6265, %v6269
    %v6271 = vshrl.u32 %v6078, 16
    %v6273 = vrot.slane %v6271, 4
    %v6274 = vor.u32 %v6273, %v6269
    %v6275 = vrot.slane %v6274, 4
    %v6277 = vshll.u32 %v6079, 16
    %v6279 = vrot.slane %v6277, 5
    %v6280 = vsel %vm134, %v6275, %v6279
    %v6282 = vshrl.u32 %v6080, 16
    %v6284 = vrot.slane %v6282, 4
    %v6285 = vshll.u32 %v6080, 16
    %v6287 = vrot.slane %v6285, 5
    %v6288 = vor.u32 %v6284, %v6287
    %v6289 = vrot.slane %v6288, 4
    %v6291 = vshll.u32 %v6081, 16
    %v6293 = vrot.slane %v6291, 5
    %v6294 = vsel %vm134, %v6289, %v6293
    %v6295 = vshrl.u32 %v6081, 16
    %v6297 = vrot.slane %v6295, 4
    %v6298 = vor.u32 %v6297, %v6293
    %v6299 = vrot.slane %v6298, 4
    %v6301 = vshll.u32 %v6082, 16
    %v6303 = vrot.slane %v6301, 5
    %v6304 = vsel %vm134, %v6299, %v6303
    %v6306 = vshrl.u32 %v6083, 16
    %v6308 = vrot.slane %v6306, 4
    %v6309 = vshll.u32 %v6083, 16
    %v6311 = vrot.slane %v6309, 5
    %v6312 = vor.u32 %v6308, %v6311
    %v6313 = vrot.slane %v6312, 4
    %v6315 = vshll.u32 %v6084, 16
    %v6317 = vrot.slane %v6315, 5
    %v6318 = vsel %vm134, %v6313, %v6317
    %v6319 = vshrl.u32 %v6084, 16
    %v6321 = vrot.slane %v6319, 4
    %v6322 = vor.u32 %v6321, %v6317
    %v6323 = vrot.slane %v6322, 4
    %v6325 = vshll.u32 %v6085, 16
    %v6327 = vrot.slane %v6325, 5
    %v6328 = vsel %vm134, %v6323, %v6327
    %v6330 = vshrl.u32 %v6086, 16
    %v6332 = vrot.slane %v6330, 4
    %v6333 = vshll.u32 %v6086, 16
    %v6335 = vrot.slane %v6333, 5
    %v6336 = vor.u32 %v6332, %v6335
    %v6337 = vrot.slane %v6336, 4
    %v6339 = vshll.u32 %v6087, 16
    %v6341 = vrot.slane %v6339, 5
    %v6342 = vsel %vm134, %v6337, %v6341
    %v6343 = vshrl.u32 %v6087, 16
    %v6345 = vrot.slane %v6343, 4
    %v6346 = vor.u32 %v6345, %v6341
    %v6347 = vrot.slane %v6346, 4
    %v6349 = vshll.u32 %v6088, 16
    %v6351 = vrot.slane %v6349, 5
    %v6352 = vsel %vm134, %v6347, %v6351
    %v6354 = vshrl.u32 %v6089, 16
    %v6356 = vrot.slane %v6354, 4
    %v6357 = vshll.u32 %v6089, 16
    %v6359 = vrot.slane %v6357, 5
    %v6360 = vor.u32 %v6356, %v6359
    %v6361 = vrot.slane %v6360, 4
    %v6363 = vshll.u32 %v6090, 16
    %v6365 = vrot.slane %v6363, 5
    %v6366 = vsel %vm134, %v6361, %v6365
    %v6367 = vshrl.u32 %v6090, 16
    %v6369 = vrot.slane %v6367, 4
    %v6370 = vor.u32 %v6369, %v6365
    %v6371 = vrot.slane %v6370, 4
    %v6373 = vshll.u32 %v6091, 16
    %v6375 = vrot.slane %v6373, 5
    %v6376 = vsel %vm134, %v6371, %v6375
    %v6378 = vshrl.u32 %v6092, 16
    %v6380 = vrot.slane %v6378, 4
    %v6381 = vshll.u32 %v6092, 16
    %v6383 = vrot.slane %v6381, 5
    %v6384 = vor.u32 %v6380, %v6383
    %v6385 = vrot.slane %v6384, 4
    %v6387 = vshll.u32 %v6093, 16
    %v6389 = vrot.slane %v6387, 5
    %v6390 = vsel %vm134, %v6385, %v6389
    %v6391 = vshrl.u32 %v6093, 16
    %v6393 = vrot.slane %v6391, 4
    %v6394 = vor.u32 %v6393, %v6389
    %v6395 = vrot.slane %v6394, 4
    %v6397 = vshll.u32 %v6094, 16
    %v6399 = vrot.slane %v6397, 5
    %v6400 = vsel %vm134, %v6395, %v6399
    %v6402 = vshrl.u32 %v6095, 16
    %v6404 = vrot.slane %v6402, 4
    %v6405 = vshll.u32 %v6095, 16
    %v6407 = vrot.slane %v6405, 5
    %v6408 = vor.u32 %v6404, %v6407
    %v6409 = vrot.slane %v6408, 4
    %v6411 = vshll.u32 %v6096, 16
    %v6413 = vrot.slane %v6411, 5
    %v6414 = vsel %vm134, %v6409, %v6413
    %v6415 = vshrl.u32 %v6096, 16
    %v6417 = vrot.slane %v6415, 4
    %v6418 = vor.u32 %v6417, %v6413
    %v6419 = vrot.slane %v6418, 4
    %v6421 = vshll.u32 %v6097, 16
    %v6423 = vrot.slane %v6421, 5
    %v6424 = vsel %vm134, %v6419, %v6423
    %v6426 = vshrl.u32 %v6098, 16
    %v6428 = vrot.slane %v6426, 4
    %v6429 = vshll.u32 %v6098, 16
    %v6431 = vrot.slane %v6429, 5
    %v6432 = vor.u32 %v6428, %v6431
    %v6433 = vrot.slane %v6432, 4
    %v6435 = vshll.u32 %v6099, 16
    %v6437 = vrot.slane %v6435, 5
    %v6438 = vsel %vm134, %v6433, %v6437
    %v6439 = vshrl.u32 %v6099, 16
    %v6441 = vrot.slane %v6439, 4
    %v6442 = vor.u32 %v6441, %v6437
    %v6443 = vrot.slane %v6442, 4
    %v6445 = vshll.u32 %v6100, 16
    %v6447 = vrot.slane %v6445, 5
    %v6448 = vsel %vm134, %v6443, %v6447
    %v6450 = vshrl.u32 %v6101, 16
    %v6452 = vrot.slane %v6450, 4
    %v6453 = vshll.u32 %v6101, 16
    %v6455 = vrot.slane %v6453, 5
    %v6456 = vor.u32 %v6452, %v6455
    %v6457 = vrot.slane %v6456, 4
    %v6459 = vshll.u32 %v6102, 16
    %v6461 = vrot.slane %v6459, 5
    %v6462 = vsel %vm134, %v6457, %v6461
    %v6463 = vshrl.u32 %v6102, 16
    %v6465 = vrot.slane %v6463, 4
    %v6466 = vor.u32 %v6465, %v6461
    %v6467 = vrot.slane %v6466, 4
    %v6469 = vshll.u32 %v6103, 16
    %v6471 = vrot.slane %v6469, 5
    %v6472 = vsel %vm134, %v6467, %v6471
    %v6474 = vshrl.u32 %v6104, 16
    %v6476 = vrot.slane %v6474, 4
    %v6477 = vshll.u32 %v6104, 16
    %v6479 = vrot.slane %v6477, 5
    %v6480 = vor.u32 %v6476, %v6479
    %v6481 = vrot.slane %v6480, 4
    %v6483 = vshll.u32 %v6105, 16
    %v6485 = vrot.slane %v6483, 5
    %v6486 = vsel %vm134, %v6481, %v6485
    %v6487 = vshrl.u32 %v6105, 16
    %v6489 = vrot.slane %v6487, 4
    %v6490 = vor.u32 %v6489, %v6485
    %v6491 = vrot.slane %v6490, 4
    %v6493 = vshll.u32 %v6106, 16
    %v6495 = vrot.slane %v6493, 5
    %v6496 = vsel %vm134, %v6491, %v6495
    %v6545 = vrot.slane %v6059, 5
    %v6546 = vrot.slane %v6545, 4
    %v6547 = vrot.slane %v6060, 5
    %v6548 = vsel %vm569, %v6546, %v6547
    %v6549 = vrot.slane %v6547, 4
    %v6550 = vrot.slane %v6061, 5
    %v6551 = vsel %vm569, %v6549, %v6550
    %v6552 = vrot.slane %v6062, 5
    %v6553 = vrot.slane %v6552, 4
    %v6554 = vrot.slane %v6063, 5
    %v6555 = vsel %vm569, %v6553, %v6554
    %v6556 = vrot.slane %v6554, 4
    %v6557 = vrot.slane %v6064, 5
    %v6558 = vsel %vm569, %v6556, %v6557
    %v6559 = vrot.slane %v6065, 5
    %v6560 = vrot.slane %v6559, 4
    %v6561 = vrot.slane %v6066, 5
    %v6562 = vsel %vm569, %v6560, %v6561
    %v6563 = vrot.slane %v6561, 4
    %v6564 = vrot.slane %v6067, 5
    %v6565 = vsel %vm569, %v6563, %v6564
    %v6566 = vrot.slane %v6068, 5
    %v6567 = vrot.slane %v6566, 4
    %v6568 = vrot.slane %v6069, 5
    %v6569 = vsel %vm569, %v6567, %v6568
    %v6570 = vrot.slane %v6568, 4
    %v6571 = vrot.slane %v6070, 5
    %v6572 = vsel %vm569, %v6570, %v6571
    %v6573 = vrot.slane %v6071, 5
    %v6574 = vrot.slane %v6573, 4
    %v6575 = vrot.slane %v6072, 5
    %v6576 = vsel %vm569, %v6574, %v6575
    %v6577 = vrot.slane %v6575, 4
    %v6578 = vrot.slane %v6073, 5
    %v6579 = vsel %vm569, %v6577, %v6578
    %v6580 = vrot.slane %v6074, 5
    %v6581 = vrot.slane %v6580, 4
    %v6582 = vrot.slane %v6075, 5
    %v6583 = vsel %vm569, %v6581, %v6582
    %v6584 = vrot.slane %v6582, 4
    %v6585 = vrot.slane %v6076, 5
    %v6586 = vsel %vm569, %v6584, %v6585
    %v6587 = vrot.slane %v6077, 5
    %v6588 = vrot.slane %v6587, 4
    %v6589 = vrot.slane %v6078, 5
    %v6590 = vsel %vm569, %v6588, %v6589
    %v6591 = vrot.slane %v6589, 4
    %v6592 = vrot.slane %v6079, 5
    %v6593 = vsel %vm569, %v6591, %v6592
    %v6594 = vrot.slane %v6080, 5
    %v6595 = vrot.slane %v6594, 4
    %v6596 = vrot.slane %v6081, 5
    %v6597 = vsel %vm569, %v6595, %v6596
    %v6598 = vrot.slane %v6596, 4
    %v6599 = vrot.slane %v6082, 5
    %v6600 = vsel %vm569, %v6598, %v6599
    %v6601 = vrot.slane %v6083, 5
    %v6602 = vrot.slane %v6601, 4
    %v6603 = vrot.slane %v6084, 5
    %v6604 = vsel %vm569, %v6602, %v6603
    %v6605 = vrot.slane %v6603, 4
    %v6606 = vrot.slane %v6085, 5
    %v6607 = vsel %vm569, %v6605, %v6606
    %v6608 = vrot.slane %v6086, 5
    %v6609 = vrot.slane %v6608, 4
    %v6610 = vrot.slane %v6087, 5
    %v6611 = vsel %vm569, %v6609, %v6610
    %v6612 = vrot.slane %v6610, 4
    %v6613 = vrot.slane %v6088, 5
    %v6614 = vsel %vm569, %v6612, %v6613
    %v6615 = vrot.slane %v6089, 5
    %v6616 = vrot.slane %v6615, 4
    %v6617 = vrot.slane %v6090, 5
    %v6618 = vsel %vm569, %v6616, %v6617
    %v6619 = vrot.slane %v6617, 4
    %v6620 = vrot.slane %v6091, 5
    %v6621 = vsel %vm569, %v6619, %v6620
    %v6622 = vrot.slane %v6092, 5
    %v6623 = vrot.slane %v6622, 4
    %v6624 = vrot.slane %v6093, 5
    %v6625 = vsel %vm569, %v6623, %v6624
    %v6626 = vrot.slane %v6624, 4
    %v6627 = vrot.slane %v6094, 5
    %v6628 = vsel %vm569, %v6626, %v6627
    %v6629 = vrot.slane %v6095, 5
    %v6630 = vrot.slane %v6629, 4
    %v6631 = vrot.slane %v6096, 5
    %v6632 = vsel %vm569, %v6630, %v6631
    %v6633 = vrot.slane %v6631, 4
    %v6634 = vrot.slane %v6097, 5
    %v6635 = vsel %vm569, %v6633, %v6634
    %v6636 = vrot.slane %v6098, 5
    %v6637 = vrot.slane %v6636, 4
    %v6638 = vrot.slane %v6099, 5
    %v6639 = vsel %vm569, %v6637, %v6638
    %v6640 = vrot.slane %v6638, 4
    %v6641 = vrot.slane %v6100, 5
    %v6642 = vsel %vm569, %v6640, %v6641
    %v6643 = vrot.slane %v6101, 5
    %v6644 = vrot.slane %v6643, 4
    %v6645 = vrot.slane %v6102, 5
    %v6646 = vsel %vm569, %v6644, %v6645
    %v6647 = vrot.slane %v6645, 4
    %v6648 = vrot.slane %v6103, 5
    %v6649 = vsel %vm569, %v6647, %v6648
    %v6650 = vrot.slane %v6104, 5
    %v6651 = vrot.slane %v6650, 4
    %v6652 = vrot.slane %v6105, 5
    %v6653 = vsel %vm569, %v6651, %v6652
    %v6654 = vrot.slane %v6652, 4
    %v6655 = vrot.slane %v6106, 5
    %v6656 = vsel %vm569, %v6654, %v6655
    %v6658 = vshrl.u32 %v6107, 16
    %v6660 = vrot.slane %v6658, 4
    %v6661 = vshll.u32 %v6107, 16
    %v6663 = vrot.slane %v6661, 5
    %v6664 = vor.u32 %v6660, %v6663
    %v6665 = vrot.slane %v6664, 4
    %v6667 = vshll.u32 %v6108, 16
    %v6669 = vrot.slane %v6667, 5
    %v6670 = vsel %vm134, %v6665, %v6669
    %v6671 = vshrl.u32 %v6108, 16
    %v6673 = vrot.slane %v6671, 4
    %v6674 = vor.u32 %v6673, %v6669
    %v6675 = vrot.slane %v6674, 4
    %v6677 = vshll.u32 %v6109, 16
    %v6679 = vrot.slane %v6677, 5
    %v6680 = vsel %vm134, %v6675, %v6679
    %v6684 = vrot.slane %v6107, 5
    %v6685 = vrot.slane %v6684, 4
    %v6686 = vrot.slane %v6108, 5
    %v6687 = vsel %vm569, %v6685, %v6686
    %v6688 = vrot.slane %v6686, 4
    %v6689 = vrot.slane %v6109, 5
    %v6690 = vsel %vm569, %v6688, %v6689
    %v6692 = vshrl.u32 %v6110, 16
    %v6694 = vrot.slane %v6692, 4
    %v6695 = vshll.u32 %v6110, 16
    %v6697 = vrot.slane %v6695, 5
    %v6698 = vor.u32 %v6694, %v6697
    %v6699 = vrot.slane %v6698, 4
    %v6701 = vshll.u32 %v6111, 16
    %v6703 = vrot.slane %v6701, 5
    %v6704 = vsel %vm134, %v6699, %v6703
    %v6705 = vshrl.u32 %v6111, 16
    %v6707 = vrot.slane %v6705, 4
    %v6708 = vor.u32 %v6707, %v6703
    %v6709 = vrot.slane %v6708, 4
    %v6711 = vshll.u32 %v6112, 16
    %v6713 = vrot.slane %v6711, 5
    %v6714 = vsel %vm134, %v6709, %v6713
    %v6718 = vrot.slane %v6110, 5
    %v6719 = vrot.slane %v6718, 4
    %v6720 = vrot.slane %v6111, 5
    %v6721 = vsel %vm569, %v6719, %v6720
    %v6722 = vrot.slane %v6720, 4
    %v6723 = vrot.slane %v6112, 5
    %v6724 = vsel %vm569, %v6722, %v6723
    %v6725 = vunpack.c.l.b16 %v6059
    %v6726 = vunpack.c.l.b16 %v6060
    %v6727 = vunpack.c.l.b16 %v6062
    %v6728 = vunpack.c.l.b16 %v6063
    %v6729 = vunpack.c.l.b16 %v6065
    %v6730 = vunpack.c.l.b16 %v6066
    %v6731 = vunpack.c.l.b16 %v6068
    %v6732 = vunpack.c.l.b16 %v6069
    %v6733 = vunpack.c.l.b16 %v6071
    %v6734 = vunpack.c.l.b16 %v6072
    %v6735 = vunpack.c.l.b16 %v6074
    %v6736 = vunpack.c.l.b16 %v6075
    %v6737 = vunpack.c.l.b16 %v6077
    %v6738 = vunpack.c.l.b16 %v6078
    %v6739 = vunpack.c.l.b16 %v6080
    %v6740 = vunpack.c.l.b16 %v6081
    %v6741 = vunpack.c.l.b16 %v6083
    %v6742 = vunpack.c.l.b16 %v6084
    %v6743 = vunpack.c.l.b16 %v6086
    %v6744 = vunpack.c.l.b16 %v6087
    %v6745 = vunpack.c.l.b16 %v6089
    %v6746 = vunpack.c.l.b16 %v6090
    %v6747 = vunpack.c.l.b16 %v6092
    %v6748 = vunpack.c.l.b16 %v6093
    %v6749 = vunpack.c.l.b16 %v6095
    %v6750 = vunpack.c.l.b16 %v6096
    %v6751 = vunpack.c.l.b16 %v6098
    %v6752 = vunpack.c.l.b16 %v6099
    %v6753 = vunpack.c.l.b16 %v6101
    %v6754 = vunpack.c.l.b16 %v6102
    %v6755 = vunpack.c.l.b16 %v6104
    %v6756 = vunpack.c.l.b16 %v6105
    %v6757 = vpack.c.b16 %v6726, %v6725
    %v6758 = vpack.c.b16 %v6728, %v6727
    %v6759 = vpack.c.b16 %v6730, %v6729
    %v6760 = vpack.c.b16 %v6732, %v6731
    %v6761 = vpack.c.b16 %v6734, %v6733
    %v6762 = vpack.c.b16 %v6736, %v6735
    %v6763 = vpack.c.b16 %v6738, %v6737
    %v6764 = vpack.c.b16 %v6740, %v6739
    %v6765 = vpack.c.b16 %v6742, %v6741
    %v6766 = vpack.c.b16 %v6744, %v6743
    %v6767 = vpack.c.b16 %v6746, %v6745
    %v6768 = vpack.c.b16 %v6748, %v6747
    %v6769 = vpack.c.b16 %v6750, %v6749
    %v6770 = vpack.c.b16 %v6752, %v6751
    %v6771 = vpack.c.b16 %v6754, %v6753
    %v6772 = vpack.c.b16 %v6756, %v6755
    %v6773 = vunpack.c.l.b16 %v6126
    %v6774 = vunpack.c.l.b16 %v6136
    %v6775 = vunpack.c.l.b16 %v6150
    %v6776 = vunpack.c.l.b16 %v6160
    %v6777 = vunpack.c.l.b16 %v6174
    %v6778 = vunpack.c.l.b16 %v6184
    %v6779 = vunpack.c.l.b16 %v6198
    %v6780 = vunpack.c.l.b16 %v6208
    %v6781 = vunpack.c.l.b16 %v6222
    %v6782 = vunpack.c.l.b16 %v6232
    %v6783 = vunpack.c.l.b16 %v6246
    %v6784 = vunpack.c.l.b16 %v6256
    %v6785 = vunpack.c.l.b16 %v6270
    %v6786 = vunpack.c.l.b16 %v6280
    %v6787 = vunpack.c.l.b16 %v6294
    %v6788 = vunpack.c.l.b16 %v6304
    %v6789 = vunpack.c.l.b16 %v6318
    %v6790 = vunpack.c.l.b16 %v6328
    %v6791 = vunpack.c.l.b16 %v6342
    %v6792 = vunpack.c.l.b16 %v6352
    %v6793 = vunpack.c.l.b16 %v6366
    %v6794 = vunpack.c.l.b16 %v6376
    %v6795 = vunpack.c.l.b16 %v6390
    %v6796 = vunpack.c.l.b16 %v6400
    %v6797 = vunpack.c.l.b16 %v6414
    %v6798 = vunpack.c.l.b16 %v6424
    %v6799 = vunpack.c.l.b16 %v6438
    %v6800 = vunpack.c.l.b16 %v6448
    %v6801 = vunpack.c.l.b16 %v6462
    %v6802 = vunpack.c.l.b16 %v6472
    %v6803 = vunpack.c.l.b16 %v6486
    %v6804 = vunpack.c.l.b16 %v6496
    %v6805 = vpack.c.b16 %v6774, %v6773
    %v6806 = vpack.c.b16 %v6776, %v6775
    %v6807 = vpack.c.b16 %v6778, %v6777
    %v6808 = vpack.c.b16 %v6780, %v6779
    %v6809 = vpack.c.b16 %v6782, %v6781
    %v6810 = vpack.c.b16 %v6784, %v6783
    %v6811 = vpack.c.b16 %v6786, %v6785
    %v6812 = vpack.c.b16 %v6788, %v6787
    %v6813 = vpack.c.b16 %v6790, %v6789
    %v6814 = vpack.c.b16 %v6792, %v6791
    %v6815 = vpack.c.b16 %v6794, %v6793
    %v6816 = vpack.c.b16 %v6796, %v6795
    %v6817 = vpack.c.b16 %v6798, %v6797
    %v6818 = vpack.c.b16 %v6800, %v6799
    %v6819 = vpack.c.b16 %v6802, %v6801
    %v6820 = vpack.c.b16 %v6804, %v6803
    %6821 = vrot.lane.b32.xlu0 %v6805, 16
    %v6822 = vpop.permute.xlu0 %6821
    %6823 = vrot.lane.b32.xlu0 %v6806, 16
    %v6824 = vpop.permute.xlu0 %6823
    %6825 = vrot.lane.b32.xlu0 %v6807, 16
    %v6826 = vpop.permute.xlu0 %6825
    %6827 = vrot.lane.b32.xlu0 %v6808, 16
    %v6828 = vpop.permute.xlu0 %6827
    %6829 = vrot.lane.b32.xlu0 %v6809, 16
    %v6830 = vpop.permute.xlu0 %6829
    %6831 = vrot.lane.b32.xlu0 %v6810, 16
    %v6832 = vpop.permute.xlu0 %6831
    %6833 = vrot.lane.b32.xlu0 %v6811, 16
    %v6834 = vpop.permute.xlu0 %6833
    %6835 = vrot.lane.b32.xlu0 %v6812, 16
    %v6836 = vpop.permute.xlu0 %6835
    %6837 = vrot.lane.b32.xlu0 %v6813, 16
    %v6838 = vpop.permute.xlu0 %6837
    %6839 = vrot.lane.b32.xlu0 %v6814, 16
    %v6840 = vpop.permute.xlu0 %6839
    %6841 = vrot.lane.b32.xlu0 %v6815, 16
    %v6842 = vpop.permute.xlu0 %6841
    %6843 = vrot.lane.b32.xlu0 %v6816, 16
    %v6844 = vpop.permute.xlu0 %6843
    %6845 = vrot.lane.b32.xlu0 %v6817, 16
    %v6846 = vpop.permute.xlu0 %6845
    %6847 = vrot.lane.b32.xlu0 %v6818, 16
    %v6848 = vpop.permute.xlu0 %6847
    %6849 = vrot.lane.b32.xlu0 %v6819, 16
    %v6850 = vpop.permute.xlu0 %6849
    %6851 = vrot.lane.b32.xlu0 %v6820, 16
    %v6852 = vpop.permute.xlu0 %6851
    %v6853 = vunpack.c.l.b16 %v6548
    %v6854 = vunpack.c.l.b16 %v6551
    %v6855 = vunpack.c.l.b16 %v6555
    %v6856 = vunpack.c.l.b16 %v6558
    %v6857 = vunpack.c.l.b16 %v6562
    %v6858 = vunpack.c.l.b16 %v6565
    %v6859 = vunpack.c.l.b16 %v6569
    %v6860 = vunpack.c.l.b16 %v6572
    %v6861 = vunpack.c.l.b16 %v6576
    %v6862 = vunpack.c.l.b16 %v6579
    %v6863 = vunpack.c.l.b16 %v6583
    %v6864 = vunpack.c.l.b16 %v6586
    %v6865 = vunpack.c.l.b16 %v6590
    %v6866 = vunpack.c.l.b16 %v6593
    %v6867 = vunpack.c.l.b16 %v6597
    %v6868 = vunpack.c.l.b16 %v6600
    %v6869 = vunpack.c.l.b16 %v6604
    %v6870 = vunpack.c.l.b16 %v6607
    %v6871 = vunpack.c.l.b16 %v6611
    %v6872 = vunpack.c.l.b16 %v6614
    %v6873 = vunpack.c.l.b16 %v6618
    %v6874 = vunpack.c.l.b16 %v6621
    %v6875 = vunpack.c.l.b16 %v6625
    %v6876 = vunpack.c.l.b16 %v6628
    %v6877 = vunpack.c.l.b16 %v6632
    %v6878 = vunpack.c.l.b16 %v6635
    %v6879 = vunpack.c.l.b16 %v6639
    %v6880 = vunpack.c.l.b16 %v6642
    %v6881 = vunpack.c.l.b16 %v6646
    %v6882 = vunpack.c.l.b16 %v6649
    %v6883 = vunpack.c.l.b16 %v6653
    %v6884 = vunpack.c.l.b16 %v6656
    %v6885 = vpack.c.b16 %v6854, %v6853
    %v6886 = vpack.c.b16 %v6856, %v6855
    %v6887 = vpack.c.b16 %v6858, %v6857
    %v6888 = vpack.c.b16 %v6860, %v6859
    %v6889 = vpack.c.b16 %v6862, %v6861
    %v6890 = vpack.c.b16 %v6864, %v6863
    %v6891 = vpack.c.b16 %v6866, %v6865
    %v6892 = vpack.c.b16 %v6868, %v6867
    %v6893 = vpack.c.b16 %v6870, %v6869
    %v6894 = vpack.c.b16 %v6872, %v6871
    %v6895 = vpack.c.b16 %v6874, %v6873
    %v6896 = vpack.c.b16 %v6876, %v6875
    %v6897 = vpack.c.b16 %v6878, %v6877
    %v6898 = vpack.c.b16 %v6880, %v6879
    %v6899 = vpack.c.b16 %v6882, %v6881
    %v6900 = vpack.c.b16 %v6884, %v6883
    %6901 = vrot.lane.b32.xlu0 %v6885, 32
    %v6902 = vpop.permute.xlu0 %6901
    %6903 = vrot.lane.b32.xlu0 %v6886, 32
    %v6904 = vpop.permute.xlu0 %6903
    %6905 = vrot.lane.b32.xlu0 %v6887, 32
    %v6906 = vpop.permute.xlu0 %6905
    %6907 = vrot.lane.b32.xlu0 %v6888, 32
    %v6908 = vpop.permute.xlu0 %6907
    %6909 = vrot.lane.b32.xlu0 %v6889, 32
    %v6910 = vpop.permute.xlu0 %6909
    %6911 = vrot.lane.b32.xlu0 %v6890, 32
    %v6912 = vpop.permute.xlu0 %6911
    %6913 = vrot.lane.b32.xlu0 %v6891, 32
    %v6914 = vpop.permute.xlu0 %6913
    %6915 = vrot.lane.b32.xlu0 %v6892, 32
    %v6916 = vpop.permute.xlu0 %6915
    %6917 = vrot.lane.b32.xlu0 %v6893, 32
    %v6918 = vpop.permute.xlu0 %6917
    %6919 = vrot.lane.b32.xlu0 %v6894, 32
    %v6920 = vpop.permute.xlu0 %6919
    %6921 = vrot.lane.b32.xlu0 %v6895, 32
    %v6922 = vpop.permute.xlu0 %6921
    %6923 = vrot.lane.b32.xlu0 %v6896, 32
    %v6924 = vpop.permute.xlu0 %6923
    %6925 = vrot.lane.b32.xlu0 %v6897, 32
    %v6926 = vpop.permute.xlu0 %6925
    %6927 = vrot.lane.b32.xlu0 %v6898, 32
    %v6928 = vpop.permute.xlu0 %6927
    %6929 = vrot.lane.b32.xlu0 %v6899, 32
    %v6930 = vpop.permute.xlu0 %6929
    %6931 = vrot.lane.b32.xlu0 %v6900, 32
    %v6932 = vpop.permute.xlu0 %6931
    %v6933 = vunpack.c.l.b16 %v6107
    %v6934 = vunpack.c.l.b16 %v6108
    %v6935 = vpack.c.b16 %v6934, %v6933
    %6936 = vrot.lane.b32.xlu0 %v6758, 48
    %v6937 = vpop.permute.xlu0 %6936
    %6938 = vrot.lane.b32.xlu0 %v6759, 48
    %v6939 = vpop.permute.xlu0 %6938
    %6940 = vrot.lane.b32.xlu0 %v6760, 48
    %v6941 = vpop.permute.xlu0 %6940
    %6942 = vrot.lane.b32.xlu0 %v6761, 48
    %v6943 = vpop.permute.xlu0 %6942
    %6944 = vrot.lane.b32.xlu0 %v6762, 48
    %v6945 = vpop.permute.xlu0 %6944
    %6946 = vrot.lane.b32.xlu0 %v6763, 48
    %v6947 = vpop.permute.xlu0 %6946
    %6948 = vrot.lane.b32.xlu0 %v6764, 48
    %v6949 = vpop.permute.xlu0 %6948
    %6950 = vrot.lane.b32.xlu0 %v6765, 48
    %v6951 = vpop.permute.xlu0 %6950
    %6952 = vrot.lane.b32.xlu0 %v6766, 48
    %v6953 = vpop.permute.xlu0 %6952
    %6954 = vrot.lane.b32.xlu0 %v6767, 48
    %v6955 = vpop.permute.xlu0 %6954
    %6956 = vrot.lane.b32.xlu0 %v6768, 48
    %v6957 = vpop.permute.xlu0 %6956
    %6958 = vrot.lane.b32.xlu0 %v6769, 48
    %v6959 = vpop.permute.xlu0 %6958
    %6960 = vrot.lane.b32.xlu0 %v6770, 48
    %v6961 = vpop.permute.xlu0 %6960
    %6962 = vrot.lane.b32.xlu0 %v6771, 48
    %v6963 = vpop.permute.xlu0 %6962
    %6964 = vrot.lane.b32.xlu0 %v6772, 48
    %v6965 = vpop.permute.xlu0 %6964
    %6966 = vrot.lane.b32.xlu0 %v6935, 48
    %v6967 = vpop.permute.xlu0 %6966
    %v6968 = vunpack.c.l.b16 %v6670
    %v6969 = vunpack.c.l.b16 %v6680
    %v6970 = vpack.c.b16 %v6969, %v6968
    %6971 = vrot.lane.b32.xlu0 %v6806, 64
    %v6972 = vpop.permute.xlu0 %6971
    %6973 = vrot.lane.b32.xlu0 %v6807, 64
    %v6974 = vpop.permute.xlu0 %6973
    %6975 = vrot.lane.b32.xlu0 %v6808, 64
    %v6976 = vpop.permute.xlu0 %6975
    %6977 = vrot.lane.b32.xlu0 %v6809, 64
    %v6978 = vpop.permute.xlu0 %6977
    %6979 = vrot.lane.b32.xlu0 %v6810, 64
    %v6980 = vpop.permute.xlu0 %6979
    %6981 = vrot.lane.b32.xlu0 %v6811, 64
    %v6982 = vpop.permute.xlu0 %6981
    %6983 = vrot.lane.b32.xlu0 %v6812, 64
    %v6984 = vpop.permute.xlu0 %6983
    %6985 = vrot.lane.b32.xlu0 %v6813, 64
    %v6986 = vpop.permute.xlu0 %6985
    %6987 = vrot.lane.b32.xlu0 %v6814, 64
    %v6988 = vpop.permute.xlu0 %6987
    %6989 = vrot.lane.b32.xlu0 %v6815, 64
    %v6990 = vpop.permute.xlu0 %6989
    %6991 = vrot.lane.b32.xlu0 %v6816, 64
    %v6992 = vpop.permute.xlu0 %6991
    %6993 = vrot.lane.b32.xlu0 %v6817, 64
    %v6994 = vpop.permute.xlu0 %6993
    %6995 = vrot.lane.b32.xlu0 %v6818, 64
    %v6996 = vpop.permute.xlu0 %6995
    %6997 = vrot.lane.b32.xlu0 %v6819, 64
    %v6998 = vpop.permute.xlu0 %6997
    %6999 = vrot.lane.b32.xlu0 %v6820, 64
    %v7000 = vpop.permute.xlu0 %6999
    %7001 = vrot.lane.b32.xlu0 %v6970, 64
    %v7002 = vpop.permute.xlu0 %7001
    %v7003 = vunpack.c.l.b16 %v6687
    %v7004 = vunpack.c.l.b16 %v6690
    %v7005 = vpack.c.b16 %v7004, %v7003
    %7006 = vrot.lane.b32.xlu0 %v6886, 80
    %v7007 = vpop.permute.xlu0 %7006
    %7008 = vrot.lane.b32.xlu0 %v6887, 80
    %v7009 = vpop.permute.xlu0 %7008
    %7010 = vrot.lane.b32.xlu0 %v6888, 80
    %v7011 = vpop.permute.xlu0 %7010
    %7012 = vrot.lane.b32.xlu0 %v6889, 80
    %v7013 = vpop.permute.xlu0 %7012
    %7014 = vrot.lane.b32.xlu0 %v6890, 80
    %v7015 = vpop.permute.xlu0 %7014
    %7016 = vrot.lane.b32.xlu0 %v6891, 80
    %v7017 = vpop.permute.xlu0 %7016
    %7018 = vrot.lane.b32.xlu0 %v6892, 80
    %v7019 = vpop.permute.xlu0 %7018
    %7020 = vrot.lane.b32.xlu0 %v6893, 80
    %v7021 = vpop.permute.xlu0 %7020
    %7022 = vrot.lane.b32.xlu0 %v6894, 80
    %v7023 = vpop.permute.xlu0 %7022
    %7024 = vrot.lane.b32.xlu0 %v6895, 80
    %v7025 = vpop.permute.xlu0 %7024
    %7026 = vrot.lane.b32.xlu0 %v6896, 80
    %v7027 = vpop.permute.xlu0 %7026
    %7028 = vrot.lane.b32.xlu0 %v6897, 80
    %v7029 = vpop.permute.xlu0 %7028
    %7030 = vrot.lane.b32.xlu0 %v6898, 80
    %v7031 = vpop.permute.xlu0 %7030
    %7032 = vrot.lane.b32.xlu0 %v6899, 80
    %v7033 = vpop.permute.xlu0 %7032
    %7034 = vrot.lane.b32.xlu0 %v6900, 80
    %v7035 = vpop.permute.xlu0 %7034
    %7036 = vrot.lane.b32.xlu0 %v7005, 80
    %v7037 = vpop.permute.xlu0 %7036
    %v7038 = vunpack.c.l.b16 %v6110
    %v7039 = vunpack.c.l.b16 %v6111
    %v7040 = vpack.c.b16 %v7039, %v7038
    %7041 = vrot.lane.b32.xlu0 %v6759, 96
    %v7042 = vpop.permute.xlu0 %7041
    %7043 = vrot.lane.b32.xlu0 %v6760, 96
    %v7044 = vpop.permute.xlu0 %7043
    %7045 = vrot.lane.b32.xlu0 %v6761, 96
    %v7046 = vpop.permute.xlu0 %7045
    %7047 = vrot.lane.b32.xlu0 %v6762, 96
    %v7048 = vpop.permute.xlu0 %7047
    %7049 = vrot.lane.b32.xlu0 %v6763, 96
    %v7050 = vpop.permute.xlu0 %7049
    %7051 = vrot.lane.b32.xlu0 %v6764, 96
    %v7052 = vpop.permute.xlu0 %7051
    %7053 = vrot.lane.b32.xlu0 %v6765, 96
    %v7054 = vpop.permute.xlu0 %7053
    %7055 = vrot.lane.b32.xlu0 %v6766, 96
    %v7056 = vpop.permute.xlu0 %7055
    %7057 = vrot.lane.b32.xlu0 %v6767, 96
    %v7058 = vpop.permute.xlu0 %7057
    %7059 = vrot.lane.b32.xlu0 %v6768, 96
    %v7060 = vpop.permute.xlu0 %7059
    %7061 = vrot.lane.b32.xlu0 %v6769, 96
    %v7062 = vpop.permute.xlu0 %7061
    %7063 = vrot.lane.b32.xlu0 %v6770, 96
    %v7064 = vpop.permute.xlu0 %7063
    %7065 = vrot.lane.b32.xlu0 %v6771, 96
    %v7066 = vpop.permute.xlu0 %7065
    %7067 = vrot.lane.b32.xlu0 %v6772, 96
    %v7068 = vpop.permute.xlu0 %7067
    %7069 = vrot.lane.b32.xlu0 %v6935, 96
    %v7070 = vpop.permute.xlu0 %7069
    %7071 = vrot.lane.b32.xlu0 %v7040, 96
    %v7072 = vpop.permute.xlu0 %7071
    %v7073 = vunpack.c.l.b16 %v6704
    %v7074 = vunpack.c.l.b16 %v6714
    %v7075 = vpack.c.b16 %v7074, %v7073
    %7076 = vrot.lane.b32.xlu0 %v6807, 112
    %v7077 = vpop.permute.xlu0 %7076
    %7078 = vrot.lane.b32.xlu0 %v6808, 112
    %v7079 = vpop.permute.xlu0 %7078
    %7080 = vrot.lane.b32.xlu0 %v6809, 112
    %v7081 = vpop.permute.xlu0 %7080
    %7082 = vrot.lane.b32.xlu0 %v6810, 112
    %v7083 = vpop.permute.xlu0 %7082
    %7084 = vrot.lane.b32.xlu0 %v6811, 112
    %v7085 = vpop.permute.xlu0 %7084
    %7086 = vrot.lane.b32.xlu0 %v6812, 112
    %v7087 = vpop.permute.xlu0 %7086
    %7088 = vrot.lane.b32.xlu0 %v6813, 112
    %v7089 = vpop.permute.xlu0 %7088
    %7090 = vrot.lane.b32.xlu0 %v6814, 112
    %v7091 = vpop.permute.xlu0 %7090
    %7092 = vrot.lane.b32.xlu0 %v6815, 112
    %v7093 = vpop.permute.xlu0 %7092
    %7094 = vrot.lane.b32.xlu0 %v6816, 112
    %v7095 = vpop.permute.xlu0 %7094
    %7096 = vrot.lane.b32.xlu0 %v6817, 112
    %v7097 = vpop.permute.xlu0 %7096
    %7098 = vrot.lane.b32.xlu0 %v6818, 112
    %v7099 = vpop.permute.xlu0 %7098
    %7100 = vrot.lane.b32.xlu0 %v6819, 112
    %v7101 = vpop.permute.xlu0 %7100
    %7102 = vrot.lane.b32.xlu0 %v6820, 112
    %v7103 = vpop.permute.xlu0 %7102
    %7104 = vrot.lane.b32.xlu0 %v6970, 112
    %v7105 = vpop.permute.xlu0 %7104
    %7106 = vrot.lane.b32.xlu0 %v7075, 112
    %v7107 = vpop.permute.xlu0 %7106
    %v7108 = vunpack.c.l.b16 %v6721
    %v7109 = vunpack.c.l.b16 %v6724
    %v7110 = vpack.c.b16 %v7109, %v7108
    %v7113 = vsel %vm1283, %v6757, %v6822
    %v7116 = vsel %vm1283, %v6758, %v6824
    %v7119 = vsel %vm1283, %v6759, %v6826
    %v7122 = vsel %vm1283, %v6760, %v6828
    %v7125 = vsel %vm1283, %v6761, %v6830
    %v7128 = vsel %vm1283, %v6762, %v6832
    %v7131 = vsel %vm1283, %v6763, %v6834
    %v7134 = vsel %vm1283, %v6764, %v6836
    %v7137 = vsel %vm1283, %v6765, %v6838
    %v7140 = vsel %vm1283, %v6766, %v6840
    %v7143 = vsel %vm1283, %v6767, %v6842
    %v7146 = vsel %vm1283, %v6768, %v6844
    %v7149 = vsel %vm1283, %v6769, %v6846
    %v7152 = vsel %vm1283, %v6770, %v6848
    %v7155 = vsel %vm1283, %v6771, %v6850
    %v7158 = vsel %vm1283, %v6772, %v6852
    %v7160 = vsel %vm1415, %v7113, %v6902
    %v7162 = vsel %vm1415, %v7116, %v6904
    %v7164 = vsel %vm1415, %v7119, %v6906
    %v7166 = vsel %vm1415, %v7122, %v6908
    %v7168 = vsel %vm1415, %v7125, %v6910
    %v7170 = vsel %vm1415, %v7128, %v6912
    %v7172 = vsel %vm1415, %v7131, %v6914
    %v7174 = vsel %vm1415, %v7134, %v6916
    %v7176 = vsel %vm1415, %v7137, %v6918
    %v7178 = vsel %vm1415, %v7140, %v6920
    %v7180 = vsel %vm1415, %v7143, %v6922
    %v7182 = vsel %vm1415, %v7146, %v6924
    %v7184 = vsel %vm1415, %v7149, %v6926
    %v7186 = vsel %vm1415, %v7152, %v6928
    %v7188 = vsel %vm1415, %v7155, %v6930
    %v7190 = vsel %vm1415, %v7158, %v6932
    %v7192 = vsel %vm3374, %v7160, %v6937
    %v7194 = vsel %vm3374, %v7162, %v6939
    %v7196 = vsel %vm3374, %v7164, %v6941
    %v7198 = vsel %vm3374, %v7166, %v6943
    %v7200 = vsel %vm3374, %v7168, %v6945
    %v7202 = vsel %vm3374, %v7170, %v6947
    %v7204 = vsel %vm3374, %v7172, %v6949
    %v7206 = vsel %vm3374, %v7174, %v6951
    %v7208 = vsel %vm3374, %v7176, %v6953
    %v7210 = vsel %vm3374, %v7178, %v6955
    %v7212 = vsel %vm3374, %v7180, %v6957
    %v7214 = vsel %vm3374, %v7182, %v6959
    %v7216 = vsel %vm3374, %v7184, %v6961
    %v7218 = vsel %vm3374, %v7186, %v6963
    %v7220 = vsel %vm3374, %v7188, %v6965
    %v7222 = vsel %vm3374, %v7190, %v6967
    %v7224 = vsel %vm3407, %v7192, %v6972
    %v7226 = vsel %vm3407, %v7194, %v6974
    %v7228 = vsel %vm3407, %v7196, %v6976
    %v7230 = vsel %vm3407, %v7198, %v6978
    %v7232 = vsel %vm3407, %v7200, %v6980
    %v7234 = vsel %vm3407, %v7202, %v6982
    %v7236 = vsel %vm3407, %v7204, %v6984
    %v7238 = vsel %vm3407, %v7206, %v6986
    %v7240 = vsel %vm3407, %v7208, %v6988
    %v7242 = vsel %vm3407, %v7210, %v6990
    %v7244 = vsel %vm3407, %v7212, %v6992
    %v7246 = vsel %vm3407, %v7214, %v6994
    %v7248 = vsel %vm3407, %v7216, %v6996
    %v7250 = vsel %vm3407, %v7218, %v6998
    %v7252 = vsel %vm3407, %v7220, %v7000
    %v7254 = vsel %vm3407, %v7222, %v7002
    %v7256 = vsel %vm3440, %v7224, %v7007
    %v7258 = vsel %vm3440, %v7226, %v7009
    %v7260 = vsel %vm3440, %v7228, %v7011
    %v7262 = vsel %vm3440, %v7230, %v7013
    %v7264 = vsel %vm3440, %v7232, %v7015
    %v7266 = vsel %vm3440, %v7234, %v7017
    %v7268 = vsel %vm3440, %v7236, %v7019
    %v7270 = vsel %vm3440, %v7238, %v7021
    %v7272 = vsel %vm3440, %v7240, %v7023
    %v7274 = vsel %vm3440, %v7242, %v7025
    %v7276 = vsel %vm3440, %v7244, %v7027
    %v7278 = vsel %vm3440, %v7246, %v7029
    %v7280 = vsel %vm3440, %v7248, %v7031
    %v7282 = vsel %vm3440, %v7250, %v7033
    %v7284 = vsel %vm3440, %v7252, %v7035
    %v7286 = vsel %vm3440, %v7254, %v7037
    %v7288 = vsel %vm3473, %v7256, %v7042
    %v7290 = vsel %vm3473, %v7258, %v7044
    %v7292 = vsel %vm3473, %v7260, %v7046
    %v7294 = vsel %vm3473, %v7262, %v7048
    %v7296 = vsel %vm3473, %v7264, %v7050
    %v7298 = vsel %vm3473, %v7266, %v7052
    %v7300 = vsel %vm3473, %v7268, %v7054
    %v7302 = vsel %vm3473, %v7270, %v7056
    %v7304 = vsel %vm3473, %v7272, %v7058
    %v7306 = vsel %vm3473, %v7274, %v7060
    %v7308 = vsel %vm3473, %v7276, %v7062
    %v7310 = vsel %vm3473, %v7278, %v7064
    %v7312 = vsel %vm3473, %v7280, %v7066
    %v7314 = vsel %vm3473, %v7282, %v7068
    %v7316 = vsel %vm3473, %v7284, %v7070
    %v7318 = vsel %vm3473, %v7286, %v7072
    %v7320 = vsel %vm3506, %v7288, %v7077
    %v7323 = vsel %vm3506, %v7290, %v7079
    %v7326 = vsel %vm3506, %v7292, %v7081
    %v7329 = vsel %vm3506, %v7294, %v7083
    %v7332 = vsel %vm3506, %v7296, %v7085
    %v7335 = vsel %vm3506, %v7298, %v7087
    %v7338 = vsel %vm3506, %v7300, %v7089
    %v7341 = vsel %vm3506, %v7302, %v7091
    %v7344 = vsel %vm3506, %v7304, %v7093
    %v7347 = vsel %vm3506, %v7306, %v7095
    %v7350 = vsel %vm3506, %v7308, %v7097
    %v7353 = vsel %vm3506, %v7310, %v7099
    %v7356 = vsel %vm3506, %v7312, %v7101
    %v7359 = vsel %vm3506, %v7314, %v7103
    %v7362 = vsel %vm3506, %v7316, %v7105
    %v7365 = vsel %vm3506, %v7318, %v7107
    %v7367 = vld [vmem:[%s3] sm:$0xf]
    %v7368 = vld [vmem:[%s3 + $0x4] sm:$0xf]
    %v7369 = vld [vmem:[%s3 + $0x8] sm:$0xf]
    %v7370 = vld [vmem:[%s3 + $0xc] sm:$0xf]
    %v7371 = vld [vmem:[%s3 + $0x10] sm:$0xf]
    %v7372 = vld [vmem:[%s3 + $0x14] sm:$0xf]
    %v7373 = vld [vmem:[%s3 + $0x18] sm:$0xf]
    %v7374 = vld [vmem:[%s3 + $0x1c] sm:$0xf]
    %v7375 = vld [vmem:[%s3 + $0x20] sm:$0xf]
    %v7376 = vld [vmem:[%s3 + $0x24] sm:$0xf]
    %v7377 = vld [vmem:[%s3 + $0x28] sm:$0xf]
    %v7378 = vld [vmem:[%s3 + $0x2c] sm:$0xf]
    %v7379 = vld [vmem:[%s3 + $0x30] sm:$0xf]
    %v7380 = vld [vmem:[%s3 + $0x34] sm:$0xf]
    %v7381 = vld [vmem:[%s3 + $0x38] sm:$0xf]
    %v7382 = vld [vmem:[%s3 + $0x3c] sm:$0xf]
    %v7383 = vld [vmem:[%s3 + $0x40] sm:$0xf]
    %v7384 = vld [vmem:[%s3 + $0x44] sm:$0xf]
    %v7385 = vld [vmem:[%s4] sm:$0x1]
    %v7387 = vlaneseq
    %v7388 = vshrl.u32 %v7387, 7
    %v7389 = vsub.s32 0, %v7388
    %v7390 = vrot.slane %v7385, %v7389
    %v7410 = vunpack.c.l.b16 %v7367
    %v7411 = vunpack.c.l.b16 %v7368
    %v7412 = vunpack.c.l.b16 %v7369
    %v7413 = vunpack.c.l.b16 %v7370
    %v7414 = vunpack.c.l.b16 %v7371
    %v7415 = vunpack.c.l.b16 %v7372
    %v7416 = vunpack.c.l.b16 %v7373
    %v7417 = vunpack.c.l.b16 %v7374
    %v7418 = vunpack.c.l.b16 %v7375
    %v7419 = vunpack.c.l.b16 %v7376
    %v7420 = vunpack.c.l.b16 %v7377
    %v7421 = vunpack.c.l.b16 %v7378
    %v7422 = vunpack.c.l.b16 %v7379
    %v7423 = vunpack.c.l.b16 %v7380
    %v7424 = vunpack.c.l.b16 %v7381
    %v7425 = vunpack.c.l.b16 %v7382
    %v7426 = vunpack.c.l.b16 %v7383
    %v7427 = vunpack.c.l.b16 %v7384
    %v7428 = vpack.c.b16 %v7411, %v7410
    %v7429 = vpack.c.b16 %v7413, %v7412
    %v7430 = vpack.c.b16 %v7415, %v7414
    %v7431 = vpack.c.b16 %v7417, %v7416
    %v7432 = vpack.c.b16 %v7419, %v7418
    %v7433 = vpack.c.b16 %v7421, %v7420
    %v7434 = vpack.c.b16 %v7423, %v7422
    %v7435 = vpack.c.b16 %v7425, %v7424
    %v7436 = vpack.c.b16 %v7427, %v7426
    %v7447 = vsel %vm1283, %v6887, 0
    %v7450 = vsel %vm1283, %v6888, 0
    %v7453 = vsel %vm1283, %v6889, 0
    %v7456 = vsel %vm1283, %v6890, 0
    %v7459 = vsel %vm1283, %v6891, 0
    %v7462 = vsel %vm1283, %v6892, 0
    %v7465 = vsel %vm1283, %v6893, 0
    %v7468 = vsel %vm1283, %v6894, 0
    %v7471 = vsel %vm1283, %v6895, 0
    %v7474 = vsel %vm1283, %v6896, 0
    %v7477 = vsel %vm1283, %v6897, 0
    %v7480 = vsel %vm1283, %v6898, 0
    %v7483 = vsel %vm1283, %v6899, 0
    %v7486 = vsel %vm1283, %v6900, 0
    %v7489 = vsel %vm1283, %v7005, 0
    %v7492 = vsel %vm1283, %v7110, 0
    %7494 = vmatprep.subr.bf16.mxu0 0
    %7495 = vmatpush1.bf16.msra.mxu0 %v7435
    %7496 = vmatprep.subr.bf16.mxu0 0
    %7497 = vmatpush1.bf16.msra.mxu0 %v7434
    %7498 = vmatprep.subr.bf16.mxu0 0
    %7499 = vmatpush1.bf16.msra.mxu0 %v7433
    %7500 = vmatprep.subr.bf16.mxu0 0
    %7501 = vmatpush1.bf16.msra.mxu0 %v7432
    %7502 = vmatprep.subr.bf16.mxu0 0
    %7503 = vmatpush1.bf16.msra.mxu0 %v7431
    %7504 = vmatprep.subr.bf16.mxu0 0
    %7505 = vmatpush1.bf16.msra.mxu0 %v7430
    %7506 = vmatprep.subr.bf16.mxu0 0
    %7507 = vmatpush1.bf16.msra.mxu0 %v7429
    %7508 = vmatprep.subr.bf16.mxu0 0
    %7509 = vmatpush1.bf16.msra.mxu0 %v7428
    %7510 = vmatprep.subr.bf16.mxu0 0
    %7511 = vmatpush2.bf16.msra.mxu0 0
    %7512 = vmatprep.subr.bf16.mxu0 0
    %7513 = vmatpush2.bf16.msra.mxu0 0
    %7514 = vmatprep.subr.bf16.mxu0 0
    %7515 = vmatpush2.bf16.msra.mxu0 0
    %7516 = vmatprep.subr.bf16.mxu0 0
    %7517 = vmatpush2.bf16.msra.mxu0 0
    %7518 = vmatprep.subr.bf16.mxu0 0
    %7519 = vmatpush2.bf16.msra.mxu0 0
    %7520 = vmatprep.subr.bf16.mxu0 0
    %7521 = vmatpush2.bf16.msra.mxu0 0
    %7522 = vmatprep.subr.bf16.mxu0 0
    %7523 = vmatpush2.bf16.msra.mxu0 0
    %7524 = vmatprep.subr.bf16.mxu0 0
    %7525 = vmatpush2.bf16.msra.mxu0 %v7436
    %7526 = vmatprep.mubr.bf16.mxu0 %v7447
    %7527 = vmatmul.mubr.bf16.gmra.mxu0 %v7320
    %v7528 = vpop.f32.mrf.mxu0
    %v7529 = vadd.f32 %v7390, %v7528
    %v7530 = vpop.f32.mrf.mxu0
    %v7531 = vpop.f32.mrf.mxu0
    %v7532 = vadd.f32 %v7390, %v7531
    %v7533 = vpop.f32.mrf.mxu0
    %7534 = vmatprep.mubr.bf16.mxu0 %v7450
    %7535 = vmatmul.mubr.bf16.gmra.mxu0 %v7323
    %v7536 = vpop.f32.mrf.mxu0
    %v7537 = vadd.f32 %v7390, %v7536
    %v7538 = vpop.f32.mrf.mxu0
    %v7539 = vpop.f32.mrf.mxu0
    %v7540 = vadd.f32 %v7390, %v7539
    %v7541 = vpop.f32.mrf.mxu0
    %7542 = vmatprep.mubr.bf16.mxu0 %v7453
    %7543 = vmatmul.mubr.bf16.gmra.mxu0 %v7326
    %v7544 = vpop.f32.mrf.mxu0
    %v7545 = vadd.f32 %v7390, %v7544
    %v7546 = vpop.f32.mrf.mxu0
    %v7547 = vpop.f32.mrf.mxu0
    %v7548 = vadd.f32 %v7390, %v7547
    %v7549 = vpop.f32.mrf.mxu0
    %7550 = vmatprep.mubr.bf16.mxu0 %v7456
    %7551 = vmatmul.mubr.bf16.gmra.mxu0 %v7329
    %v7552 = vpop.f32.mrf.mxu0
    %v7553 = vadd.f32 %v7390, %v7552
    %v7554 = vpop.f32.mrf.mxu0
    %v7555 = vpop.f32.mrf.mxu0
    %v7556 = vadd.f32 %v7390, %v7555
    %v7557 = vpop.f32.mrf.mxu0
    %7558 = vmatprep.mubr.bf16.mxu0 %v7459
    %7559 = vmatmul.mubr.bf16.gmra.mxu0 %v7332
    %v7560 = vpop.f32.mrf.mxu0
    %v7561 = vadd.f32 %v7390, %v7560
    %v7562 = vpop.f32.mrf.mxu0
    %v7563 = vpop.f32.mrf.mxu0
    %v7564 = vadd.f32 %v7390, %v7563
    %v7565 = vpop.f32.mrf.mxu0
    %7566 = vmatprep.mubr.bf16.mxu0 %v7462
    %7567 = vmatmul.mubr.bf16.gmra.mxu0 %v7335
    %v7568 = vpop.f32.mrf.mxu0
    %v7569 = vadd.f32 %v7390, %v7568
    %v7570 = vpop.f32.mrf.mxu0
    %v7571 = vpop.f32.mrf.mxu0
    %v7572 = vadd.f32 %v7390, %v7571
    %v7573 = vpop.f32.mrf.mxu0
    %7574 = vmatprep.mubr.bf16.mxu0 %v7465
    %7575 = vmatmul.mubr.bf16.gmra.mxu0 %v7338
    %v7576 = vpop.f32.mrf.mxu0
    %v7577 = vadd.f32 %v7390, %v7576
    %v7578 = vpop.f32.mrf.mxu0
    %v7579 = vpop.f32.mrf.mxu0
    %v7580 = vadd.f32 %v7390, %v7579
    %v7581 = vpop.f32.mrf.mxu0
    %7582 = vmatprep.mubr.bf16.mxu0 %v7468
    %7583 = vmatmul.mubr.bf16.gmra.mxu0 %v7341
    %v7584 = vpop.f32.mrf.mxu0
    %v7585 = vadd.f32 %v7390, %v7584
    %v7586 = vpop.f32.mrf.mxu0
    %v7587 = vpop.f32.mrf.mxu0
    %v7588 = vadd.f32 %v7390, %v7587
    %v7589 = vpop.f32.mrf.mxu0
    %7590 = vmatprep.mubr.bf16.mxu0 %v7471
    %7591 = vmatmul.mubr.bf16.gmra.mxu0 %v7344
    %v7592 = vpop.f32.mrf.mxu0
    %v7593 = vadd.f32 %v7390, %v7592
    %v7594 = vpop.f32.mrf.mxu0
    %v7595 = vpop.f32.mrf.mxu0
    %v7596 = vadd.f32 %v7390, %v7595
    %v7597 = vpop.f32.mrf.mxu0
    %7598 = vmatprep.mubr.bf16.mxu0 %v7474
    %7599 = vmatmul.mubr.bf16.gmra.mxu0 %v7347
    %v7600 = vpop.f32.mrf.mxu0
    %v7601 = vadd.f32 %v7390, %v7600
    %v7602 = vpop.f32.mrf.mxu0
    %v7603 = vpop.f32.mrf.mxu0
    %v7604 = vadd.f32 %v7390, %v7603
    %v7605 = vpop.f32.mrf.mxu0
    %7606 = vmatprep.mubr.bf16.mxu0 %v7477
    %7607 = vmatmul.mubr.bf16.gmra.mxu0 %v7350
    %v7608 = vpop.f32.mrf.mxu0
    %v7609 = vadd.f32 %v7390, %v7608
    %v7610 = vpop.f32.mrf.mxu0
    %v7611 = vpop.f32.mrf.mxu0
    %v7612 = vadd.f32 %v7390, %v7611
    %v7613 = vpop.f32.mrf.mxu0
    %7614 = vmatprep.mubr.bf16.mxu0 %v7480
    %7615 = vmatmul.mubr.bf16.gmra.mxu0 %v7353
    %v7616 = vpop.f32.mrf.mxu0
    %v7617 = vadd.f32 %v7390, %v7616
    %v7618 = vpop.f32.mrf.mxu0
    %v7619 = vpop.f32.mrf.mxu0
    %v7620 = vadd.f32 %v7390, %v7619
    %v7621 = vpop.f32.mrf.mxu0
    %7622 = vmatprep.mubr.bf16.mxu0 %v7483
    %7623 = vmatmul.mubr.bf16.gmra.mxu0 %v7356
    %v7624 = vpop.f32.mrf.mxu0
    %v7625 = vadd.f32 %v7390, %v7624
    %v7626 = vpop.f32.mrf.mxu0
    %v7627 = vpop.f32.mrf.mxu0
    %v7628 = vadd.f32 %v7390, %v7627
    %v7629 = vpop.f32.mrf.mxu0
    %7630 = vmatprep.mubr.bf16.mxu0 %v7486
    %7631 = vmatmul.mubr.bf16.gmra.mxu0 %v7359
    %v7632 = vpop.f32.mrf.mxu0
    %v7633 = vadd.f32 %v7390, %v7632
    %v7634 = vpop.f32.mrf.mxu0
    %v7635 = vpop.f32.mrf.mxu0
    %v7636 = vadd.f32 %v7390, %v7635
    %v7637 = vpop.f32.mrf.mxu0
    %7638 = vmatprep.mubr.bf16.mxu0 %v7489
    %7639 = vmatmul.mubr.bf16.gmra.mxu0 %v7362
    %v7640 = vpop.f32.mrf.mxu0
    %v7641 = vadd.f32 %v7390, %v7640
    %v7642 = vpop.f32.mrf.mxu0
    %v7643 = vpop.f32.mrf.mxu0
    %v7644 = vadd.f32 %v7390, %v7643
    %v7645 = vpop.f32.mrf.mxu0
    %7646 = vmatprep.mubr.bf16.mxu0 %v7492
    %7647 = vmatmul.mubr.bf16.gmra.mxu0 %v7365
    %v7648 = vpop.f32.mrf.mxu0
    %v7649 = vadd.f32 %v7390, %v7648
    %v7650 = vpop.f32.mrf.mxu0
    %v7651 = vpop.f32.mrf.mxu0
    %v7652 = vadd.f32 %v7390, %v7651
    %v7653 = vpop.f32.mrf.mxu0
    %7654 = vdwg.mxu0
    %v7655 = vmax.f32 %v7529, 0.0
    %v7656 = vmax.f32 %v7532, 0.0
    %v7657 = vmax.f32 %v7537, 0.0
    %v7658 = vmax.f32 %v7540, 0.0
    %v7659 = vmax.f32 %v7545, 0.0
    %v7660 = vmax.f32 %v7548, 0.0
    %v7661 = vmax.f32 %v7553, 0.0
    %v7662 = vmax.f32 %v7556, 0.0
    %v7663 = vmax.f32 %v7561, 0.0
    %v7664 = vmax.f32 %v7564, 0.0
    %v7665 = vmax.f32 %v7569, 0.0
    %v7666 = vmax.f32 %v7572, 0.0
    %v7667 = vmax.f32 %v7577, 0.0
    %v7668 = vmax.f32 %v7580, 0.0
    %v7669 = vmax.f32 %v7585, 0.0
    %v7670 = vmax.f32 %v7588, 0.0
    %v7671 = vmax.f32 %v7593, 0.0
    %v7672 = vmax.f32 %v7596, 0.0
    %v7673 = vmax.f32 %v7601, 0.0
    %v7674 = vmax.f32 %v7604, 0.0
    %v7675 = vmax.f32 %v7609, 0.0
    %v7676 = vmax.f32 %v7612, 0.0
    %v7677 = vmax.f32 %v7617, 0.0
    %v7678 = vmax.f32 %v7620, 0.0
    %v7679 = vmax.f32 %v7625, 0.0
    %v7680 = vmax.f32 %v7628, 0.0
    %v7681 = vmax.f32 %v7633, 0.0
    %v7682 = vmax.f32 %v7636, 0.0
    %v7683 = vmax.f32 %v7641, 0.0
    %v7684 = vmax.f32 %v7644, 0.0
    %v7685 = vmax.f32 %v7649, 0.0
    %v7686 = vmax.f32 %v7652, 0.0
    %v7687 = vadd.f32 %v7655, %v7656
    %v7688 = vadd.f32 %v7687, %v7657
    %v7689 = vadd.f32 %v7688, %v7658
    %v7690 = vadd.f32 %v7689, %v7659
    %v7691 = vadd.f32 %v7690, %v7660
    %v7692 = vadd.f32 %v7691, %v7661
    %v7693 = vadd.f32 %v7692, %v7662
    %v7694 = vadd.f32 %v7693, %v7663
    %v7695 = vadd.f32 %v7694, %v7664
    %v7696 = vadd.f32 %v7695, %v7665
    %v7697 = vadd.f32 %v7696, %v7666
    %v7698 = vadd.f32 %v7697, %v7667
    %v7699 = vadd.f32 %v7698, %v7668
    %v7700 = vadd.f32 %v7699, %v7669
    %v7701 = vadd.f32 %v7700, %v7670
    %v7702 = vadd.f32 %v7701, %v7671
    %v7703 = vadd.f32 %v7702, %v7672
    %v7704 = vadd.f32 %v7703, %v7673
    %v7705 = vadd.f32 %v7704, %v7674
    %v7706 = vadd.f32 %v7705, %v7675
    %v7707 = vadd.f32 %v7706, %v7676
    %v7708 = vadd.f32 %v7707, %v7677
    %v7709 = vadd.f32 %v7708, %v7678
    %v7710 = vadd.f32 %v7709, %v7679
    %v7711 = vadd.f32 %v7710, %v7680
    %v7712 = vadd.f32 %v7711, %v7681
    %v7713 = vadd.f32 %v7712, %v7682
    %v7714 = vadd.f32 %v7713, %v7683
    %v7715 = vadd.f32 %v7714, %v7684
    %v7716 = vadd.f32 %v7715, %v7685
    %v7717 = vadd.f32 %v7716, %v7686
    %v7718 = vrot.slane %v7717, 4
    %v7719 = vadd.f32 %v7717, %v7718
    %v7720 = vrot.slane %v7719, 2
    %v7721 = vadd.f32 %v7719, %v7720
    %v7722 = vrot.slane %v7721, 1
    %v7723 = vadd.f32 %v7721, %v7722
    %v7724 = vmul.f32 %v7723, 0.00390625
    %v7725 = vmul.f32 %v7724, %v7724
    %7726 = vadd.xlane.f32.xlu0 %v7725
    %v7727 = vpop.xlane.xlu0 %7726
    %v7728 = vmax.f32 %v7727, 1e-24
    %v7729 = vrsqrt.pop %v7728
    %v7730 = vmul.f32 %v7724, %v7729
    %vm7731 = vcmask 1040384
    %v7732 = vsel %vm7731, %v3918, %v7730
    %7733 = vst [vmem:[#allocation3] sm:$0x3] %v7732
    // Predicated region
    $region22: #{extractor_forward_extract.1} parent=1 // pred_check
      _
    $region23: #{extractor_forward_extract.1} parent=1 // pred_check_branch
      %7735 = sbr.rel (0) target = $region25
    $region24: #{extractor_forward_extract.1} parent=1 // pred_region
      %s7737 = ssub.s32 32, 32
      %7738 = vsyncadd [#allocation4], %s7737
      %s7740 = sshll.u32 [#allocation3], 4
      %s7741 = int_to_ptr.vmem [resolvable:$true] %s7740
      %7743 = dma.vmem_to_hbm [thread:$0]  %s7741, 32, %s5, [#allocation4]
    $region25: #{extractor_forward_extract.1} parent=1 // pred_fallthru
      _
    // Predicated region
    $region26: #{extractor_forward_extract.1} parent=1 // pred_check
      _
    $region27: #{extractor_forward_extract.1} parent=1 // pred_check_branch
      %7745 = sbr.rel (0) target = $region29
    $region28: #{extractor_forward_extract.1} parent=1 // pred_region
      %7746 = dma.done [#allocation4], 32
    $region29: #{extractor_forward_extract.1} parent=1 // pred_fallthru
      _
    %7747 = vsyncpa [#allocation4], 1

</llo_original>
